<compile_context>
chip_gen: v5e
topology: v5e:2x2
jax: 0.10.0
libtpu: 0.0.40
codegen_flags: <defaults>
</compile_context>

<pallas_src>
import jax
import jax.numpy as jnp
from jax.experimental import pallas as pl
from jax.experimental.pallas import tpu as pltpu  # noqa: F401  (TPU backend)


# ----------------------------- Pallas kernels ------------------------------

def _conv_relu_pool_kernel(pa_ref, pb_ref, pc_ref, pd_ref, w_ref, b_ref, o_ref):
    """Fused conv-as-im2col matmul + bias + ReLU + 2x2 max-pool.

    pa..pd: im2col patch matrices for the four 2x2 pooling positions
            (top-left / top-right / bottom-left / bottom-right), each (N, K) bf16,
            rows ordered (b, pooled_h, pooled_w).
    w: (K, OC) bf16, b: (1, OC) f32.  Output: pooled activation (N, OC) bf16.
    """
    w = w_ref[...]
    b = b_ref[...]

    def quadrant(p_ref):
        acc = jnp.dot(p_ref[...], w, preferred_element_type=jnp.float32)
        return jnp.maximum(acc + b, 0.0)          # bias + ReLU in f32

    acc = quadrant(pa_ref)
    acc = jnp.maximum(acc, quadrant(pb_ref))      # running max == 2x2 max-pool
    acc = jnp.maximum(acc, quadrant(pc_ref))
    acc = jnp.maximum(acc, quadrant(pd_ref))
    o_ref[...] = acc.astype(o_ref.dtype)


def conv_relu_pool(pa, pb, pc, pd, w, b):
    N, K = pa.shape
    OC = w.shape[1]
    return pl.pallas_call(
        _conv_relu_pool_kernel,
        out_shape=jax.ShapeDtypeStruct((N, OC), jnp.bfloat16),
        grid=(1,),
        in_specs=[
            pl.BlockSpec((N, K), lambda i: (0, 0)),
            pl.BlockSpec((N, K), lambda i: (0, 0)),
            pl.BlockSpec((N, K), lambda i: (0, 0)),
            pl.BlockSpec((N, K), lambda i: (0, 0)),
            pl.BlockSpec((K, OC), lambda i: (0, 0)),
            pl.BlockSpec((1, OC), lambda i: (0, 0)),
        ],
        out_specs=pl.BlockSpec((N, OC), lambda i: (0, 0)),
        cost_estimate=pl.CostEstimate(
            flops=int(4 * 2 * N * K * OC),
            transcendentals=0,
            bytes_accessed=int((4 * N * K + K * OC + N * OC) * 2 + OC * 4)),
    )(pa, pb, pc, pd, w, b)


def _mlp_kernel(x_ref, w3_ref, b3_ref, w4_ref, b4_ref, o_ref):
    """Fused Linear(750->128)+ReLU and Linear(128->10)+ReLU."""
    h = jnp.dot(x_ref[...], w3_ref[...], preferred_element_type=jnp.float32)
    h = jnp.maximum(h + b3_ref[...], 0.0)
    o = jnp.dot(h.astype(jnp.bfloat16), w4_ref[...],
                preferred_element_type=jnp.float32)
    o_ref[...] = jnp.maximum(o + b4_ref[...], 0.0)


def mlp_head(x, w3, b3, w4, b4):
    M, K = x.shape
    H = w3.shape[1]
    N = w4.shape[1]
    return pl.pallas_call(
        _mlp_kernel,
        out_shape=jax.ShapeDtypeStruct((M, N), jnp.float32),
        grid=(1,),
        in_specs=[
            pl.BlockSpec((M, K), lambda i: (0, 0)),
            pl.BlockSpec((K, H), lambda i: (0, 0)),
            pl.BlockSpec((1, H), lambda i: (0, 0)),
            pl.BlockSpec((H, N), lambda i: (0, 0)),
            pl.BlockSpec((1, N), lambda i: (0, 0)),
        ],
        out_specs=pl.BlockSpec((M, N), lambda i: (0, 0)),
        cost_estimate=pl.CostEstimate(
            flops=int(2 * M * K * H + 2 * M * H * N),
            transcendentals=0,
            bytes_accessed=int((M * K + K * H + H * N) * 2 + (H + N + M * N) * 4)),
    )(x, w3, b3, w4, b4)


# --------------------- im2col with pool-quadrant ordering -------------------

def _im2col_pool_quadrants(x_nhwc, ksize, k_pad=None):
    """Build the 4 pool-quadrant im2col matrices for a VALID, stride-1 conv.

    x_nhwc: (B, H, W, C).  Returns 4 matrices of shape (B*PH*PW, K[pad]) in
    bf16, where PH/PW are the pooled output dims; rows ordered (b, ph, pw);
    features ordered (kh, kw, c) to match the prepared conv weight matrices.
    """
    B, H, W, C = x_nhwc.shape
    OH, OW = H - ksize + 1, W - ksize + 1
    PH, PW = OH // 2, OW // 2
    cols = [x_nhwc[:, di:di + OH, dj:dj + OW, :]
            for di in range(ksize) for dj in range(ksize)]
    patches = jnp.concatenate(cols, axis=-1)          # (B, OH, OW, K)
    K = ksize * ksize * C
    if k_pad is not None and k_pad > K:
        patches = jnp.pad(patches, ((0, 0), (0, 0), (0, 0), (0, k_pad - K)))
        K = k_pad
    quads = []
    for u in range(2):
        for v in range(2):
            q = patches[:, u:u + 2 * PH:2, v:v + 2 * PW:2, :]
            quads.append(q.reshape(B * PH * PW, K).astype(jnp.bfloat16))
    return quads


# ------------------------------ parameters ---------------------------------

def init_params(key):
    ks = jax.random.split(key, 8)

    def uniform(k, shape, fan_in):
        bound = 1.0 / jnp.sqrt(jnp.float32(fan_in))
        return jax.random.uniform(k, shape, jnp.float32, -bound, bound)

    return {
        "w1": uniform(ks[0], (64, 3, 5, 5), 3 * 5 * 5),
        "b1": uniform(ks[1], (64,), 3 * 5 * 5),
        "w2": uniform(ks[2], (30, 64, 5, 5), 64 * 5 * 5),
        "b2": uniform(ks[3], (30,), 64 * 5 * 5),
        "w3": uniform(ks[4], (128, 750), 750),     # torch layout (out, in)
        "b3": uniform(ks[5], (128,), 750),
        "w4": uniform(ks[6], (10, 128), 128),
        "b4": uniform(ks[7], (10,), 128),
    }


def prepare_params(params):
    """One-time conversion of torch-layout params into kernel-ready matrices."""
    # Conv weights: (OC, IC, KH, KW) -> (KH*KW*IC, OC) bf16; conv1 K pad 75->128.
    w1m = jnp.transpose(params["w1"], (2, 3, 1, 0)).reshape(75, 64)
    w1m = jnp.pad(w1m, ((0, 128 - 75), (0, 0))).astype(jnp.bfloat16)
    w2m = jnp.transpose(params["w2"], (2, 3, 1, 0)).reshape(1600, 30)
    w2m = w2m.astype(jnp.bfloat16)

    # fc1: torch flattens in (c, h, w) order, our activation flattens in
    # (h, w, c) order -> permute w3's input-feature axis once here.
    w3p = params["w3"].reshape(128, 30, 5, 5)          # (o, c, h, w)
    w3p = jnp.transpose(w3p, (2, 3, 1, 0))             # (h, w, c, o)
    w3p = w3p.reshape(750, 128).astype(jnp.bfloat16)
    w4m = jnp.transpose(params["w4"], (1, 0)).astype(jnp.bfloat16)  # (128, 10)

    return {
        "w1m": w1m, "b1": params["b1"].reshape(1, 64).astype(jnp.float32),
        "w2m": w2m, "b2": params["b2"].reshape(1, 30).astype(jnp.float32),
        "w3p": w3p, "b3": params["b3"].reshape(1, 128).astype(jnp.float32),
        "w4m": w4m, "b4": params["b4"].reshape(1, 10).astype(jnp.float32),
    }


# ------------------------------- forward -----------------------------------

def forward(x_nchw, p):
    B = x_nchw.shape[0]
    x = jnp.transpose(x_nchw, (0, 2, 3, 1)).astype(jnp.bfloat16)   # NHWC (B,32,32,3)

    # layer1: Conv(3->64, k5) + ReLU + MaxPool2  (one fused kernel)
    q = _im2col_pool_quadrants(x, 5, k_pad=128)        # 4 x (B*14*14, 128) bf16
    h1 = conv_relu_pool(*q, p["w1m"], p["b1"])         # (B*14*14, 64) bf16
    h1 = h1.reshape(B, 14, 14, 64)

    # layer2: Conv(64->30, k5) + ReLU + MaxPool2  (one fused kernel)
    q = _im2col_pool_quadrants(h1, 5)                  # 4 x (B*5*5, 1600) bf16
    h2 = conv_relu_pool(*q, p["w2m"], p["b2"])         # (B*5*5, 30) bf16

    # flatten in (h, w, c) order; torch's (c, h, w) order is baked into w3p.
    h2 = h2.reshape(B, 750)

    # layer3 + layer4: both Linear(+ReLU) layers in one fused kernel
    return mlp_head(h2, p["w3p"], p["b3"], p["w4m"], p["b4"])      # (B, 10) f32


# --------------------------------- main -------------------------------------

if __name__ == "__main__":
    key = jax.random.PRNGKey(0)
    k_params, k_input = jax.random.split(key)

    params = prepare_params(init_params(k_params))
    # CIFAR-10 style input implied by the 30*5*5 flatten: (B=2, C=3, 32, 32)
    x = jax.random.normal(k_input, (2, 3, 32, 32), jnp.float32)

    fwd = jax.jit(forward)
    out = jax.block_until_ready(fwd(x, params))

    assert out.shape == (2, 10), out.shape
    assert out.dtype == jnp.float32
    print("KERNEL_OK")
</pallas_src>

<mosaic_0001>
module attributes {stable_mosaic.version = 11 : i64} {
  func.func @_conv_relu_pool_kernel(%arg0: i32, %arg1: memref<392x128xbf16, #tpu.memory_space<vmem>>, %arg2: memref<392x128xbf16, #tpu.memory_space<vmem>>, %arg3: memref<392x128xbf16, #tpu.memory_space<vmem>>, %arg4: memref<392x128xbf16, #tpu.memory_space<vmem>>, %arg5: memref<128x64xbf16, #tpu.memory_space<vmem>>, %arg6: memref<1x64xf32, #tpu.memory_space<vmem>>, %arg7: memref<392x64xbf16, #tpu.memory_space<vmem>>) attributes {dimension_semantics = [#tpu.dimension_semantics<arbitrary>], iteration_bounds = array<i64: 1>, scalar_prefetch = 0 : i64, scratch_operands = 0 : i64, tpu.core_type = #tpu.core_type<tc>, window_params = [{pipeline_mode = #tpu.pipeline_mode<synchronous>, transform_indices = @transform_0, window_bounds = array<i64: 392, 128>}, {pipeline_mode = #tpu.pipeline_mode<synchronous>, transform_indices = @transform_1, window_bounds = array<i64: 392, 128>}, {pipeline_mode = #tpu.pipeline_mode<synchronous>, transform_indices = @transform_2, window_bounds = array<i64: 392, 128>}, {pipeline_mode = #tpu.pipeline_mode<synchronous>, transform_indices = @transform_3, window_bounds = array<i64: 392, 128>}, {pipeline_mode = #tpu.pipeline_mode<synchronous>, transform_indices = @transform_4, window_bounds = array<i64: 128, 64>}, {pipeline_mode = #tpu.pipeline_mode<synchronous>, transform_indices = @transform_5, window_bounds = array<i64: 1, 64>}, {pipeline_mode = #tpu.pipeline_mode<synchronous>, transform_indices = @transform_6, window_bounds = array<i64: 392, 64>}]} {
    %c0 = arith.constant 0 : index
    %c0_0 = arith.constant 0 : index
    %0 = vector.load %arg5[%c0, %c0_0] : memref<128x64xbf16, #tpu.memory_space<vmem>>, vector<128x64xbf16>
    %c0_1 = arith.constant 0 : index
    %c0_2 = arith.constant 0 : index
    %1 = vector.load %arg6[%c0_1, %c0_2] : memref<1x64xf32, #tpu.memory_space<vmem>>, vector<1x64xf32>
    %c0_3 = arith.constant 0 : index
    %c0_4 = arith.constant 0 : index
    %2 = vector.load %arg1[%c0_3, %c0_4] : memref<392x128xbf16, #tpu.memory_space<vmem>>, vector<392x128xbf16>
    %cst = arith.constant dense<0.000000e+00> : vector<392x64xf32>
    %3 = tpu.matmul %2, %0, %cst {dimension_numbers = #tpu.dot_dimension_numbers<[1], [0], [0], [1], [0, 0, 1, 1], [], []>} : vector<392x128xbf16>, vector<128x64xbf16>, vector<392x64xf32> -> vector<392x64xf32>
    %4 = vector.broadcast %1 : vector<1x64xf32> to vector<392x64xf32>
    %5 = arith.addf %3, %4 : vector<392x64xf32>
    %cst_5 = arith.constant 0.000000e+00 : f32
    %6 = vector.broadcast %cst_5 : f32 to vector<392x64xf32>
    %7 = arith.maximumf %5, %6 : vector<392x64xf32>
    %c0_6 = arith.constant 0 : index
    %c0_7 = arith.constant 0 : index
    %8 = vector.load %arg2[%c0_6, %c0_7] : memref<392x128xbf16, #tpu.memory_space<vmem>>, vector<392x128xbf16>
    %cst_8 = arith.constant dense<0.000000e+00> : vector<392x64xf32>
    %9 = tpu.matmul %8, %0, %cst_8 {dimension_numbers = #tpu.dot_dimension_numbers<[1], [0], [0], [1], [0, 0, 1, 1], [], []>} : vector<392x128xbf16>, vector<128x64xbf16>, vector<392x64xf32> -> vector<392x64xf32>
    %10 = vector.broadcast %1 : vector<1x64xf32> to vector<392x64xf32>
    %11 = arith.addf %9, %10 : vector<392x64xf32>
    %cst_9 = arith.constant 0.000000e+00 : f32
    %12 = vector.broadcast %cst_9 : f32 to vector<392x64xf32>
    %13 = arith.maximumf %11, %12 : vector<392x64xf32>
    %14 = arith.maximumf %7, %13 : vector<392x64xf32>
    %c0_10 = arith.constant 0 : index
    %c0_11 = arith.constant 0 : index
    %15 = vector.load %arg3[%c0_10, %c0_11] : memref<392x128xbf16, #tpu.memory_space<vmem>>, vector<392x128xbf16>
    %cst_12 = arith.constant dense<0.000000e+00> : vector<392x64xf32>
    %16 = tpu.matmul %15, %0, %cst_12 {dimension_numbers = #tpu.dot_dimension_numbers<[1], [0], [0], [1], [0, 0, 1, 1], [], []>} : vector<392x128xbf16>, vector<128x64xbf16>, vector<392x64xf32> -> vector<392x64xf32>
    %17 = vector.broadcast %1 : vector<1x64xf32> to vector<392x64xf32>
    %18 = arith.addf %16, %17 : vector<392x64xf32>
    %cst_13 = arith.constant 0.000000e+00 : f32
    %19 = vector.broadcast %cst_13 : f32 to vector<392x64xf32>
    %20 = arith.maximumf %18, %19 : vector<392x64xf32>
    %21 = arith.maximumf %14, %20 : vector<392x64xf32>
    %c0_14 = arith.constant 0 : index
    %c0_15 = arith.constant 0 : index
    %22 = vector.load %arg4[%c0_14, %c0_15] : memref<392x128xbf16, #tpu.memory_space<vmem>>, vector<392x128xbf16>
    %cst_16 = arith.constant dense<0.000000e+00> : vector<392x64xf32>
    %23 = tpu.matmul %22, %0, %cst_16 {dimension_numbers = #tpu.dot_dimension_numbers<[1], [0], [0], [1], [0, 0, 1, 1], [], []>} : vector<392x128xbf16>, vector<128x64xbf16>, vector<392x64xf32> -> vector<392x64xf32>
    %24 = vector.broadcast %1 : vector<1x64xf32> to vector<392x64xf32>
    %25 = arith.addf %23, %24 : vector<392x64xf32>
    %cst_17 = arith.constant 0.000000e+00 : f32
    %26 = vector.broadcast %cst_17 : f32 to vector<392x64xf32>
    %27 = arith.maximumf %25, %26 : vector<392x64xf32>
    %28 = arith.maximumf %21, %27 : vector<392x64xf32>
    %29 = arith.truncf %28 : vector<392x64xf32> to vector<392x64xbf16>
    %c0_18 = arith.constant 0 : index
    %c0_19 = arith.constant 0 : index
    %30 = vector.load %arg7[%c0_18, %c0_19] : memref<392x64xbf16, #tpu.memory_space<vmem>>, vector<392x64xbf16>
    tpu.vector_store %arg7[%c0_18, %c0_19], %29 {strides = array<i32>} : memref<392x64xbf16, #tpu.memory_space<vmem>>, vector<392x64xbf16>,
    return
  }
  func.func @transform_0(%arg0: i32) -> (i32, i32) {
    %c0_i32 = arith.constant 0 : i32
    %c0_i32_0 = arith.constant 0 : i32
    %c0_i32_1 = arith.constant 0 : i32
    return %c0_i32, %c0_i32_0 : i32, i32
  }
  func.func @transform_1(%arg0: i32) -> (i32, i32) {
    %c0_i32 = arith.constant 0 : i32
    %c0_i32_0 = arith.constant 0 : i32
    %c0_i32_1 = arith.constant 0 : i32
    return %c0_i32, %c0_i32_0 : i32, i32
  }
  func.func @transform_2(%arg0: i32) -> (i32, i32) {
    %c0_i32 = arith.constant 0 : i32
    %c0_i32_0 = arith.constant 0 : i32
    %c0_i32_1 = arith.constant 0 : i32
    return %c0_i32, %c0_i32_0 : i32, i32
  }
  func.func @transform_3(%arg0: i32) -> (i32, i32) {
    %c0_i32 = arith.constant 0 : i32
    %c0_i32_0 = arith.constant 0 : i32
    %c0_i32_1 = arith.constant 0 : i32
    return %c0_i32, %c0_i32_0 : i32, i32
  }
  func.func @transform_4(%arg0: i32) -> (i32, i32) {
    %c0_i32 = arith.constant 0 : i32
    %c0_i32_0 = arith.constant 0 : i32
    %c0_i32_1 = arith.constant 0 : i32
    return %c0_i32, %c0_i32_0 : i32, i32
  }
  func.func @transform_5(%arg0: i32) -> (i32, i32) {
    %c0_i32 = arith.constant 0 : i32
    %c0_i32_0 = arith.constant 0 : i32
    %c0_i32_1 = arith.constant 0 : i32
    return %c0_i32, %c0_i32_0 : i32, i32
  }
  func.func @transform_6(%arg0: i32) -> (i32, i32) {
    %c0_i32 = arith.constant 0 : i32
    %c0_i32_0 = arith.constant 0 : i32
    %c0_i32_1 = arith.constant 0 : i32
    return %c0_i32, %c0_i32_0 : i32, i32
  }
}

module attributes {stable_mosaic.version = 11 : i64} {
  func.func @_conv_relu_pool_kernel(%arg0: i32, %arg1: memref<50x1600xbf16, #tpu.memory_space<vmem>>, %arg2: memref<50x1600xbf16, #tpu.memory_space<vmem>>, %arg3: memref<50x1600xbf16, #tpu.memory_space<vmem>>, %arg4: memref<50x1600xbf16, #tpu.memory_space<vmem>>, %arg5: memref<1600x30xbf16, #tpu.memory_space<vmem>>, %arg6: memref<1x30xf32, #tpu.memory_space<vmem>>, %arg7: memref<50x30xbf16, #tpu.memory_space<vmem>>) attributes {dimension_semantics = [#tpu.dimension_semantics<arbitrary>], iteration_bounds = array<i64: 1>, scalar_prefetch = 0 : i64, scratch_operands = 0 : i64, tpu.core_type = #tpu.core_type<tc>, window_params = [{pipeline_mode = #tpu.pipeline_mode<synchronous>, transform_indices = @transform_0, window_bounds = array<i64: 50, 1600>}, {pipeline_mode = #tpu.pipeline_mode<synchronous>, transform_indices = @transform_1, window_bounds = array<i64: 50, 1600>}, {pipeline_mode = #tpu.pipeline_mode<synchronous>, transform_indices = @transform_2, window_bounds = array<i64: 50, 1600>}, {pipeline_mode = #tpu.pipeline_mode<synchronous>, transform_indices = @transform_3, window_bounds = array<i64: 50, 1600>}, {pipeline_mode = #tpu.pipeline_mode<synchronous>, transform_indices = @transform_4, window_bounds = array<i64: 1600, 30>}, {pipeline_mode = #tpu.pipeline_mode<synchronous>, transform_indices = @transform_5, window_bounds = array<i64: 1, 30>}, {pipeline_mode = #tpu.pipeline_mode<synchronous>, transform_indices = @transform_6, window_bounds = array<i64: 50, 30>}]} {
    %c0 = arith.constant 0 : index
    %c0_0 = arith.constant 0 : index
    %0 = vector.load %arg5[%c0, %c0_0] : memref<1600x30xbf16, #tpu.memory_space<vmem>>, vector<1600x30xbf16>
    %c0_1 = arith.constant 0 : index
    %c0_2 = arith.constant 0 : index
    %1 = vector.load %arg6[%c0_1, %c0_2] : memref<1x30xf32, #tpu.memory_space<vmem>>, vector<1x30xf32>
    %c0_3 = arith.constant 0 : index
    %c0_4 = arith.constant 0 : index
    %2 = vector.load %arg1[%c0_3, %c0_4] : memref<50x1600xbf16, #tpu.memory_space<vmem>>, vector<50x1600xbf16>
    %cst = arith.constant dense<0.000000e+00> : vector<50x30xf32>
    %3 = tpu.matmul %2, %0, %cst {dimension_numbers = #tpu.dot_dimension_numbers<[1], [0], [0], [1], [0, 0, 1, 1], [], []>} : vector<50x1600xbf16>, vector<1600x30xbf16>, vector<50x30xf32> -> vector<50x30xf32>
    %4 = vector.broadcast %1 : vector<1x30xf32> to vector<50x30xf32>
    %5 = arith.addf %3, %4 : vector<50x30xf32>
    %cst_5 = arith.constant 0.000000e+00 : f32
    %6 = vector.broadcast %cst_5 : f32 to vector<50x30xf32>
    %7 = arith.maximumf %5, %6 : vector<50x30xf32>
    %c0_6 = arith.constant 0 : index
    %c0_7 = arith.constant 0 : index
    %8 = vector.load %arg2[%c0_6, %c0_7] : memref<50x1600xbf16, #tpu.memory_space<vmem>>, vector<50x1600xbf16>
    %cst_8 = arith.constant dense<0.000000e+00> : vector<50x30xf32>
    %9 = tpu.matmul %8, %0, %cst_8 {dimension_numbers = #tpu.dot_dimension_numbers<[1], [0], [0], [1], [0, 0, 1, 1], [], []>} : vector<50x1600xbf16>, vector<1600x30xbf16>, vector<50x30xf32> -> vector<50x30xf32>
    %10 = vector.broadcast %1 : vector<1x30xf32> to vector<50x30xf32>
    %11 = arith.addf %9, %10 : vector<50x30xf32>
    %cst_9 = arith.constant 0.000000e+00 : f32
    %12 = vector.broadcast %cst_9 : f32 to vector<50x30xf32>
    %13 = arith.maximumf %11, %12 : vector<50x30xf32>
    %14 = arith.maximumf %7, %13 : vector<50x30xf32>
    %c0_10 = arith.constant 0 : index
    %c0_11 = arith.constant 0 : index
    %15 = vector.load %arg3[%c0_10, %c0_11] : memref<50x1600xbf16, #tpu.memory_space<vmem>>, vector<50x1600xbf16>
    %cst_12 = arith.constant dense<0.000000e+00> : vector<50x30xf32>
    %16 = tpu.matmul %15, %0, %cst_12 {dimension_numbers = #tpu.dot_dimension_numbers<[1], [0], [0], [1], [0, 0, 1, 1], [], []>} : vector<50x1600xbf16>, vector<1600x30xbf16>, vector<50x30xf32> -> vector<50x30xf32>
    %17 = vector.broadcast %1 : vector<1x30xf32> to vector<50x30xf32>
    %18 = arith.addf %16, %17 : vector<50x30xf32>
    %cst_13 = arith.constant 0.000000e+00 : f32
    %19 = vector.broadcast %cst_13 : f32 to vector<50x30xf32>
    %20 = arith.maximumf %18, %19 : vector<50x30xf32>
    %21 = arith.maximumf %14, %20 : vector<50x30xf32>
    %c0_14 = arith.constant 0 : index
    %c0_15 = arith.constant 0 : index
    %22 = vector.load %arg4[%c0_14, %c0_15] : memref<50x1600xbf16, #tpu.memory_space<vmem>>, vector<50x1600xbf16>
    %cst_16 = arith.constant dense<0.000000e+00> : vector<50x30xf32>
    %23 = tpu.matmul %22, %0, %cst_16 {dimension_numbers = #tpu.dot_dimension_numbers<[1], [0], [0], [1], [0, 0, 1, 1], [], []>} : vector<50x1600xbf16>, vector<1600x30xbf16>, vector<50x30xf32> -> vector<50x30xf32>
    %24 = vector.broadcast %1 : vector<1x30xf32> to vector<50x30xf32>
    %25 = arith.addf %23, %24 : vector<50x30xf32>
    %cst_17 = arith.constant 0.000000e+00 : f32
    %26 = vector.broadcast %cst_17 : f32 to vector<50x30xf32>
    %27 = arith.maximumf %25, %26 : vector<50x30xf32>
    %28 = arith.maximumf %21, %27 : vector<50x30xf32>
    %29 = arith.truncf %28 : vector<50x30xf32> to vector<50x30xbf16>
    %c0_18 = arith.constant 0 : index
    %c0_19 = arith.constant 0 : index
    %30 = vector.load %arg7[%c0_18, %c0_19] : memref<50x30xbf16, #tpu.memory_space<vmem>>, vector<50x30xbf16>
    tpu.vector_store %arg7[%c0_18, %c0_19], %29 {strides = array<i32>} : memref<50x30xbf16, #tpu.memory_space<vmem>>, vector<50x30xbf16>,
    return
  }
  func.func @transform_0(%arg0: i32) -> (i32, i32) {
    %c0_i32 = arith.constant 0 : i32
    %c0_i32_0 = arith.constant 0 : i32
    %c0_i32_1 = arith.constant 0 : i32
    return %c0_i32, %c0_i32_0 : i32, i32
  }
  func.func @transform_1(%arg0: i32) -> (i32, i32) {
    %c0_i32 = arith.constant 0 : i32
    %c0_i32_0 = arith.constant 0 : i32
    %c0_i32_1 = arith.constant 0 : i32
    return %c0_i32, %c0_i32_0 : i32, i32
  }
  func.func @transform_2(%arg0: i32) -> (i32, i32) {
    %c0_i32 = arith.constant 0 : i32
    %c0_i32_0 = arith.constant 0 : i32
    %c0_i32_1 = arith.constant 0 : i32
    return %c0_i32, %c0_i32_0 : i32, i32
  }
  func.func @transform_3(%arg0: i32) -> (i32, i32) {
    %c0_i32 = arith.constant 0 : i32
    %c0_i32_0 = arith.constant 0 : i32
    %c0_i32_1 = arith.constant 0 : i32
    return %c0_i32, %c0_i32_0 : i32, i32
  }
  func.func @transform_4(%arg0: i32) -> (i32, i32) {
    %c0_i32 = arith.constant 0 : i32
    %c0_i32_0 = arith.constant 0 : i32
    %c0_i32_1 = arith.constant 0 : i32
    return %c0_i32, %c0_i32_0 : i32, i32
  }
  func.func @transform_5(%arg0: i32) -> (i32, i32) {
    %c0_i32 = arith.constant 0 : i32
    %c0_i32_0 = arith.constant 0 : i32
    %c0_i32_1 = arith.constant 0 : i32
    return %c0_i32, %c0_i32_0 : i32, i32
  }
  func.func @transform_6(%arg0: i32) -> (i32, i32) {
    %c0_i32 = arith.constant 0 : i32
    %c0_i32_0 = arith.constant 0 : i32
    %c0_i32_1 = arith.constant 0 : i32
    return %c0_i32, %c0_i32_0 : i32, i32
  }
}

module attributes {stable_mosaic.version = 11 : i64} {
  func.func @_mlp_kernel(%arg0: i32, %arg1: memref<2x750xbf16, #tpu.memory_space<vmem>>, %arg2: memref<750x128xbf16, #tpu.memory_space<vmem>>, %arg3: memref<1x128xf32, #tpu.memory_space<vmem>>, %arg4: memref<128x10xbf16, #tpu.memory_space<vmem>>, %arg5: memref<1x10xf32, #tpu.memory_space<vmem>>, %arg6: memref<2x10xf32, #tpu.memory_space<vmem>>) attributes {dimension_semantics = [#tpu.dimension_semantics<arbitrary>], iteration_bounds = array<i64: 1>, scalar_prefetch = 0 : i64, scratch_operands = 0 : i64, tpu.core_type = #tpu.core_type<tc>, window_params = [{pipeline_mode = #tpu.pipeline_mode<synchronous>, transform_indices = @transform_0, window_bounds = array<i64: 2, 750>}, {pipeline_mode = #tpu.pipeline_mode<synchronous>, transform_indices = @transform_1, window_bounds = array<i64: 750, 128>}, {pipeline_mode = #tpu.pipeline_mode<synchronous>, transform_indices = @transform_2, window_bounds = array<i64: 1, 128>}, {pipeline_mode = #tpu.pipeline_mode<synchronous>, transform_indices = @transform_3, window_bounds = array<i64: 128, 10>}, {pipeline_mode = #tpu.pipeline_mode<synchronous>, transform_indices = @transform_4, window_bounds = array<i64: 1, 10>}, {pipeline_mode = #tpu.pipeline_mode<synchronous>, transform_indices = @transform_5, window_bounds = array<i64: 2, 10>}]} {
    %c0 = arith.constant 0 : index
    %c0_0 = arith.constant 0 : index
    %0 = vector.load %arg1[%c0, %c0_0] : memref<2x750xbf16, #tpu.memory_space<vmem>>, vector<2x750xbf16>
    %c0_1 = arith.constant 0 : index
    %c0_2 = arith.constant 0 : index
    %1 = vector.load %arg2[%c0_1, %c0_2] : memref<750x128xbf16, #tpu.memory_space<vmem>>, vector<750x128xbf16>
    %cst = arith.constant dense<0.000000e+00> : vector<2x128xf32>
    %2 = tpu.matmul %0, %1, %cst {dimension_numbers = #tpu.dot_dimension_numbers<[1], [0], [0], [1], [0, 0, 1, 1], [], []>} : vector<2x750xbf16>, vector<750x128xbf16>, vector<2x128xf32> -> vector<2x128xf32>
    %c0_3 = arith.constant 0 : index
    %c0_4 = arith.constant 0 : index
    %3 = vector.load %arg3[%c0_3, %c0_4] : memref<1x128xf32, #tpu.memory_space<vmem>>, vector<1x128xf32>
    %4 = vector.broadcast %3 : vector<1x128xf32> to vector<2x128xf32>
    %5 = arith.addf %2, %4 : vector<2x128xf32>
    %cst_5 = arith.constant 0.000000e+00 : f32
    %6 = vector.broadcast %cst_5 : f32 to vector<2x128xf32>
    %7 = arith.maximumf %5, %6 : vector<2x128xf32>
    %8 = arith.truncf %7 : vector<2x128xf32> to vector<2x128xbf16>
    %c0_6 = arith.constant 0 : index
    %c0_7 = arith.constant 0 : index
    %9 = vector.load %arg4[%c0_6, %c0_7] : memref<128x10xbf16, #tpu.memory_space<vmem>>, vector<128x10xbf16>
    %cst_8 = arith.constant dense<0.000000e+00> : vector<2x10xf32>
    %10 = tpu.matmul %8, %9, %cst_8 {dimension_numbers = #tpu.dot_dimension_numbers<[1], [0], [0], [1], [0, 0, 1, 1], [], []>} : vector<2x128xbf16>, vector<128x10xbf16>, vector<2x10xf32> -> vector<2x10xf32>
    %c0_9 = arith.constant 0 : index
    %c0_10 = arith.constant 0 : index
    %11 = vector.load %arg5[%c0_9, %c0_10] : memref<1x10xf32, #tpu.memory_space<vmem>>, vector<1x10xf32>
    %12 = vector.broadcast %11 : vector<1x10xf32> to vector<2x10xf32>
    %13 = arith.addf %10, %12 : vector<2x10xf32>
    %cst_11 = arith.constant 0.000000e+00 : f32
    %14 = vector.broadcast %cst_11 : f32 to vector<2x10xf32>
    %15 = arith.maximumf %13, %14 : vector<2x10xf32>
    %c0_12 = arith.constant 0 : index
    %c0_13 = arith.constant 0 : index
    %16 = vector.load %arg6[%c0_12, %c0_13] : memref<2x10xf32, #tpu.memory_space<vmem>>, vector<2x10xf32>
    tpu.vector_store %arg6[%c0_12, %c0_13], %15 {strides = array<i32>} : memref<2x10xf32, #tpu.memory_space<vmem>>, vector<2x10xf32>,
    return
  }
  func.func @transform_0(%arg0: i32) -> (i32, i32) {
    %c0_i32 = arith.constant 0 : i32
    %c0_i32_0 = arith.constant 0 : i32
    %c0_i32_1 = arith.constant 0 : i32
    return %c0_i32, %c0_i32_0 : i32, i32
  }
  func.func @transform_1(%arg0: i32) -> (i32, i32) {
    %c0_i32 = arith.constant 0 : i32
    %c0_i32_0 = arith.constant 0 : i32
    %c0_i32_1 = arith.constant 0 : i32
    return %c0_i32, %c0_i32_0 : i32, i32
  }
  func.func @transform_2(%arg0: i32) -> (i32, i32) {
    %c0_i32 = arith.constant 0 : i32
    %c0_i32_0 = arith.constant 0 : i32
    %c0_i32_1 = arith.constant 0 : i32
    return %c0_i32, %c0_i32_0 : i32, i32
  }
  func.func @transform_3(%arg0: i32) -> (i32, i32) {
    %c0_i32 = arith.constant 0 : i32
    %c0_i32_0 = arith.constant 0 : i32
    %c0_i32_1 = arith.constant 0 : i32
    return %c0_i32, %c0_i32_0 : i32, i32
  }
  func.func @transform_4(%arg0: i32) -> (i32, i32) {
    %c0_i32 = arith.constant 0 : i32
    %c0_i32_0 = arith.constant 0 : i32
    %c0_i32_1 = arith.constant 0 : i32
    return %c0_i32, %c0_i32_0 : i32, i32
  }
  func.func @transform_5(%arg0: i32) -> (i32, i32) {
    %c0_i32 = arith.constant 0 : i32
    %c0_i32_0 = arith.constant 0 : i32
    %c0_i32_1 = arith.constant 0 : i32
    return %c0_i32, %c0_i32_0 : i32, i32
  }
}

</mosaic_0001>

<llo_original>
// kernel: forward.3
$region0: #{forward.3}
  #allocation0 [shape = 'u32[]', space=smem, size = 0x4, offset = 0x4, fixed_abs, tag = 'smem constant byte address 0x4 - core index']
  #allocation1 [shape = 'u32[72,128]{1,0:T(1,128)}', space=vmem, size = 0x9000, scoped, tag = 'internal scratch']
  %s0 = inlined_call_operand.vmem [shape: bf16[392,128], index: 0, kind: input, shape index: {}]
  %s1 = inlined_call_operand.vmem [shape: bf16[392,128], index: 1, kind: input, shape index: {}]
  %s2 = inlined_call_operand.vmem [shape: bf16[392,128], index: 2, kind: input, shape index: {}]
  %s3 = inlined_call_operand.vmem [shape: bf16[392,128], index: 3, kind: input, shape index: {}]
  %s4 = inlined_call_operand.vmem [shape: bf16[128,64], index: 4, kind: input, shape index: {}]
  %s5 = inlined_call_operand.vmem [shape: f32[1,64], index: 5, kind: input, shape index: {}]
  %s6 = inlined_call_operand.vmem [shape: bf16[392,64], index: 6, kind: output, shape index: {}]
  %s7 = sld [smem:[#allocation0]]
  $region34: #{forward.3} parent=0
    _
  %s9 = ssub.s32 1, %s7
  %s10 = scalar_select 0, %s9, %s7
  // Predicated region
  $region2: #{forward.3} parent=0 // pred_check
    _
  $region3: #{forward.3} parent=0 // pred_check_branch
    %12 = sbr.rel (0) target = $region5
  $region4: #{forward.3} parent=0 // pred_region
    _
  $region5: #{forward.3} parent=0 // pred_fallthru
    _
  // Predicated region
  $region6: #{forward.3} parent=0 // pred_check
    _
  $region7: #{forward.3} parent=0 // pred_check_branch
    %14 = sbr.rel (0) target = $region9
  $region8: #{forward.3} parent=0 // pred_region
    _
  $region9: #{forward.3} parent=0 // pred_fallthru
    _
  // Predicated region
  $region10: #{forward.3} parent=0 // pred_check
    _
  $region11: #{forward.3} parent=0 // pred_check_branch
    %16 = sbr.rel (0) target = $region13
  $region12: #{forward.3} parent=0 // pred_region
    _
  $region13: #{forward.3} parent=0 // pred_fallthru
    _
  // Predicated region
  $region14: #{forward.3} parent=0 // pred_check
    _
  $region15: #{forward.3} parent=0 // pred_check_branch
    %18 = sbr.rel (0) target = $region17
  $region16: #{forward.3} parent=0 // pred_region
    _
  $region17: #{forward.3} parent=0 // pred_fallthru
    _
  // Predicated region
  $region18: #{forward.3} parent=0 // pred_check
    _
  $region19: #{forward.3} parent=0 // pred_check_branch
    %20 = sbr.rel (0) target = $region21
  $region20: #{forward.3} parent=0 // pred_region
    _
  $region21: #{forward.3} parent=0 // pred_fallthru
    _
  // Predicated region
  $region22: #{forward.3} parent=0 // pred_check
    _
  $region23: #{forward.3} parent=0 // pred_check_branch
    %22 = sbr.rel (0) target = $region25
  $region24: #{forward.3} parent=0 // pred_region
    _
  $region25: #{forward.3} parent=0 // pred_fallthru
    _
  %v23 = vld [vmem:[%s4] sm:$0xf]
  %v24 = vld [vmem:[%s4 + $0x4] sm:$0xf]
  %v25 = vld [vmem:[%s4 + $0x8] sm:$0xf]
  %v26 = vld [vmem:[%s4 + $0xc] sm:$0xf]
  %v27 = vld [vmem:[%s4 + $0x10] sm:$0xf]
  %v28 = vld [vmem:[%s4 + $0x14] sm:$0xf]
  %v29 = vld [vmem:[%s4 + $0x18] sm:$0xf]
  %v30 = vld [vmem:[%s4 + $0x1c] sm:$0xf]
  %v31 = vld [vmem:[%s4 + $0x20] sm:$0xf]
  %v32 = vld [vmem:[%s4 + $0x24] sm:$0xf]
  %v33 = vld [vmem:[%s4 + $0x28] sm:$0xf]
  %v34 = vld [vmem:[%s4 + $0x2c] sm:$0xf]
  %v35 = vld [vmem:[%s4 + $0x30] sm:$0xf]
  %v36 = vld [vmem:[%s4 + $0x34] sm:$0xf]
  %v37 = vld [vmem:[%s4 + $0x38] sm:$0xf]
  %v38 = vld [vmem:[%s4 + $0x3c] sm:$0xf]
  %v39 = vld [vmem:[%s5] sm:$0x1]
  %v40 = vld [vmem:[%s0] sm:$0xf]
  %v41 = vld [vmem:[%s0 + $0x4] sm:$0xf]
  %v42 = vld [vmem:[%s0 + $0x8] sm:$0xf]
  %v43 = vld [vmem:[%s0 + $0xc] sm:$0xf]
  %v44 = vld [vmem:[%s0 + $0x10] sm:$0xf]
  %v45 = vld [vmem:[%s0 + $0x14] sm:$0xf]
  %v46 = vld [vmem:[%s0 + $0x18] sm:$0xf]
  %v47 = vld [vmem:[%s0 + $0x1c] sm:$0xf]
  %v48 = vld [vmem:[%s0 + $0x20] sm:$0xf]
  %v49 = vld [vmem:[%s0 + $0x24] sm:$0xf]
  %v50 = vld [vmem:[%s0 + $0x28] sm:$0xf]
  %v51 = vld [vmem:[%s0 + $0x2c] sm:$0xf]
  %v52 = vld [vmem:[%s0 + $0x30] sm:$0xf]
  %v53 = vld [vmem:[%s0 + $0x34] sm:$0xf]
  %v54 = vld [vmem:[%s0 + $0x38] sm:$0xf]
  %v55 = vld [vmem:[%s0 + $0x3c] sm:$0xf]
  %v56 = vld [vmem:[%s0 + $0x40] sm:$0xf]
  %v57 = vld [vmem:[%s0 + $0x44] sm:$0xf]
  %v58 = vld [vmem:[%s0 + $0x48] sm:$0xf]
  %v59 = vld [vmem:[%s0 + $0x4c] sm:$0xf]
  %v60 = vld [vmem:[%s0 + $0x50] sm:$0xf]
  %v61 = vld [vmem:[%s0 + $0x54] sm:$0xf]
  %v62 = vld [vmem:[%s0 + $0x58] sm:$0xf]
  %v63 = vld [vmem:[%s0 + $0x5c] sm:$0xf]
  %v64 = vld [vmem:[%s0 + $0x60] sm:$0xf]
  %v65 = vld [vmem:[%s0 + $0x64] sm:$0xf]
  %v66 = vld [vmem:[%s0 + $0x68] sm:$0xf]
  %v67 = vld [vmem:[%s0 + $0x6c] sm:$0xf]
  %v68 = vld [vmem:[%s0 + $0x70] sm:$0xf]
  %v69 = vld [vmem:[%s0 + $0x74] sm:$0xf]
  %v70 = vld [vmem:[%s0 + $0x78] sm:$0xf]
  %v71 = vld [vmem:[%s0 + $0x7c] sm:$0xf]
  %v72 = vld [vmem:[%s0 + $0x80] sm:$0xf]
  %v73 = vld [vmem:[%s0 + $0x84] sm:$0xf]
  %v74 = vld [vmem:[%s0 + $0x88] sm:$0xf]
  %v75 = vld [vmem:[%s0 + $0x8c] sm:$0xf]
  %v76 = vld [vmem:[%s0 + $0x90] sm:$0xf]
  %v77 = vld [vmem:[%s0 + $0x94] sm:$0xf]
  %v78 = vld [vmem:[%s0 + $0x98] sm:$0xf]
  %v79 = vld [vmem:[%s0 + $0x9c] sm:$0xf]
  %v80 = vld [vmem:[%s0 + $0xa0] sm:$0xf]
  %v81 = vld [vmem:[%s0 + $0xa4] sm:$0xf]
  %v82 = vld [vmem:[%s0 + $0xa8] sm:$0xf]
  %v83 = vld [vmem:[%s0 + $0xac] sm:$0xf]
  %v84 = vld [vmem:[%s0 + $0xb0] sm:$0xf]
  %v85 = vld [vmem:[%s0 + $0xb4] sm:$0xf]
  %v86 = vld [vmem:[%s0 + $0xb8] sm:$0xf]
  %v87 = vld [vmem:[%s0 + $0xbc] sm:$0xf]
  %v88 = vld [vmem:[%s0 + $0xc0] sm:$0xf]
  %v90 = vperm.slane %v39, 0
  %v141 = vunpack.c.l.b16 %v40
  %v142 = vunpack.c.l.b16 %v41
  %v143 = vunpack.c.l.b16 %v42
  %v144 = vunpack.c.l.b16 %v43
  %v145 = vunpack.c.l.b16 %v44
  %v146 = vunpack.c.l.b16 %v45
  %v147 = vunpack.c.l.b16 %v46
  %v148 = vunpack.c.l.b16 %v47
  %v149 = vunpack.c.l.b16 %v48
  %v150 = vunpack.c.l.b16 %v49
  %v151 = vunpack.c.l.b16 %v50
  %v152 = vunpack.c.l.b16 %v51
  %v153 = vunpack.c.l.b16 %v52
  %v154 = vunpack.c.l.b16 %v53
  %v155 = vunpack.c.l.b16 %v54
  %v156 = vunpack.c.l.b16 %v55
  %v157 = vunpack.c.l.b16 %v56
  %v158 = vunpack.c.l.b16 %v57
  %v159 = vunpack.c.l.b16 %v58
  %v160 = vunpack.c.l.b16 %v59
  %v161 = vunpack.c.l.b16 %v60
  %v162 = vunpack.c.l.b16 %v61
  %v163 = vunpack.c.l.b16 %v62
  %v164 = vunpack.c.l.b16 %v63
  %v165 = vunpack.c.l.b16 %v64
  %v166 = vunpack.c.l.b16 %v65
  %v167 = vunpack.c.l.b16 %v66
  %v168 = vunpack.c.l.b16 %v67
  %v169 = vunpack.c.l.b16 %v68
  %v170 = vunpack.c.l.b16 %v69
  %v171 = vunpack.c.l.b16 %v70
  %v172 = vunpack.c.l.b16 %v71
  %v173 = vunpack.c.l.b16 %v72
  %v174 = vunpack.c.l.b16 %v73
  %v175 = vunpack.c.l.b16 %v74
  %v176 = vunpack.c.l.b16 %v75
  %v177 = vunpack.c.l.b16 %v76
  %v178 = vunpack.c.l.b16 %v77
  %v179 = vunpack.c.l.b16 %v78
  %v180 = vunpack.c.l.b16 %v79
  %v181 = vunpack.c.l.b16 %v80
  %v182 = vunpack.c.l.b16 %v81
  %v183 = vunpack.c.l.b16 %v82
  %v184 = vunpack.c.l.b16 %v83
  %v185 = vunpack.c.l.b16 %v84
  %v186 = vunpack.c.l.b16 %v85
  %v187 = vunpack.c.l.b16 %v86
  %v188 = vunpack.c.l.b16 %v87
  %v189 = vunpack.c.l.b16 %v88
  %v190 = vpack.c.b16 %v142, %v141
  %v191 = vpack.c.b16 %v144, %v143
  %v192 = vpack.c.b16 %v146, %v145
  %v193 = vpack.c.b16 %v148, %v147
  %v194 = vpack.c.b16 %v150, %v149
  %v195 = vpack.c.b16 %v152, %v151
  %v196 = vpack.c.b16 %v154, %v153
  %v197 = vpack.c.b16 %v156, %v155
  %v198 = vpack.c.b16 %v158, %v157
  %v199 = vpack.c.b16 %v160, %v159
  %v200 = vpack.c.b16 %v162, %v161
  %v201 = vpack.c.b16 %v164, %v163
  %v202 = vpack.c.b16 %v166, %v165
  %v203 = vpack.c.b16 %v168, %v167
  %v204 = vpack.c.b16 %v170, %v169
  %v205 = vpack.c.b16 %v172, %v171
  %v206 = vpack.c.b16 %v174, %v173
  %v207 = vpack.c.b16 %v176, %v175
  %v208 = vpack.c.b16 %v178, %v177
  %v209 = vpack.c.b16 %v180, %v179
  %v210 = vpack.c.b16 %v182, %v181
  %v211 = vpack.c.b16 %v184, %v183
  %v212 = vpack.c.b16 %v186, %v185
  %v213 = vpack.c.b16 %v188, %v187
  %v214 = vpack.c.b16 %v189, %v189
  %v256 = vunpack.c.l.b16 %v23
  %v257 = vunpack.c.l.b16 %v24
  %v258 = vunpack.c.l.b16 %v25
  %v259 = vunpack.c.l.b16 %v26
  %v260 = vunpack.c.l.b16 %v27
  %v261 = vunpack.c.l.b16 %v28
  %v262 = vunpack.c.l.b16 %v29
  %v263 = vunpack.c.l.b16 %v30
  %v264 = vunpack.c.l.b16 %v31
  %v265 = vunpack.c.l.b16 %v32
  %v266 = vunpack.c.l.b16 %v33
  %v267 = vunpack.c.l.b16 %v34
  %v268 = vunpack.c.l.b16 %v35
  %v269 = vunpack.c.l.b16 %v36
  %v270 = vunpack.c.l.b16 %v37
  %v271 = vunpack.c.l.b16 %v38
  %v272 = vpack.c.b16 %v257, %v256
  %v273 = vpack.c.b16 %v259, %v258
  %v274 = vpack.c.b16 %v261, %v260
  %v275 = vpack.c.b16 %v263, %v262
  %v276 = vpack.c.b16 %v265, %v264
  %v277 = vpack.c.b16 %v267, %v266
  %v278 = vpack.c.b16 %v269, %v268
  %v279 = vpack.c.b16 %v271, %v270
  %288 = vmatpush.bf16.msra.mxu0 %v279
  %289 = vmatpush.bf16.msra.mxu0 %v278
  %290 = vmatpush.bf16.msra.mxu0 %v277
  %291 = vmatpush.bf16.msra.mxu0 %v276
  %292 = vmatpush.bf16.msra.mxu0 %v275
  %293 = vmatpush.bf16.msra.mxu0 %v274
  %294 = vmatpush.bf16.msra.mxu0 %v273
  %295 = vmatpush.bf16.msra.mxu0 %v272
  %296 = vmatmul.bf16.gmra.mxu0 %v190
  %v297 = vpop.f32.mrf.mxu0
  %v298 = vadd.f32 %v90, %v297
  %v299 = vpop.f32.mrf.mxu0
  %v300 = vadd.f32 %v90, %v299
  %301 = vmatmul.bf16.gmra.mxu0 %v191
  %v302 = vpop.f32.mrf.mxu0
  %v303 = vadd.f32 %v90, %v302
  %v304 = vpop.f32.mrf.mxu0
  %v305 = vadd.f32 %v90, %v304
  %306 = vmatmul.bf16.gmra.mxu0 %v192
  %v307 = vpop.f32.mrf.mxu0
  %v308 = vadd.f32 %v90, %v307
  %v309 = vpop.f32.mrf.mxu0
  %v310 = vadd.f32 %v90, %v309
  %311 = vmatmul.bf16.gmra.mxu0 %v193
  %v312 = vpop.f32.mrf.mxu0
  %v313 = vadd.f32 %v90, %v312
  %v314 = vpop.f32.mrf.mxu0
  %v315 = vadd.f32 %v90, %v314
  %316 = vmatmul.bf16.gmra.mxu0 %v194
  %v317 = vpop.f32.mrf.mxu0
  %v318 = vadd.f32 %v90, %v317
  %v319 = vpop.f32.mrf.mxu0
  %v320 = vadd.f32 %v90, %v319
  %321 = vmatmul.bf16.gmra.mxu0 %v195
  %v322 = vpop.f32.mrf.mxu0
  %v323 = vadd.f32 %v90, %v322
  %v324 = vpop.f32.mrf.mxu0
  %v325 = vadd.f32 %v90, %v324
  %326 = vmatmul.bf16.gmra.mxu0 %v196
  %v327 = vpop.f32.mrf.mxu0
  %v328 = vadd.f32 %v90, %v327
  %v329 = vpop.f32.mrf.mxu0
  %v330 = vadd.f32 %v90, %v329
  %331 = vmatmul.bf16.gmra.mxu0 %v197
  %v332 = vpop.f32.mrf.mxu0
  %v333 = vadd.f32 %v90, %v332
  %v334 = vpop.f32.mrf.mxu0
  %v335 = vadd.f32 %v90, %v334
  %336 = vmatmul.bf16.gmra.mxu0 %v198
  %v337 = vpop.f32.mrf.mxu0
  %v338 = vadd.f32 %v90, %v337
  %v339 = vpop.f32.mrf.mxu0
  %v340 = vadd.f32 %v90, %v339
  %341 = vmatmul.bf16.gmra.mxu0 %v199
  %v342 = vpop.f32.mrf.mxu0
  %v343 = vadd.f32 %v90, %v342
  %v344 = vpop.f32.mrf.mxu0
  %v345 = vadd.f32 %v90, %v344
  %346 = vmatmul.bf16.gmra.mxu0 %v200
  %v347 = vpop.f32.mrf.mxu0
  %v348 = vadd.f32 %v90, %v347
  %v349 = vpop.f32.mrf.mxu0
  %v350 = vadd.f32 %v90, %v349
  %351 = vmatmul.bf16.gmra.mxu0 %v201
  %v352 = vpop.f32.mrf.mxu0
  %v353 = vadd.f32 %v90, %v352
  %v354 = vpop.f32.mrf.mxu0
  %v355 = vadd.f32 %v90, %v354
  %356 = vmatmul.bf16.gmra.mxu0 %v202
  %v357 = vpop.f32.mrf.mxu0
  %v358 = vadd.f32 %v90, %v357
  %v359 = vpop.f32.mrf.mxu0
  %v360 = vadd.f32 %v90, %v359
  %361 = vmatmul.bf16.gmra.mxu0 %v203
  %v362 = vpop.f32.mrf.mxu0
  %v363 = vadd.f32 %v90, %v362
  %v364 = vpop.f32.mrf.mxu0
  %v365 = vadd.f32 %v90, %v364
  %366 = vmatmul.bf16.gmra.mxu0 %v204
  %v367 = vpop.f32.mrf.mxu0
  %v368 = vadd.f32 %v90, %v367
  %v369 = vpop.f32.mrf.mxu0
  %v370 = vadd.f32 %v90, %v369
  %371 = vmatmul.bf16.gmra.mxu0 %v205
  %v372 = vpop.f32.mrf.mxu0
  %v373 = vadd.f32 %v90, %v372
  %v374 = vpop.f32.mrf.mxu0
  %v375 = vadd.f32 %v90, %v374
  %376 = vmatmul.bf16.gmra.mxu0 %v206
  %v377 = vpop.f32.mrf.mxu0
  %v378 = vadd.f32 %v90, %v377
  %v379 = vpop.f32.mrf.mxu0
  %v380 = vadd.f32 %v90, %v379
  %381 = vmatmul.bf16.gmra.mxu0 %v207
  %v382 = vpop.f32.mrf.mxu0
  %v383 = vadd.f32 %v90, %v382
  %v384 = vpop.f32.mrf.mxu0
  %v385 = vadd.f32 %v90, %v384
  %386 = vmatmul.bf16.gmra.mxu0 %v208
  %v387 = vpop.f32.mrf.mxu0
  %v388 = vadd.f32 %v90, %v387
  %v389 = vpop.f32.mrf.mxu0
  %v390 = vadd.f32 %v90, %v389
  %391 = vmatmul.bf16.gmra.mxu0 %v209
  %v392 = vpop.f32.mrf.mxu0
  %v393 = vadd.f32 %v90, %v392
  %v394 = vpop.f32.mrf.mxu0
  %v395 = vadd.f32 %v90, %v394
  %396 = vmatmul.bf16.gmra.mxu0 %v210
  %v397 = vpop.f32.mrf.mxu0
  %v398 = vadd.f32 %v90, %v397
  %v399 = vpop.f32.mrf.mxu0
  %v400 = vadd.f32 %v90, %v399
  %401 = vmatmul.bf16.gmra.mxu0 %v211
  %v402 = vpop.f32.mrf.mxu0
  %v403 = vadd.f32 %v90, %v402
  %v404 = vpop.f32.mrf.mxu0
  %v405 = vadd.f32 %v90, %v404
  %406 = vmatmul.bf16.gmra.mxu0 %v212
  %v407 = vpop.f32.mrf.mxu0
  %v408 = vadd.f32 %v90, %v407
  %v409 = vpop.f32.mrf.mxu0
  %v410 = vadd.f32 %v90, %v409
  %411 = vmatmul.bf16.gmra.mxu0 %v213
  %v412 = vpop.f32.mrf.mxu0
  %v413 = vadd.f32 %v90, %v412
  %v414 = vpop.f32.mrf.mxu0
  %v415 = vadd.f32 %v90, %v414
  %416 = vmatmul.bf16.gmra.mxu0 %v214
  %v417 = vpop.f32.mrf.mxu0
  %v418 = vadd.f32 %v90, %v417
  %v419 = vpop.f32.mrf.mxu0
  %420 = vdwg.mxu0
  %v421 = vmax.f32 %v298, 0.0
  %v422 = vmax.f32 %v300, 0.0
  %v423 = vmax.f32 %v303, 0.0
  %v424 = vmax.f32 %v305, 0.0
  %v425 = vmax.f32 %v308, 0.0
  %v426 = vmax.f32 %v310, 0.0
  %v427 = vmax.f32 %v313, 0.0
  %v428 = vmax.f32 %v315, 0.0
  %v429 = vmax.f32 %v318, 0.0
  %v430 = vmax.f32 %v320, 0.0
  %v431 = vmax.f32 %v323, 0.0
  %v432 = vmax.f32 %v325, 0.0
  %v433 = vmax.f32 %v328, 0.0
  %v434 = vmax.f32 %v330, 0.0
  %v435 = vmax.f32 %v333, 0.0
  %v436 = vmax.f32 %v335, 0.0
  %v437 = vmax.f32 %v338, 0.0
  %v438 = vmax.f32 %v340, 0.0
  %v439 = vmax.f32 %v343, 0.0
  %v440 = vmax.f32 %v345, 0.0
  %v441 = vmax.f32 %v348, 0.0
  %v442 = vmax.f32 %v350, 0.0
  %v443 = vmax.f32 %v353, 0.0
  %v444 = vmax.f32 %v355, 0.0
  %v445 = vmax.f32 %v358, 0.0
  %v446 = vmax.f32 %v360, 0.0
  %v447 = vmax.f32 %v363, 0.0
  %v448 = vmax.f32 %v365, 0.0
  %v449 = vmax.f32 %v368, 0.0
  %v450 = vmax.f32 %v370, 0.0
  %v451 = vmax.f32 %v373, 0.0
  %v452 = vmax.f32 %v375, 0.0
  %v453 = vmax.f32 %v378, 0.0
  %v454 = vmax.f32 %v380, 0.0
  %v455 = vmax.f32 %v383, 0.0
  %v456 = vmax.f32 %v385, 0.0
  %v457 = vmax.f32 %v388, 0.0
  %v458 = vmax.f32 %v390, 0.0
  %v459 = vmax.f32 %v393, 0.0
  %v460 = vmax.f32 %v395, 0.0
  %v461 = vmax.f32 %v398, 0.0
  %v462 = vmax.f32 %v400, 0.0
  %v463 = vmax.f32 %v403, 0.0
  %v464 = vmax.f32 %v405, 0.0
  %v465 = vmax.f32 %v408, 0.0
  %v466 = vmax.f32 %v410, 0.0
  %v467 = vmax.f32 %v413, 0.0
  %v468 = vmax.f32 %v415, 0.0
  %v469 = vmax.f32 %v418, 0.0
  %v470 = vld [vmem:[%s1] sm:$0xf]
  %v471 = vld [vmem:[%s1 + $0x4] sm:$0xf]
  %v472 = vld [vmem:[%s1 + $0x8] sm:$0xf]
  %v473 = vld [vmem:[%s1 + $0xc] sm:$0xf]
  %v474 = vld [vmem:[%s1 + $0x10] sm:$0xf]
  %v475 = vld [vmem:[%s1 + $0x14] sm:$0xf]
  %v476 = vld [vmem:[%s1 + $0x18] sm:$0xf]
  %v477 = vld [vmem:[%s1 + $0x1c] sm:$0xf]
  %v478 = vld [vmem:[%s1 + $0x20] sm:$0xf]
  %v479 = vld [vmem:[%s1 + $0x24] sm:$0xf]
  %v480 = vld [vmem:[%s1 + $0x28] sm:$0xf]
  %v481 = vld [vmem:[%s1 + $0x2c] sm:$0xf]
  %v482 = vld [vmem:[%s1 + $0x30] sm:$0xf]
  %v483 = vld [vmem:[%s1 + $0x34] sm:$0xf]
  %v484 = vld [vmem:[%s1 + $0x38] sm:$0xf]
  %v485 = vld [vmem:[%s1 + $0x3c] sm:$0xf]
  %v486 = vld [vmem:[%s1 + $0x40] sm:$0xf]
  %v487 = vld [vmem:[%s1 + $0x44] sm:$0xf]
  %v488 = vld [vmem:[%s1 + $0x48] sm:$0xf]
  %v489 = vld [vmem:[%s1 + $0x4c] sm:$0xf]
  %v490 = vld [vmem:[%s1 + $0x50] sm:$0xf]
  %v491 = vld [vmem:[%s1 + $0x54] sm:$0xf]
  %v492 = vld [vmem:[%s1 + $0x58] sm:$0xf]
  %v493 = vld [vmem:[%s1 + $0x5c] sm:$0xf]
  %v494 = vld [vmem:[%s1 + $0x60] sm:$0xf]
  %v495 = vld [vmem:[%s1 + $0x64] sm:$0xf]
  %v496 = vld [vmem:[%s1 + $0x68] sm:$0xf]
  %v497 = vld [vmem:[%s1 + $0x6c] sm:$0xf]
  %v498 = vld [vmem:[%s1 + $0x70] sm:$0xf]
  %v499 = vld [vmem:[%s1 + $0x74] sm:$0xf]
  %v500 = vld [vmem:[%s1 + $0x78] sm:$0xf]
  %v501 = vld [vmem:[%s1 + $0x7c] sm:$0xf]
  %v502 = vld [vmem:[%s1 + $0x80] sm:$0xf]
  %v503 = vld [vmem:[%s1 + $0x84] sm:$0xf]
  %v504 = vld [vmem:[%s1 + $0x88] sm:$0xf]
  %v505 = vld [vmem:[%s1 + $0x8c] sm:$0xf]
  %v506 = vld [vmem:[%s1 + $0x90] sm:$0xf]
  %v507 = vld [vmem:[%s1 + $0x94] sm:$0xf]
  %v508 = vld [vmem:[%s1 + $0x98] sm:$0xf]
  %v509 = vld [vmem:[%s1 + $0x9c] sm:$0xf]
  %v510 = vld [vmem:[%s1 + $0xa0] sm:$0xf]
  %v511 = vld [vmem:[%s1 + $0xa4] sm:$0xf]
  %v512 = vld [vmem:[%s1 + $0xa8] sm:$0xf]
  %v513 = vld [vmem:[%s1 + $0xac] sm:$0xf]
  %v514 = vld [vmem:[%s1 + $0xb0] sm:$0xf]
  %v515 = vld [vmem:[%s1 + $0xb4] sm:$0xf]
  %v516 = vld [vmem:[%s1 + $0xb8] sm:$0xf]
  %v517 = vld [vmem:[%s1 + $0xbc] sm:$0xf]
  %v518 = vld [vmem:[%s1 + $0xc0] sm:$0xf]
  %v568 = vunpack.c.l.b16 %v470
  %v569 = vunpack.c.l.b16 %v471
  %v570 = vunpack.c.l.b16 %v472
  %v571 = vunpack.c.l.b16 %v473
  %v572 = vunpack.c.l.b16 %v474
  %v573 = vunpack.c.l.b16 %v475
  %v574 = vunpack.c.l.b16 %v476
  %v575 = vunpack.c.l.b16 %v477
  %v576 = vunpack.c.l.b16 %v478
  %v577 = vunpack.c.l.b16 %v479
  %v578 = vunpack.c.l.b16 %v480
  %v579 = vunpack.c.l.b16 %v481
  %v580 = vunpack.c.l.b16 %v482
  %v581 = vunpack.c.l.b16 %v483
  %v582 = vunpack.c.l.b16 %v484
  %v583 = vunpack.c.l.b16 %v485
  %v584 = vunpack.c.l.b16 %v486
  %v585 = vunpack.c.l.b16 %v487
  %v586 = vunpack.c.l.b16 %v488
  %v587 = vunpack.c.l.b16 %v489
  %v588 = vunpack.c.l.b16 %v490
  %v589 = vunpack.c.l.b16 %v491
  %v590 = vunpack.c.l.b16 %v492
  %v591 = vunpack.c.l.b16 %v493
  %v592 = vunpack.c.l.b16 %v494
  %v593 = vunpack.c.l.b16 %v495
  %v594 = vunpack.c.l.b16 %v496
  %v595 = vunpack.c.l.b16 %v497
  %v596 = vunpack.c.l.b16 %v498
  %v597 = vunpack.c.l.b16 %v499
  %v598 = vunpack.c.l.b16 %v500
  %v599 = vunpack.c.l.b16 %v501
  %v600 = vunpack.c.l.b16 %v502
  %v601 = vunpack.c.l.b16 %v503
  %v602 = vunpack.c.l.b16 %v504
  %v603 = vunpack.c.l.b16 %v505
  %v604 = vunpack.c.l.b16 %v506
  %v605 = vunpack.c.l.b16 %v507
  %v606 = vunpack.c.l.b16 %v508
  %v607 = vunpack.c.l.b16 %v509
  %v608 = vunpack.c.l.b16 %v510
  %v609 = vunpack.c.l.b16 %v511
  %v610 = vunpack.c.l.b16 %v512
  %v611 = vunpack.c.l.b16 %v513
  %v612 = vunpack.c.l.b16 %v514
  %v613 = vunpack.c.l.b16 %v515
  %v614 = vunpack.c.l.b16 %v516
  %v615 = vunpack.c.l.b16 %v517
  %v616 = vunpack.c.l.b16 %v518
  %v617 = vpack.c.b16 %v569, %v568
  %v618 = vpack.c.b16 %v571, %v570
  %v619 = vpack.c.b16 %v573, %v572
  %v620 = vpack.c.b16 %v575, %v574
  %v621 = vpack.c.b16 %v577, %v576
  %v622 = vpack.c.b16 %v579, %v578
  %v623 = vpack.c.b16 %v581, %v580
  %v624 = vpack.c.b16 %v583, %v582
  %v625 = vpack.c.b16 %v585, %v584
  %v626 = vpack.c.b16 %v587, %v586
  %v627 = vpack.c.b16 %v589, %v588
  %v628 = vpack.c.b16 %v591, %v590
  %v629 = vpack.c.b16 %v593, %v592
  %v630 = vpack.c.b16 %v595, %v594
  %v631 = vpack.c.b16 %v597, %v596
  %v632 = vpack.c.b16 %v599, %v598
  %v633 = vpack.c.b16 %v601, %v600
  %v634 = vpack.c.b16 %v603, %v602
  %v635 = vpack.c.b16 %v605, %v604
  %v636 = vpack.c.b16 %v607, %v606
  %v637 = vpack.c.b16 %v609, %v608
  %v638 = vpack.c.b16 %v611, %v610
  %v639 = vpack.c.b16 %v613, %v612
  %v640 = vpack.c.b16 %v615, %v614
  %v641 = vpack.c.b16 %v616, %v616
  %667 = vmatpush.bf16.msra.mxu0 %v279
  %668 = vmatpush.bf16.msra.mxu0 %v278
  %669 = vmatpush.bf16.msra.mxu0 %v277
  %670 = vmatpush.bf16.msra.mxu0 %v276
  %671 = vmatpush.bf16.msra.mxu0 %v275
  %672 = vmatpush.bf16.msra.mxu0 %v274
  %673 = vmatpush.bf16.msra.mxu0 %v273
  %674 = vmatpush.bf16.msra.mxu0 %v272
  %675 = vmatmul.bf16.gmra.mxu0 %v617
  %v676 = vpop.f32.mrf.mxu0
  %v677 = vadd.f32 %v90, %v676
  %v678 = vpop.f32.mrf.mxu0
  %v679 = vadd.f32 %v90, %v678
  %680 = vmatmul.bf16.gmra.mxu0 %v618
  %v681 = vpop.f32.mrf.mxu0
  %v682 = vadd.f32 %v90, %v681
  %v683 = vpop.f32.mrf.mxu0
  %v684 = vadd.f32 %v90, %v683
  %685 = vmatmul.bf16.gmra.mxu0 %v619
  %v686 = vpop.f32.mrf.mxu0
  %v687 = vadd.f32 %v90, %v686
  %v688 = vpop.f32.mrf.mxu0
  %v689 = vadd.f32 %v90, %v688
  %690 = vmatmul.bf16.gmra.mxu0 %v620
  %v691 = vpop.f32.mrf.mxu0
  %v692 = vadd.f32 %v90, %v691
  %v693 = vpop.f32.mrf.mxu0
  %v694 = vadd.f32 %v90, %v693
  %695 = vmatmul.bf16.gmra.mxu0 %v621
  %v696 = vpop.f32.mrf.mxu0
  %v697 = vadd.f32 %v90, %v696
  %v698 = vpop.f32.mrf.mxu0
  %v699 = vadd.f32 %v90, %v698
  %700 = vmatmul.bf16.gmra.mxu0 %v622
  %v701 = vpop.f32.mrf.mxu0
  %v702 = vadd.f32 %v90, %v701
  %v703 = vpop.f32.mrf.mxu0
  %v704 = vadd.f32 %v90, %v703
  %705 = vmatmul.bf16.gmra.mxu0 %v623
  %v706 = vpop.f32.mrf.mxu0
  %v707 = vadd.f32 %v90, %v706
  %v708 = vpop.f32.mrf.mxu0
  %v709 = vadd.f32 %v90, %v708
  %710 = vmatmul.bf16.gmra.mxu0 %v624
  %v711 = vpop.f32.mrf.mxu0
  %v712 = vadd.f32 %v90, %v711
  %v713 = vpop.f32.mrf.mxu0
  %v714 = vadd.f32 %v90, %v713
  %715 = vmatmul.bf16.gmra.mxu0 %v625
  %v716 = vpop.f32.mrf.mxu0
  %v717 = vadd.f32 %v90, %v716
  %v718 = vpop.f32.mrf.mxu0
  %v719 = vadd.f32 %v90, %v718
  %720 = vmatmul.bf16.gmra.mxu0 %v626
  %v721 = vpop.f32.mrf.mxu0
  %v722 = vadd.f32 %v90, %v721
  %v723 = vpop.f32.mrf.mxu0
  %v724 = vadd.f32 %v90, %v723
  %725 = vmatmul.bf16.gmra.mxu0 %v627
  %v726 = vpop.f32.mrf.mxu0
  %v727 = vadd.f32 %v90, %v726
  %v728 = vpop.f32.mrf.mxu0
  %v729 = vadd.f32 %v90, %v728
  %730 = vmatmul.bf16.gmra.mxu0 %v628
  %v731 = vpop.f32.mrf.mxu0
  %v732 = vadd.f32 %v90, %v731
  %v733 = vpop.f32.mrf.mxu0
  %v734 = vadd.f32 %v90, %v733
  %735 = vmatmul.bf16.gmra.mxu0 %v629
  %v736 = vpop.f32.mrf.mxu0
  %v737 = vadd.f32 %v90, %v736
  %v738 = vpop.f32.mrf.mxu0
  %v739 = vadd.f32 %v90, %v738
  %740 = vmatmul.bf16.gmra.mxu0 %v630
  %v741 = vpop.f32.mrf.mxu0
  %v742 = vadd.f32 %v90, %v741
  %v743 = vpop.f32.mrf.mxu0
  %v744 = vadd.f32 %v90, %v743
  %745 = vmatmul.bf16.gmra.mxu0 %v631
  %v746 = vpop.f32.mrf.mxu0
  %v747 = vadd.f32 %v90, %v746
  %v748 = vpop.f32.mrf.mxu0
  %v749 = vadd.f32 %v90, %v748
  %750 = vmatmul.bf16.gmra.mxu0 %v632
  %v751 = vpop.f32.mrf.mxu0
  %v752 = vadd.f32 %v90, %v751
  %v753 = vpop.f32.mrf.mxu0
  %v754 = vadd.f32 %v90, %v753
  %755 = vmatmul.bf16.gmra.mxu0 %v633
  %v756 = vpop.f32.mrf.mxu0
  %v757 = vadd.f32 %v90, %v756
  %v758 = vpop.f32.mrf.mxu0
  %v759 = vadd.f32 %v90, %v758
  %760 = vmatmul.bf16.gmra.mxu0 %v634
  %v761 = vpop.f32.mrf.mxu0
  %v762 = vadd.f32 %v90, %v761
  %v763 = vpop.f32.mrf.mxu0
  %v764 = vadd.f32 %v90, %v763
  %765 = vmatmul.bf16.gmra.mxu0 %v635
  %v766 = vpop.f32.mrf.mxu0
  %v767 = vadd.f32 %v90, %v766
  %v768 = vpop.f32.mrf.mxu0
  %v769 = vadd.f32 %v90, %v768
  %770 = vmatmul.bf16.gmra.mxu0 %v636
  %v771 = vpop.f32.mrf.mxu0
  %v772 = vadd.f32 %v90, %v771
  %v773 = vpop.f32.mrf.mxu0
  %v774 = vadd.f32 %v90, %v773
  %775 = vmatmul.bf16.gmra.mxu0 %v637
  %v776 = vpop.f32.mrf.mxu0
  %v777 = vadd.f32 %v90, %v776
  %v778 = vpop.f32.mrf.mxu0
  %v779 = vadd.f32 %v90, %v778
  %780 = vmatmul.bf16.gmra.mxu0 %v638
  %v781 = vpop.f32.mrf.mxu0
  %v782 = vadd.f32 %v90, %v781
  %v783 = vpop.f32.mrf.mxu0
  %v784 = vadd.f32 %v90, %v783
  %785 = vmatmul.bf16.gmra.mxu0 %v639
  %v786 = vpop.f32.mrf.mxu0
  %v787 = vadd.f32 %v90, %v786
  %v788 = vpop.f32.mrf.mxu0
  %v789 = vadd.f32 %v90, %v788
  %790 = vmatmul.bf16.gmra.mxu0 %v640
  %v791 = vpop.f32.mrf.mxu0
  %v792 = vadd.f32 %v90, %v791
  %v793 = vpop.f32.mrf.mxu0
  %v794 = vadd.f32 %v90, %v793
  %795 = vmatmul.bf16.gmra.mxu0 %v641
  %v796 = vpop.f32.mrf.mxu0
  %v797 = vadd.f32 %v90, %v796
  %v798 = vpop.f32.mrf.mxu0
  %799 = vdwg.mxu0
  %v800 = vmax.f32 %v677, 0.0
  %v801 = vmax.f32 %v679, 0.0
  %v802 = vmax.f32 %v682, 0.0
  %v803 = vmax.f32 %v684, 0.0
  %v804 = vmax.f32 %v687, 0.0
  %v805 = vmax.f32 %v689, 0.0
  %v806 = vmax.f32 %v692, 0.0
  %v807 = vmax.f32 %v694, 0.0
  %v808 = vmax.f32 %v697, 0.0
  %v809 = vmax.f32 %v699, 0.0
  %v810 = vmax.f32 %v702, 0.0
  %v811 = vmax.f32 %v704, 0.0
  %v812 = vmax.f32 %v707, 0.0
  %v813 = vmax.f32 %v709, 0.0
  %v814 = vmax.f32 %v712, 0.0
  %v815 = vmax.f32 %v714, 0.0
  %v816 = vmax.f32 %v717, 0.0
  %v817 = vmax.f32 %v719, 0.0
  %v818 = vmax.f32 %v722, 0.0
  %v819 = vmax.f32 %v724, 0.0
  %v820 = vmax.f32 %v727, 0.0
  %v821 = vmax.f32 %v729, 0.0
  %v822 = vmax.f32 %v732, 0.0
  %v823 = vmax.f32 %v734, 0.0
  %v824 = vmax.f32 %v737, 0.0
  %v825 = vmax.f32 %v739, 0.0
  %v826 = vmax.f32 %v742, 0.0
  %v827 = vmax.f32 %v744, 0.0
  %v828 = vmax.f32 %v747, 0.0
  %v829 = vmax.f32 %v749, 0.0
  %v830 = vmax.f32 %v752, 0.0
  %v831 = vmax.f32 %v754, 0.0
  %v832 = vmax.f32 %v757, 0.0
  %v833 = vmax.f32 %v759, 0.0
  %v834 = vmax.f32 %v762, 0.0
  %v835 = vmax.f32 %v764, 0.0
  %v836 = vmax.f32 %v767, 0.0
  %v837 = vmax.f32 %v769, 0.0
  %v838 = vmax.f32 %v772, 0.0
  %v839 = vmax.f32 %v774, 0.0
  %v840 = vmax.f32 %v777, 0.0
  %v841 = vmax.f32 %v779, 0.0
  %v842 = vmax.f32 %v782, 0.0
  %v843 = vmax.f32 %v784, 0.0
  %v844 = vmax.f32 %v787, 0.0
  %v845 = vmax.f32 %v789, 0.0
  %v846 = vmax.f32 %v792, 0.0
  %v847 = vmax.f32 %v794, 0.0
  %v848 = vmax.f32 %v797, 0.0
  %v849 = vmax.f32 %v421, %v800
  %v850 = vmax.f32 %v422, %v801
  %v851 = vmax.f32 %v423, %v802
  %v852 = vmax.f32 %v424, %v803
  %v853 = vmax.f32 %v425, %v804
  %v854 = vmax.f32 %v426, %v805
  %v855 = vmax.f32 %v427, %v806
  %v856 = vmax.f32 %v428, %v807
  %v857 = vmax.f32 %v429, %v808
  %v858 = vmax.f32 %v430, %v809
  %v859 = vmax.f32 %v431, %v810
  %v860 = vmax.f32 %v432, %v811
  %v861 = vmax.f32 %v433, %v812
  %v862 = vmax.f32 %v434, %v813
  %v863 = vmax.f32 %v435, %v814
  %v864 = vmax.f32 %v436, %v815
  %v865 = vmax.f32 %v437, %v816
  %v866 = vmax.f32 %v438, %v817
  %v867 = vmax.f32 %v439, %v818
  %v868 = vmax.f32 %v440, %v819
  %v869 = vmax.f32 %v441, %v820
  %v870 = vmax.f32 %v442, %v821
  %v871 = vmax.f32 %v443, %v822
  %v872 = vmax.f32 %v444, %v823
  %v873 = vmax.f32 %v445, %v824
  %v874 = vmax.f32 %v446, %v825
  %v875 = vmax.f32 %v447, %v826
  %v876 = vmax.f32 %v448, %v827
  %v877 = vmax.f32 %v449, %v828
  %v878 = vmax.f32 %v450, %v829
  %v879 = vmax.f32 %v451, %v830
  %v880 = vmax.f32 %v452, %v831
  %v881 = vmax.f32 %v453, %v832
  %v882 = vmax.f32 %v454, %v833
  %v883 = vmax.f32 %v455, %v834
  %v884 = vmax.f32 %v456, %v835
  %v885 = vmax.f32 %v457, %v836
  %v886 = vmax.f32 %v458, %v837
  %v887 = vmax.f32 %v459, %v838
  %v888 = vmax.f32 %v460, %v839
  %v889 = vmax.f32 %v461, %v840
  %v890 = vmax.f32 %v462, %v841
  %v891 = vmax.f32 %v463, %v842
  %v892 = vmax.f32 %v464, %v843
  %v893 = vmax.f32 %v465, %v844
  %v894 = vmax.f32 %v466, %v845
  %v895 = vmax.f32 %v467, %v846
  %v896 = vmax.f32 %v468, %v847
  %v897 = vmax.f32 %v469, %v848
  %v898 = vld [vmem:[%s2] sm:$0xf]
  %v899 = vld [vmem:[%s2 + $0x4] sm:$0xf]
  %v900 = vld [vmem:[%s2 + $0x8] sm:$0xf]
  %v901 = vld [vmem:[%s2 + $0xc] sm:$0xf]
  %v902 = vld [vmem:[%s2 + $0x10] sm:$0xf]
  %v903 = vld [vmem:[%s2 + $0x14] sm:$0xf]
  %v904 = vld [vmem:[%s2 + $0x18] sm:$0xf]
  %v905 = vld [vmem:[%s2 + $0x1c] sm:$0xf]
  %v906 = vld [vmem:[%s2 + $0x20] sm:$0xf]
  %v907 = vld [vmem:[%s2 + $0x24] sm:$0xf]
  %v908 = vld [vmem:[%s2 + $0x28] sm:$0xf]
  %v909 = vld [vmem:[%s2 + $0x2c] sm:$0xf]
  %v910 = vld [vmem:[%s2 + $0x30] sm:$0xf]
  %v911 = vld [vmem:[%s2 + $0x34] sm:$0xf]
  %v912 = vld [vmem:[%s2 + $0x38] sm:$0xf]
  %v913 = vld [vmem:[%s2 + $0x3c] sm:$0xf]
  %v914 = vld [vmem:[%s2 + $0x40] sm:$0xf]
  %v915 = vld [vmem:[%s2 + $0x44] sm:$0xf]
  %v916 = vld [vmem:[%s2 + $0x48] sm:$0xf]
  %v917 = vld [vmem:[%s2 + $0x4c] sm:$0xf]
  %v918 = vld [vmem:[%s2 + $0x50] sm:$0xf]
  %v919 = vld [vmem:[%s2 + $0x54] sm:$0xf]
  %v920 = vld [vmem:[%s2 + $0x58] sm:$0xf]
  %v921 = vld [vmem:[%s2 + $0x5c] sm:$0xf]
  %v922 = vld [vmem:[%s2 + $0x60] sm:$0xf]
  %v923 = vld [vmem:[%s2 + $0x64] sm:$0xf]
  %v924 = vld [vmem:[%s2 + $0x68] sm:$0xf]
  %v925 = vld [vmem:[%s2 + $0x6c] sm:$0xf]
  %v926 = vld [vmem:[%s2 + $0x70] sm:$0xf]
  %v927 = vld [vmem:[%s2 + $0x74] sm:$0xf]
  %v928 = vld [vmem:[%s2 + $0x78] sm:$0xf]
  %v929 = vld [vmem:[%s2 + $0x7c] sm:$0xf]
  %v930 = vld [vmem:[%s2 + $0x80] sm:$0xf]
  %v931 = vld [vmem:[%s2 + $0x84] sm:$0xf]
  %v932 = vld [vmem:[%s2 + $0x88] sm:$0xf]
  %v933 = vld [vmem:[%s2 + $0x8c] sm:$0xf]
  %v934 = vld [vmem:[%s2 + $0x90] sm:$0xf]
  %v935 = vld [vmem:[%s2 + $0x94] sm:$0xf]
  %v936 = vld [vmem:[%s2 + $0x98] sm:$0xf]
  %v937 = vld [vmem:[%s2 + $0x9c] sm:$0xf]
  %v938 = vld [vmem:[%s2 + $0xa0] sm:$0xf]
  %v939 = vld [vmem:[%s2 + $0xa4] sm:$0xf]
  %v940 = vld [vmem:[%s2 + $0xa8] sm:$0xf]
  %v941 = vld [vmem:[%s2 + $0xac] sm:$0xf]
  %v942 = vld [vmem:[%s2 + $0xb0] sm:$0xf]
  %v943 = vld [vmem:[%s2 + $0xb4] sm:$0xf]
  %v944 = vld [vmem:[%s2 + $0xb8] sm:$0xf]
  %v945 = vld [vmem:[%s2 + $0xbc] sm:$0xf]
  %v946 = vld [vmem:[%s2 + $0xc0] sm:$0xf]
  %v996 = vunpack.c.l.b16 %v898
  %v997 = vunpack.c.l.b16 %v899
  %v998 = vunpack.c.l.b16 %v900
  %v999 = vunpack.c.l.b16 %v901
  %v1000 = vunpack.c.l.b16 %v902
  %v1001 = vunpack.c.l.b16 %v903
  %v1002 = vunpack.c.l.b16 %v904
  %v1003 = vunpack.c.l.b16 %v905
  %v1004 = vunpack.c.l.b16 %v906
  %v1005 = vunpack.c.l.b16 %v907
  %v1006 = vunpack.c.l.b16 %v908
  %v1007 = vunpack.c.l.b16 %v909
  %v1008 = vunpack.c.l.b16 %v910
  %v1009 = vunpack.c.l.b16 %v911
  %v1010 = vunpack.c.l.b16 %v912
  %v1011 = vunpack.c.l.b16 %v913
  %v1012 = vunpack.c.l.b16 %v914
  %v1013 = vunpack.c.l.b16 %v915
  %v1014 = vunpack.c.l.b16 %v916
  %v1015 = vunpack.c.l.b16 %v917
  %v1016 = vunpack.c.l.b16 %v918
  %v1017 = vunpack.c.l.b16 %v919
  %v1018 = vunpack.c.l.b16 %v920
  %v1019 = vunpack.c.l.b16 %v921
  %v1020 = vunpack.c.l.b16 %v922
  %v1021 = vunpack.c.l.b16 %v923
  %v1022 = vunpack.c.l.b16 %v924
  %v1023 = vunpack.c.l.b16 %v925
  %v1024 = vunpack.c.l.b16 %v926
  %v1025 = vunpack.c.l.b16 %v927
  %v1026 = vunpack.c.l.b16 %v928
  %v1027 = vunpack.c.l.b16 %v929
  %v1028 = vunpack.c.l.b16 %v930
  %v1029 = vunpack.c.l.b16 %v931
  %v1030 = vunpack.c.l.b16 %v932
  %v1031 = vunpack.c.l.b16 %v933
  %v1032 = vunpack.c.l.b16 %v934
  %v1033 = vunpack.c.l.b16 %v935
  %v1034 = vunpack.c.l.b16 %v936
  %v1035 = vunpack.c.l.b16 %v937
  %v1036 = vunpack.c.l.b16 %v938
  %v1037 = vunpack.c.l.b16 %v939
  %v1038 = vunpack.c.l.b16 %v940
  %v1039 = vunpack.c.l.b16 %v941
  %v1040 = vunpack.c.l.b16 %v942
  %v1041 = vunpack.c.l.b16 %v943
  %v1042 = vunpack.c.l.b16 %v944
  %v1043 = vunpack.c.l.b16 %v945
  %v1044 = vunpack.c.l.b16 %v946
  %v1045 = vpack.c.b16 %v997, %v996
  %v1046 = vpack.c.b16 %v999, %v998
  %v1047 = vpack.c.b16 %v1001, %v1000
  %v1048 = vpack.c.b16 %v1003, %v1002
  %v1049 = vpack.c.b16 %v1005, %v1004
  %v1050 = vpack.c.b16 %v1007, %v1006
  %v1051 = vpack.c.b16 %v1009, %v1008
  %v1052 = vpack.c.b16 %v1011, %v1010
  %v1053 = vpack.c.b16 %v1013, %v1012
  %v1054 = vpack.c.b16 %v1015, %v1014
  %v1055 = vpack.c.b16 %v1017, %v1016
  %v1056 = vpack.c.b16 %v1019, %v1018
  %v1057 = vpack.c.b16 %v1021, %v1020
  %v1058 = vpack.c.b16 %v1023, %v1022
  %v1059 = vpack.c.b16 %v1025, %v1024
  %v1060 = vpack.c.b16 %v1027, %v1026
  %v1061 = vpack.c.b16 %v1029, %v1028
  %v1062 = vpack.c.b16 %v1031, %v1030
  %v1063 = vpack.c.b16 %v1033, %v1032
  %v1064 = vpack.c.b16 %v1035, %v1034
  %v1065 = vpack.c.b16 %v1037, %v1036
  %v1066 = vpack.c.b16 %v1039, %v1038
  %v1067 = vpack.c.b16 %v1041, %v1040
  %v1068 = vpack.c.b16 %v1043, %v1042
  %v1069 = vpack.c.b16 %v1044, %v1044
  %1095 = vmatpush.bf16.msra.mxu0 %v279
  %1096 = vmatpush.bf16.msra.mxu0 %v278
  %1097 = vmatpush.bf16.msra.mxu0 %v277
  %1098 = vmatpush.bf16.msra.mxu0 %v276
  %1099 = vmatpush.bf16.msra.mxu0 %v275
  %1100 = vmatpush.bf16.msra.mxu0 %v274
  %1101 = vmatpush.bf16.msra.mxu0 %v273
  %1102 = vmatpush.bf16.msra.mxu0 %v272
  %1103 = vmatmul.bf16.gmra.mxu0 %v1045
  %v1104 = vpop.f32.mrf.mxu0
  %v1105 = vadd.f32 %v90, %v1104
  %v1106 = vpop.f32.mrf.mxu0
  %v1107 = vadd.f32 %v90, %v1106
  %1108 = vmatmul.bf16.gmra.mxu0 %v1046
  %v1109 = vpop.f32.mrf.mxu0
  %v1110 = vadd.f32 %v90, %v1109
  %v1111 = vpop.f32.mrf.mxu0
  %v1112 = vadd.f32 %v90, %v1111
  %1113 = vmatmul.bf16.gmra.mxu0 %v1047
  %v1114 = vpop.f32.mrf.mxu0
  %v1115 = vadd.f32 %v90, %v1114
  %v1116 = vpop.f32.mrf.mxu0
  %v1117 = vadd.f32 %v90, %v1116
  %1118 = vmatmul.bf16.gmra.mxu0 %v1048
  %v1119 = vpop.f32.mrf.mxu0
  %v1120 = vadd.f32 %v90, %v1119
  %v1121 = vpop.f32.mrf.mxu0
  %v1122 = vadd.f32 %v90, %v1121
  %1123 = vmatmul.bf16.gmra.mxu0 %v1049
  %v1124 = vpop.f32.mrf.mxu0
  %v1125 = vadd.f32 %v90, %v1124
  %v1126 = vpop.f32.mrf.mxu0
  %v1127 = vadd.f32 %v90, %v1126
  %1128 = vmatmul.bf16.gmra.mxu0 %v1050
  %v1129 = vpop.f32.mrf.mxu0
  %v1130 = vadd.f32 %v90, %v1129
  %v1131 = vpop.f32.mrf.mxu0
  %v1132 = vadd.f32 %v90, %v1131
  %1133 = vmatmul.bf16.gmra.mxu0 %v1051
  %v1134 = vpop.f32.mrf.mxu0
  %v1135 = vadd.f32 %v90, %v1134
  %v1136 = vpop.f32.mrf.mxu0
  %v1137 = vadd.f32 %v90, %v1136
  %1138 = vmatmul.bf16.gmra.mxu0 %v1052
  %v1139 = vpop.f32.mrf.mxu0
  %v1140 = vadd.f32 %v90, %v1139
  %v1141 = vpop.f32.mrf.mxu0
  %v1142 = vadd.f32 %v90, %v1141
  %1143 = vmatmul.bf16.gmra.mxu0 %v1053
  %v1144 = vpop.f32.mrf.mxu0
  %v1145 = vadd.f32 %v90, %v1144
  %v1146 = vpop.f32.mrf.mxu0
  %v1147 = vadd.f32 %v90, %v1146
  %1148 = vmatmul.bf16.gmra.mxu0 %v1054
  %v1149 = vpop.f32.mrf.mxu0
  %v1150 = vadd.f32 %v90, %v1149
  %v1151 = vpop.f32.mrf.mxu0
  %v1152 = vadd.f32 %v90, %v1151
  %1153 = vmatmul.bf16.gmra.mxu0 %v1055
  %v1154 = vpop.f32.mrf.mxu0
  %v1155 = vadd.f32 %v90, %v1154
  %v1156 = vpop.f32.mrf.mxu0
  %v1157 = vadd.f32 %v90, %v1156
  %1158 = vmatmul.bf16.gmra.mxu0 %v1056
  %v1159 = vpop.f32.mrf.mxu0
  %v1160 = vadd.f32 %v90, %v1159
  %v1161 = vpop.f32.mrf.mxu0
  %v1162 = vadd.f32 %v90, %v1161
  %1163 = vmatmul.bf16.gmra.mxu0 %v1057
  %v1164 = vpop.f32.mrf.mxu0
  %v1165 = vadd.f32 %v90, %v1164
  %v1166 = vpop.f32.mrf.mxu0
  %v1167 = vadd.f32 %v90, %v1166
  %1168 = vmatmul.bf16.gmra.mxu0 %v1058
  %v1169 = vpop.f32.mrf.mxu0
  %v1170 = vadd.f32 %v90, %v1169
  %v1171 = vpop.f32.mrf.mxu0
  %v1172 = vadd.f32 %v90, %v1171
  %1173 = vmatmul.bf16.gmra.mxu0 %v1059
  %v1174 = vpop.f32.mrf.mxu0
  %v1175 = vadd.f32 %v90, %v1174
  %v1176 = vpop.f32.mrf.mxu0
  %v1177 = vadd.f32 %v90, %v1176
  %1178 = vmatmul.bf16.gmra.mxu0 %v1060
  %v1179 = vpop.f32.mrf.mxu0
  %v1180 = vadd.f32 %v90, %v1179
  %v1181 = vpop.f32.mrf.mxu0
  %v1182 = vadd.f32 %v90, %v1181
  %1183 = vmatmul.bf16.gmra.mxu0 %v1061
  %v1184 = vpop.f32.mrf.mxu0
  %v1185 = vadd.f32 %v90, %v1184
  %v1186 = vpop.f32.mrf.mxu0
  %v1187 = vadd.f32 %v90, %v1186
  %1188 = vmatmul.bf16.gmra.mxu0 %v1062
  %v1189 = vpop.f32.mrf.mxu0
  %v1190 = vadd.f32 %v90, %v1189
  %v1191 = vpop.f32.mrf.mxu0
  %v1192 = vadd.f32 %v90, %v1191
  %1193 = vmatmul.bf16.gmra.mxu0 %v1063
  %v1194 = vpop.f32.mrf.mxu0
  %v1195 = vadd.f32 %v90, %v1194
  %v1196 = vpop.f32.mrf.mxu0
  %v1197 = vadd.f32 %v90, %v1196
  %1198 = vmatmul.bf16.gmra.mxu0 %v1064
  %v1199 = vpop.f32.mrf.mxu0
  %v1200 = vadd.f32 %v90, %v1199
  %v1201 = vpop.f32.mrf.mxu0
  %v1202 = vadd.f32 %v90, %v1201
  %1203 = vmatmul.bf16.gmra.mxu0 %v1065
  %v1204 = vpop.f32.mrf.mxu0
  %v1205 = vadd.f32 %v90, %v1204
  %v1206 = vpop.f32.mrf.mxu0
  %v1207 = vadd.f32 %v90, %v1206
  %1208 = vmatmul.bf16.gmra.mxu0 %v1066
  %v1209 = vpop.f32.mrf.mxu0
  %v1210 = vadd.f32 %v90, %v1209
  %v1211 = vpop.f32.mrf.mxu0
  %v1212 = vadd.f32 %v90, %v1211
  %1213 = vmatmul.bf16.gmra.mxu0 %v1067
  %v1214 = vpop.f32.mrf.mxu0
  %v1215 = vadd.f32 %v90, %v1214
  %v1216 = vpop.f32.mrf.mxu0
  %v1217 = vadd.f32 %v90, %v1216
  %1218 = vmatmul.bf16.gmra.mxu0 %v1068
  %v1219 = vpop.f32.mrf.mxu0
  %v1220 = vadd.f32 %v90, %v1219
  %v1221 = vpop.f32.mrf.mxu0
  %v1222 = vadd.f32 %v90, %v1221
  %1223 = vmatmul.bf16.gmra.mxu0 %v1069
  %v1224 = vpop.f32.mrf.mxu0
  %v1225 = vadd.f32 %v90, %v1224
  %v1226 = vpop.f32.mrf.mxu0
  %1227 = vdwg.mxu0
  %v1228 = vmax.f32 %v1105, 0.0
  %v1229 = vmax.f32 %v1107, 0.0
  %v1230 = vmax.f32 %v1110, 0.0
  %v1231 = vmax.f32 %v1112, 0.0
  %v1232 = vmax.f32 %v1115, 0.0
  %v1233 = vmax.f32 %v1117, 0.0
  %v1234 = vmax.f32 %v1120, 0.0
  %v1235 = vmax.f32 %v1122, 0.0
  %v1236 = vmax.f32 %v1125, 0.0
  %v1237 = vmax.f32 %v1127, 0.0
  %v1238 = vmax.f32 %v1130, 0.0
  %v1239 = vmax.f32 %v1132, 0.0
  %v1240 = vmax.f32 %v1135, 0.0
  %v1241 = vmax.f32 %v1137, 0.0
  %v1242 = vmax.f32 %v1140, 0.0
  %v1243 = vmax.f32 %v1142, 0.0
  %v1244 = vmax.f32 %v1145, 0.0
  %v1245 = vmax.f32 %v1147, 0.0
  %v1246 = vmax.f32 %v1150, 0.0
  %v1247 = vmax.f32 %v1152, 0.0
  %v1248 = vmax.f32 %v1155, 0.0
  %v1249 = vmax.f32 %v1157, 0.0
  %v1250 = vmax.f32 %v1160, 0.0
  %v1251 = vmax.f32 %v1162, 0.0
  %v1252 = vmax.f32 %v1165, 0.0
  %v1253 = vmax.f32 %v1167, 0.0
  %v1254 = vmax.f32 %v1170, 0.0
  %v1255 = vmax.f32 %v1172, 0.0
  %v1256 = vmax.f32 %v1175, 0.0
  %v1257 = vmax.f32 %v1177, 0.0
  %v1258 = vmax.f32 %v1180, 0.0
  %v1259 = vmax.f32 %v1182, 0.0
  %v1260 = vmax.f32 %v1185, 0.0
  %v1261 = vmax.f32 %v1187, 0.0
  %v1262 = vmax.f32 %v1190, 0.0
  %v1263 = vmax.f32 %v1192, 0.0
  %v1264 = vmax.f32 %v1195, 0.0
  %v1265 = vmax.f32 %v1197, 0.0
  %v1266 = vmax.f32 %v1200, 0.0
  %v1267 = vmax.f32 %v1202, 0.0
  %v1268 = vmax.f32 %v1205, 0.0
  %v1269 = vmax.f32 %v1207, 0.0
  %v1270 = vmax.f32 %v1210, 0.0
  %v1271 = vmax.f32 %v1212, 0.0
  %v1272 = vmax.f32 %v1215, 0.0
  %v1273 = vmax.f32 %v1217, 0.0
  %v1274 = vmax.f32 %v1220, 0.0
  %v1275 = vmax.f32 %v1222, 0.0
  %v1276 = vmax.f32 %v1225, 0.0
  %v1277 = vmax.f32 %v849, %v1228
  %v1278 = vmax.f32 %v850, %v1229
  %v1279 = vmax.f32 %v851, %v1230
  %v1280 = vmax.f32 %v852, %v1231
  %v1281 = vmax.f32 %v853, %v1232
  %v1282 = vmax.f32 %v854, %v1233
  %v1283 = vmax.f32 %v855, %v1234
  %v1284 = vmax.f32 %v856, %v1235
  %v1285 = vmax.f32 %v857, %v1236
  %v1286 = vmax.f32 %v858, %v1237
  %v1287 = vmax.f32 %v859, %v1238
  %v1288 = vmax.f32 %v860, %v1239
  %v1289 = vmax.f32 %v861, %v1240
  %v1290 = vmax.f32 %v862, %v1241
  %v1291 = vmax.f32 %v863, %v1242
  %v1292 = vmax.f32 %v864, %v1243
  %v1293 = vmax.f32 %v865, %v1244
  %v1294 = vmax.f32 %v866, %v1245
  %v1295 = vmax.f32 %v867, %v1246
  %v1296 = vmax.f32 %v868, %v1247
  %v1297 = vmax.f32 %v869, %v1248
  %v1298 = vmax.f32 %v870, %v1249
  %v1299 = vmax.f32 %v871, %v1250
  %v1300 = vmax.f32 %v872, %v1251
  %v1301 = vmax.f32 %v873, %v1252
  %v1302 = vmax.f32 %v874, %v1253
  %v1303 = vmax.f32 %v875, %v1254
  %v1304 = vmax.f32 %v876, %v1255
  %v1305 = vmax.f32 %v877, %v1256
  %v1306 = vmax.f32 %v878, %v1257
  %v1307 = vmax.f32 %v879, %v1258
  %v1308 = vmax.f32 %v880, %v1259
  %v1309 = vmax.f32 %v881, %v1260
  %v1310 = vmax.f32 %v882, %v1261
  %v1311 = vmax.f32 %v883, %v1262
  %v1312 = vmax.f32 %v884, %v1263
  %v1313 = vmax.f32 %v885, %v1264
  %v1314 = vmax.f32 %v886, %v1265
  %v1315 = vmax.f32 %v887, %v1266
  %v1316 = vmax.f32 %v888, %v1267
  %v1317 = vmax.f32 %v889, %v1268
  %v1318 = vmax.f32 %v890, %v1269
  %v1319 = vmax.f32 %v891, %v1270
  %v1320 = vmax.f32 %v892, %v1271
  %v1321 = vmax.f32 %v893, %v1272
  %v1322 = vmax.f32 %v894, %v1273
  %v1323 = vmax.f32 %v895, %v1274
  %v1324 = vmax.f32 %v896, %v1275
  %v1325 = vmax.f32 %v897, %v1276
  %v1326 = vld [vmem:[%s3] sm:$0xf]
  %v1327 = vld [vmem:[%s3 + $0x4] sm:$0xf]
  %v1328 = vld [vmem:[%s3 + $0x8] sm:$0xf]
  %v1329 = vld [vmem:[%s3 + $0xc] sm:$0xf]
  %v1330 = vld [vmem:[%s3 + $0x10] sm:$0xf]
  %v1331 = vld [vmem:[%s3 + $0x14] sm:$0xf]
  %v1332 = vld [vmem:[%s3 + $0x18] sm:$0xf]
  %v1333 = vld [vmem:[%s3 + $0x1c] sm:$0xf]
  %v1334 = vld [vmem:[%s3 + $0x20] sm:$0xf]
  %v1335 = vld [vmem:[%s3 + $0x24] sm:$0xf]
  %v1336 = vld [vmem:[%s3 + $0x28] sm:$0xf]
  %v1337 = vld [vmem:[%s3 + $0x2c] sm:$0xf]
  %v1338 = vld [vmem:[%s3 + $0x30] sm:$0xf]
  %v1339 = vld [vmem:[%s3 + $0x34] sm:$0xf]
  %v1340 = vld [vmem:[%s3 + $0x38] sm:$0xf]
  %v1341 = vld [vmem:[%s3 + $0x3c] sm:$0xf]
  %v1342 = vld [vmem:[%s3 + $0x40] sm:$0xf]
  %v1343 = vld [vmem:[%s3 + $0x44] sm:$0xf]
  %v1344 = vld [vmem:[%s3 + $0x48] sm:$0xf]
  %v1345 = vld [vmem:[%s3 + $0x4c] sm:$0xf]
  %v1346 = vld [vmem:[%s3 + $0x50] sm:$0xf]
  %v1347 = vld [vmem:[%s3 + $0x54] sm:$0xf]
  %v1348 = vld [vmem:[%s3 + $0x58] sm:$0xf]
  %v1349 = vld [vmem:[%s3 + $0x5c] sm:$0xf]
  %v1350 = vld [vmem:[%s3 + $0x60] sm:$0xf]
  %v1351 = vld [vmem:[%s3 + $0x64] sm:$0xf]
  %v1352 = vld [vmem:[%s3 + $0x68] sm:$0xf]
  %v1353 = vld [vmem:[%s3 + $0x6c] sm:$0xf]
  %v1354 = vld [vmem:[%s3 + $0x70] sm:$0xf]
  %v1355 = vld [vmem:[%s3 + $0x74] sm:$0xf]
  %v1356 = vld [vmem:[%s3 + $0x78] sm:$0xf]
  %v1357 = vld [vmem:[%s3 + $0x7c] sm:$0xf]
  %v1358 = vld [vmem:[%s3 + $0x80] sm:$0xf]
  %v1359 = vld [vmem:[%s3 + $0x84] sm:$0xf]
  %v1360 = vld [vmem:[%s3 + $0x88] sm:$0xf]
  %v1361 = vld [vmem:[%s3 + $0x8c] sm:$0xf]
  %v1362 = vld [vmem:[%s3 + $0x90] sm:$0xf]
  %v1363 = vld [vmem:[%s3 + $0x94] sm:$0xf]
  %v1364 = vld [vmem:[%s3 + $0x98] sm:$0xf]
  %v1365 = vld [vmem:[%s3 + $0x9c] sm:$0xf]
  %v1366 = vld [vmem:[%s3 + $0xa0] sm:$0xf]
  %v1367 = vld [vmem:[%s3 + $0xa4] sm:$0xf]
  %v1368 = vld [vmem:[%s3 + $0xa8] sm:$0xf]
  %v1369 = vld [vmem:[%s3 + $0xac] sm:$0xf]
  %v1370 = vld [vmem:[%s3 + $0xb0] sm:$0xf]
  %v1371 = vld [vmem:[%s3 + $0xb4] sm:$0xf]
  %v1372 = vld [vmem:[%s3 + $0xb8] sm:$0xf]
  %v1373 = vld [vmem:[%s3 + $0xbc] sm:$0xf]
  %v1374 = vld [vmem:[%s3 + $0xc0] sm:$0xf]
  %v1424 = vunpack.c.l.b16 %v1326
  %v1425 = vunpack.c.l.b16 %v1327
  %v1426 = vunpack.c.l.b16 %v1328
  %v1427 = vunpack.c.l.b16 %v1329
  %v1428 = vunpack.c.l.b16 %v1330
  %v1429 = vunpack.c.l.b16 %v1331
  %v1430 = vunpack.c.l.b16 %v1332
  %v1431 = vunpack.c.l.b16 %v1333
  %v1432 = vunpack.c.l.b16 %v1334
  %v1433 = vunpack.c.l.b16 %v1335
  %v1434 = vunpack.c.l.b16 %v1336
  %v1435 = vunpack.c.l.b16 %v1337
  %v1436 = vunpack.c.l.b16 %v1338
  %v1437 = vunpack.c.l.b16 %v1339
  %v1438 = vunpack.c.l.b16 %v1340
  %v1439 = vunpack.c.l.b16 %v1341
  %v1440 = vunpack.c.l.b16 %v1342
  %v1441 = vunpack.c.l.b16 %v1343
  %v1442 = vunpack.c.l.b16 %v1344
  %v1443 = vunpack.c.l.b16 %v1345
  %v1444 = vunpack.c.l.b16 %v1346
  %v1445 = vunpack.c.l.b16 %v1347
  %v1446 = vunpack.c.l.b16 %v1348
  %v1447 = vunpack.c.l.b16 %v1349
  %v1448 = vunpack.c.l.b16 %v1350
  %v1449 = vunpack.c.l.b16 %v1351
  %v1450 = vunpack.c.l.b16 %v1352
  %v1451 = vunpack.c.l.b16 %v1353
  %v1452 = vunpack.c.l.b16 %v1354
  %v1453 = vunpack.c.l.b16 %v1355
  %v1454 = vunpack.c.l.b16 %v1356
  %v1455 = vunpack.c.l.b16 %v1357
  %v1456 = vunpack.c.l.b16 %v1358
  %v1457 = vunpack.c.l.b16 %v1359
  %v1458 = vunpack.c.l.b16 %v1360
  %v1459 = vunpack.c.l.b16 %v1361
  %v1460 = vunpack.c.l.b16 %v1362
  %v1461 = vunpack.c.l.b16 %v1363
  %v1462 = vunpack.c.l.b16 %v1364
  %v1463 = vunpack.c.l.b16 %v1365
  %v1464 = vunpack.c.l.b16 %v1366
  %v1465 = vunpack.c.l.b16 %v1367
  %v1466 = vunpack.c.l.b16 %v1368
  %v1467 = vunpack.c.l.b16 %v1369
  %v1468 = vunpack.c.l.b16 %v1370
  %v1469 = vunpack.c.l.b16 %v1371
  %v1470 = vunpack.c.l.b16 %v1372
  %v1471 = vunpack.c.l.b16 %v1373
  %v1472 = vunpack.c.l.b16 %v1374
  %v1473 = vpack.c.b16 %v1425, %v1424
  %v1474 = vpack.c.b16 %v1427, %v1426
  %v1475 = vpack.c.b16 %v1429, %v1428
  %v1476 = vpack.c.b16 %v1431, %v1430
  %v1477 = vpack.c.b16 %v1433, %v1432
  %v1478 = vpack.c.b16 %v1435, %v1434
  %v1479 = vpack.c.b16 %v1437, %v1436
  %v1480 = vpack.c.b16 %v1439, %v1438
  %v1481 = vpack.c.b16 %v1441, %v1440
  %v1482 = vpack.c.b16 %v1443, %v1442
  %v1483 = vpack.c.b16 %v1445, %v1444
  %v1484 = vpack.c.b16 %v1447, %v1446
  %v1485 = vpack.c.b16 %v1449, %v1448
  %v1486 = vpack.c.b16 %v1451, %v1450
  %v1487 = vpack.c.b16 %v1453, %v1452
  %v1488 = vpack.c.b16 %v1455, %v1454
  %v1489 = vpack.c.b16 %v1457, %v1456
  %v1490 = vpack.c.b16 %v1459, %v1458
  %v1491 = vpack.c.b16 %v1461, %v1460
  %v1492 = vpack.c.b16 %v1463, %v1462
  %v1493 = vpack.c.b16 %v1465, %v1464
  %v1494 = vpack.c.b16 %v1467, %v1466
  %v1495 = vpack.c.b16 %v1469, %v1468
  %v1496 = vpack.c.b16 %v1471, %v1470
  %v1497 = vpack.c.b16 %v1472, %v1472
  %1523 = vmatpush.bf16.msra.mxu0 %v279
  %1524 = vmatpush.bf16.msra.mxu0 %v278
  %1525 = vmatpush.bf16.msra.mxu0 %v277
  %1526 = vmatpush.bf16.msra.mxu0 %v276
  %1527 = vmatpush.bf16.msra.mxu0 %v275
  %1528 = vmatpush.bf16.msra.mxu0 %v274
  %1529 = vmatpush.bf16.msra.mxu0 %v273
  %1530 = vmatpush.bf16.msra.mxu0 %v272
  %1531 = vmatmul.bf16.gmra.mxu0 %v1473
  %v1532 = vpop.f32.mrf.mxu0
  %v1533 = vadd.f32 %v90, %v1532
  %v1534 = vpop.f32.mrf.mxu0
  %v1535 = vadd.f32 %v90, %v1534
  %1536 = vmatmul.bf16.gmra.mxu0 %v1474
  %v1537 = vpop.f32.mrf.mxu0
  %v1538 = vadd.f32 %v90, %v1537
  %v1539 = vpop.f32.mrf.mxu0
  %v1540 = vadd.f32 %v90, %v1539
  %1541 = vmatmul.bf16.gmra.mxu0 %v1475
  %v1542 = vpop.f32.mrf.mxu0
  %v1543 = vadd.f32 %v90, %v1542
  %v1544 = vpop.f32.mrf.mxu0
  %v1545 = vadd.f32 %v90, %v1544
  %1546 = vmatmul.bf16.gmra.mxu0 %v1476
  %v1547 = vpop.f32.mrf.mxu0
  %v1548 = vadd.f32 %v90, %v1547
  %v1549 = vpop.f32.mrf.mxu0
  %v1550 = vadd.f32 %v90, %v1549
  %1551 = vmatmul.bf16.gmra.mxu0 %v1477
  %v1552 = vpop.f32.mrf.mxu0
  %v1553 = vadd.f32 %v90, %v1552
  %v1554 = vpop.f32.mrf.mxu0
  %v1555 = vadd.f32 %v90, %v1554
  %1556 = vmatmul.bf16.gmra.mxu0 %v1478
  %v1557 = vpop.f32.mrf.mxu0
  %v1558 = vadd.f32 %v90, %v1557
  %v1559 = vpop.f32.mrf.mxu0
  %v1560 = vadd.f32 %v90, %v1559
  %1561 = vmatmul.bf16.gmra.mxu0 %v1479
  %v1562 = vpop.f32.mrf.mxu0
  %v1563 = vadd.f32 %v90, %v1562
  %v1564 = vpop.f32.mrf.mxu0
  %v1565 = vadd.f32 %v90, %v1564
  %1566 = vmatmul.bf16.gmra.mxu0 %v1480
  %v1567 = vpop.f32.mrf.mxu0
  %v1568 = vadd.f32 %v90, %v1567
  %v1569 = vpop.f32.mrf.mxu0
  %v1570 = vadd.f32 %v90, %v1569
  %1571 = vmatmul.bf16.gmra.mxu0 %v1481
  %v1572 = vpop.f32.mrf.mxu0
  %v1573 = vadd.f32 %v90, %v1572
  %v1574 = vpop.f32.mrf.mxu0
  %v1575 = vadd.f32 %v90, %v1574
  %1576 = vmatmul.bf16.gmra.mxu0 %v1482
  %v1577 = vpop.f32.mrf.mxu0
  %v1578 = vadd.f32 %v90, %v1577
  %v1579 = vpop.f32.mrf.mxu0
  %v1580 = vadd.f32 %v90, %v1579
  %1581 = vmatmul.bf16.gmra.mxu0 %v1483
  %v1582 = vpop.f32.mrf.mxu0
  %v1583 = vadd.f32 %v90, %v1582
  %v1584 = vpop.f32.mrf.mxu0
  %v1585 = vadd.f32 %v90, %v1584
  %1586 = vmatmul.bf16.gmra.mxu0 %v1484
  %v1587 = vpop.f32.mrf.mxu0
  %v1588 = vadd.f32 %v90, %v1587
  %v1589 = vpop.f32.mrf.mxu0
  %v1590 = vadd.f32 %v90, %v1589
  %1591 = vmatmul.bf16.gmra.mxu0 %v1485
  %v1592 = vpop.f32.mrf.mxu0
  %v1593 = vadd.f32 %v90, %v1592
  %v1594 = vpop.f32.mrf.mxu0
  %v1595 = vadd.f32 %v90, %v1594
  %1596 = vmatmul.bf16.gmra.mxu0 %v1486
  %v1597 = vpop.f32.mrf.mxu0
  %v1598 = vadd.f32 %v90, %v1597
  %v1599 = vpop.f32.mrf.mxu0
  %v1600 = vadd.f32 %v90, %v1599
  %1601 = vmatmul.bf16.gmra.mxu0 %v1487
  %v1602 = vpop.f32.mrf.mxu0
  %v1603 = vadd.f32 %v90, %v1602
  %v1604 = vpop.f32.mrf.mxu0
  %v1605 = vadd.f32 %v90, %v1604
  %1606 = vmatmul.bf16.gmra.mxu0 %v1488
  %v1607 = vpop.f32.mrf.mxu0
  %v1608 = vadd.f32 %v90, %v1607
  %v1609 = vpop.f32.mrf.mxu0
  %v1610 = vadd.f32 %v90, %v1609
  %1611 = vmatmul.bf16.gmra.mxu0 %v1489
  %v1612 = vpop.f32.mrf.mxu0
  %v1613 = vadd.f32 %v90, %v1612
  %v1614 = vpop.f32.mrf.mxu0
  %v1615 = vadd.f32 %v90, %v1614
  %1616 = vmatmul.bf16.gmra.mxu0 %v1490
  %v1617 = vpop.f32.mrf.mxu0
  %v1618 = vadd.f32 %v90, %v1617
  %v1619 = vpop.f32.mrf.mxu0
  %v1620 = vadd.f32 %v90, %v1619
  %1621 = vmatmul.bf16.gmra.mxu0 %v1491
  %v1622 = vpop.f32.mrf.mxu0
  %v1623 = vadd.f32 %v90, %v1622
  %v1624 = vpop.f32.mrf.mxu0
  %v1625 = vadd.f32 %v90, %v1624
  %1626 = vmatmul.bf16.gmra.mxu0 %v1492
  %v1627 = vpop.f32.mrf.mxu0
  %v1628 = vadd.f32 %v90, %v1627
  %v1629 = vpop.f32.mrf.mxu0
  %v1630 = vadd.f32 %v90, %v1629
  %1631 = vmatmul.bf16.gmra.mxu0 %v1493
  %v1632 = vpop.f32.mrf.mxu0
  %v1633 = vadd.f32 %v90, %v1632
  %v1634 = vpop.f32.mrf.mxu0
  %v1635 = vadd.f32 %v90, %v1634
  %1636 = vmatmul.bf16.gmra.mxu0 %v1494
  %v1637 = vpop.f32.mrf.mxu0
  %v1638 = vadd.f32 %v90, %v1637
  %v1639 = vpop.f32.mrf.mxu0
  %v1640 = vadd.f32 %v90, %v1639
  %1641 = vmatmul.bf16.gmra.mxu0 %v1495
  %v1642 = vpop.f32.mrf.mxu0
  %v1643 = vadd.f32 %v90, %v1642
  %v1644 = vpop.f32.mrf.mxu0
  %v1645 = vadd.f32 %v90, %v1644
  %1646 = vmatmul.bf16.gmra.mxu0 %v1496
  %v1647 = vpop.f32.mrf.mxu0
  %v1648 = vadd.f32 %v90, %v1647
  %v1649 = vpop.f32.mrf.mxu0
  %v1650 = vadd.f32 %v90, %v1649
  %1651 = vmatmul.bf16.gmra.mxu0 %v1497
  %v1652 = vpop.f32.mrf.mxu0
  %v1653 = vadd.f32 %v90, %v1652
  %v1654 = vpop.f32.mrf.mxu0
  %1655 = vdwg.mxu0
  %v1656 = vmax.f32 %v1533, 0.0
  %v1657 = vmax.f32 %v1535, 0.0
  %v1658 = vmax.f32 %v1538, 0.0
  %v1659 = vmax.f32 %v1540, 0.0
  %v1660 = vmax.f32 %v1543, 0.0
  %v1661 = vmax.f32 %v1545, 0.0
  %v1662 = vmax.f32 %v1548, 0.0
  %v1663 = vmax.f32 %v1550, 0.0
  %v1664 = vmax.f32 %v1553, 0.0
  %v1665 = vmax.f32 %v1555, 0.0
  %v1666 = vmax.f32 %v1558, 0.0
  %v1667 = vmax.f32 %v1560, 0.0
  %v1668 = vmax.f32 %v1563, 0.0
  %v1669 = vmax.f32 %v1565, 0.0
  %v1670 = vmax.f32 %v1568, 0.0
  %v1671 = vmax.f32 %v1570, 0.0
  %v1672 = vmax.f32 %v1573, 0.0
  %v1673 = vmax.f32 %v1575, 0.0
  %v1674 = vmax.f32 %v1578, 0.0
  %v1675 = vmax.f32 %v1580, 0.0
  %v1676 = vmax.f32 %v1583, 0.0
  %v1677 = vmax.f32 %v1585, 0.0
  %v1678 = vmax.f32 %v1588, 0.0
  %v1679 = vmax.f32 %v1590, 0.0
  %v1680 = vmax.f32 %v1593, 0.0
  %v1681 = vmax.f32 %v1595, 0.0
  %v1682 = vmax.f32 %v1598, 0.0
  %v1683 = vmax.f32 %v1600, 0.0
  %v1684 = vmax.f32 %v1603, 0.0
  %v1685 = vmax.f32 %v1605, 0.0
  %v1686 = vmax.f32 %v1608, 0.0
  %v1687 = vmax.f32 %v1610, 0.0
  %v1688 = vmax.f32 %v1613, 0.0
  %v1689 = vmax.f32 %v1615, 0.0
  %v1690 = vmax.f32 %v1618, 0.0
  %v1691 = vmax.f32 %v1620, 0.0
  %v1692 = vmax.f32 %v1623, 0.0
  %v1693 = vmax.f32 %v1625, 0.0
  %v1694 = vmax.f32 %v1628, 0.0
  %v1695 = vmax.f32 %v1630, 0.0
  %v1696 = vmax.f32 %v1633, 0.0
  %v1697 = vmax.f32 %v1635, 0.0
  %v1698 = vmax.f32 %v1638, 0.0
  %v1699 = vmax.f32 %v1640, 0.0
  %v1700 = vmax.f32 %v1643, 0.0
  %v1701 = vmax.f32 %v1645, 0.0
  %v1702 = vmax.f32 %v1648, 0.0
  %v1703 = vmax.f32 %v1650, 0.0
  %v1704 = vmax.f32 %v1653, 0.0
  %v1705 = vmax.f32 %v1277, %v1656
  %v1706 = vmax.f32 %v1278, %v1657
  %v1707 = vmax.f32 %v1279, %v1658
  %v1708 = vmax.f32 %v1280, %v1659
  %v1709 = vmax.f32 %v1281, %v1660
  %v1710 = vmax.f32 %v1282, %v1661
  %v1711 = vmax.f32 %v1283, %v1662
  %v1712 = vmax.f32 %v1284, %v1663
  %v1713 = vmax.f32 %v1285, %v1664
  %v1714 = vmax.f32 %v1286, %v1665
  %v1715 = vmax.f32 %v1287, %v1666
  %v1716 = vmax.f32 %v1288, %v1667
  %v1717 = vmax.f32 %v1289, %v1668
  %v1718 = vmax.f32 %v1290, %v1669
  %v1719 = vmax.f32 %v1291, %v1670
  %v1720 = vmax.f32 %v1292, %v1671
  %v1721 = vmax.f32 %v1293, %v1672
  %v1722 = vmax.f32 %v1294, %v1673
  %v1723 = vmax.f32 %v1295, %v1674
  %v1724 = vmax.f32 %v1296, %v1675
  %v1725 = vmax.f32 %v1297, %v1676
  %v1726 = vmax.f32 %v1298, %v1677
  %v1727 = vmax.f32 %v1299, %v1678
  %v1728 = vmax.f32 %v1300, %v1679
  %v1729 = vmax.f32 %v1301, %v1680
  %v1730 = vmax.f32 %v1302, %v1681
  %v1731 = vmax.f32 %v1303, %v1682
  %v1732 = vmax.f32 %v1304, %v1683
  %v1733 = vmax.f32 %v1305, %v1684
  %v1734 = vmax.f32 %v1306, %v1685
  %v1735 = vmax.f32 %v1307, %v1686
  %v1736 = vmax.f32 %v1308, %v1687
  %v1737 = vmax.f32 %v1309, %v1688
  %v1738 = vmax.f32 %v1310, %v1689
  %v1739 = vmax.f32 %v1311, %v1690
  %v1740 = vmax.f32 %v1312, %v1691
  %v1741 = vmax.f32 %v1313, %v1692
  %v1742 = vmax.f32 %v1314, %v1693
  %v1743 = vmax.f32 %v1315, %v1694
  %v1744 = vmax.f32 %v1316, %v1695
  %v1745 = vmax.f32 %v1317, %v1696
  %v1746 = vmax.f32 %v1318, %v1697
  %v1747 = vmax.f32 %v1319, %v1698
  %v1748 = vmax.f32 %v1320, %v1699
  %v1749 = vmax.f32 %v1321, %v1700
  %v1750 = vmax.f32 %v1322, %v1701
  %v1751 = vmax.f32 %v1323, %v1702
  %v1752 = vmax.f32 %v1324, %v1703
  %v1753 = vmax.f32 %v1325, %v1704
  %v1754 = vpack.c.bf16 %v1705, %v1705
  %v1755 = vpack.c.bf16 %v1706, %v1706
  %v1756 = vpack.c.bf16 %v1707, %v1707
  %v1757 = vpack.c.bf16 %v1708, %v1708
  %v1758 = vpack.c.bf16 %v1709, %v1709
  %v1759 = vpack.c.bf16 %v1710, %v1710
  %v1760 = vpack.c.bf16 %v1711, %v1711
  %v1761 = vpack.c.bf16 %v1712, %v1712
  %v1762 = vpack.c.bf16 %v1713, %v1713
  %v1763 = vpack.c.bf16 %v1714, %v1714
  %v1764 = vpack.c.bf16 %v1715, %v1715
  %v1765 = vpack.c.bf16 %v1716, %v1716
  %v1766 = vpack.c.bf16 %v1717, %v1717
  %v1767 = vpack.c.bf16 %v1718, %v1718
  %v1768 = vpack.c.bf16 %v1719, %v1719
  %v1769 = vpack.c.bf16 %v1720, %v1720
  %v1770 = vpack.c.bf16 %v1721, %v1721
  %v1771 = vpack.c.bf16 %v1722, %v1722
  %v1772 = vpack.c.bf16 %v1723, %v1723
  %v1773 = vpack.c.bf16 %v1724, %v1724
  %v1774 = vpack.c.bf16 %v1725, %v1725
  %v1775 = vpack.c.bf16 %v1726, %v1726
  %v1776 = vpack.c.bf16 %v1727, %v1727
  %v1777 = vpack.c.bf16 %v1728, %v1728
  %v1778 = vpack.c.bf16 %v1729, %v1729
  %v1779 = vpack.c.bf16 %v1730, %v1730
  %v1780 = vpack.c.bf16 %v1731, %v1731
  %v1781 = vpack.c.bf16 %v1732, %v1732
  %v1782 = vpack.c.bf16 %v1733, %v1733
  %v1783 = vpack.c.bf16 %v1734, %v1734
  %v1784 = vpack.c.bf16 %v1735, %v1735
  %v1785 = vpack.c.bf16 %v1736, %v1736
  %v1786 = vpack.c.bf16 %v1737, %v1737
  %v1787 = vpack.c.bf16 %v1738, %v1738
  %v1788 = vpack.c.bf16 %v1739, %v1739
  %v1789 = vpack.c.bf16 %v1740, %v1740
  %v1790 = vpack.c.bf16 %v1741, %v1741
  %v1791 = vpack.c.bf16 %v1742, %v1742
  %v1792 = vpack.c.bf16 %v1743, %v1743
  %v1793 = vpack.c.bf16 %v1744, %v1744
  %v1794 = vpack.c.bf16 %v1745, %v1745
  %v1795 = vpack.c.bf16 %v1746, %v1746
  %v1796 = vpack.c.bf16 %v1747, %v1747
  %v1797 = vpack.c.bf16 %v1748, %v1748
  %v1798 = vpack.c.bf16 %v1749, %v1749
  %v1799 = vpack.c.bf16 %v1750, %v1750
  %v1800 = vpack.c.bf16 %v1751, %v1751
  %v1801 = vpack.c.bf16 %v1752, %v1752
  %v1802 = vpack.c.bf16 %v1753, %v1753
  %vm1803 = vcmask 519168
  %1804 = vst.msk [vmem:[%s6] sm:$0xf] %vm1803, %v1754
  %1805 = vst.msk [vmem:[%s6 + $0x4] sm:$0xf] %vm1803, %v1755
  %1806 = vst.msk [vmem:[%s6 + $0x8] sm:$0xf] %vm1803, %v1756
  %1807 = vst.msk [vmem:[%s6 + $0xc] sm:$0xf] %vm1803, %v1757
  %1808 = vst.msk [vmem:[%s6 + $0x10] sm:$0xf] %vm1803, %v1758
  %1809 = vst.msk [vmem:[%s6 + $0x14] sm:$0xf] %vm1803, %v1759
  %1810 = vst.msk [vmem:[%s6 + $0x18] sm:$0xf] %vm1803, %v1760
  %1811 = vst.msk [vmem:[%s6 + $0x1c] sm:$0xf] %vm1803, %v1761
  %1812 = vst.msk [vmem:[%s6 + $0x20] sm:$0xf] %vm1803, %v1762
  %1813 = vst.msk [vmem:[%s6 + $0x24] sm:$0xf] %vm1803, %v1763
  %1814 = vst.msk [vmem:[%s6 + $0x28] sm:$0xf] %vm1803, %v1764
  %1815 = vst.msk [vmem:[%s6 + $0x2c] sm:$0xf] %vm1803, %v1765
  %1816 = vst.msk [vmem:[%s6 + $0x30] sm:$0xf] %vm1803, %v1766
  %1817 = vst.msk [vmem:[%s6 + $0x34] sm:$0xf] %vm1803, %v1767
  %1818 = vst.msk [vmem:[%s6 + $0x38] sm:$0xf] %vm1803, %v1768
  %1819 = vst.msk [vmem:[%s6 + $0x3c] sm:$0xf] %vm1803, %v1769
  %1820 = vst.msk [vmem:[%s6 + $0x40] sm:$0xf] %vm1803, %v1770
  %1821 = vst.msk [vmem:[%s6 + $0x44] sm:$0xf] %vm1803, %v1771
  %1822 = vst.msk [vmem:[%s6 + $0x48] sm:$0xf] %vm1803, %v1772
  %1823 = vst.msk [vmem:[%s6 + $0x4c] sm:$0xf] %vm1803, %v1773
  %1824 = vst.msk [vmem:[%s6 + $0x50] sm:$0xf] %vm1803, %v1774
  %1825 = vst.msk [vmem:[%s6 + $0x54] sm:$0xf] %vm1803, %v1775
  %1826 = vst.msk [vmem:[%s6 + $0x58] sm:$0xf] %vm1803, %v1776
  %1827 = vst.msk [vmem:[%s6 + $0x5c] sm:$0xf] %vm1803, %v1777
  %1828 = vst.msk [vmem:[%s6 + $0x60] sm:$0xf] %vm1803, %v1778
  %1829 = vst.msk [vmem:[%s6 + $0x64] sm:$0xf] %vm1803, %v1779
  %1830 = vst.msk [vmem:[%s6 + $0x68] sm:$0xf] %vm1803, %v1780
  %1831 = vst.msk [vmem:[%s6 + $0x6c] sm:$0xf] %vm1803, %v1781
  %1832 = vst.msk [vmem:[%s6 + $0x70] sm:$0xf] %vm1803, %v1782
  %1833 = vst.msk [vmem:[%s6 + $0x74] sm:$0xf] %vm1803, %v1783
  %1834 = vst.msk [vmem:[%s6 + $0x78] sm:$0xf] %vm1803, %v1784
  %1835 = vst.msk [vmem:[%s6 + $0x7c] sm:$0xf] %vm1803, %v1785
  %1836 = vst.msk [vmem:[%s6 + $0x80] sm:$0xf] %vm1803, %v1786
  %1837 = vst.msk [vmem:[%s6 + $0x84] sm:$0xf] %vm1803, %v1787
  %1838 = vst.msk [vmem:[%s6 + $0x88] sm:$0xf] %vm1803, %v1788
  %1839 = vst.msk [vmem:[%s6 + $0x8c] sm:$0xf] %vm1803, %v1789
  %1840 = vst.msk [vmem:[%s6 + $0x90] sm:$0xf] %vm1803, %v1790
  %1841 = vst.msk [vmem:[%s6 + $0x94] sm:$0xf] %vm1803, %v1791
  %1842 = vst.msk [vmem:[%s6 + $0x98] sm:$0xf] %vm1803, %v1792
  %1843 = vst.msk [vmem:[%s6 + $0x9c] sm:$0xf] %vm1803, %v1793
  %1844 = vst.msk [vmem:[%s6 + $0xa0] sm:$0xf] %vm1803, %v1794
  %1845 = vst.msk [vmem:[%s6 + $0xa4] sm:$0xf] %vm1803, %v1795
  %1846 = vst.msk [vmem:[%s6 + $0xa8] sm:$0xf] %vm1803, %v1796
  %1847 = vst.msk [vmem:[%s6 + $0xac] sm:$0xf] %vm1803, %v1797
  %1848 = vst.msk [vmem:[%s6 + $0xb0] sm:$0xf] %vm1803, %v1798
  %1849 = vst.msk [vmem:[%s6 + $0xb4] sm:$0xf] %vm1803, %v1799
  %1850 = vst.msk [vmem:[%s6 + $0xb8] sm:$0xf] %vm1803, %v1800
  %1851 = vst.msk [vmem:[%s6 + $0xbc] sm:$0xf] %vm1803, %v1801
  %1852 = vst.msk [vmem:[%s6 + $0xc0] sm:$0xf] %vm1803, %v1802
  // Predicated region
  $region26: #{forward.3} parent=0 // pred_check
    _
  $region27: #{forward.3} parent=0 // pred_check_branch
    %1854 = sbr.rel (0) target = $region29
  $region28: #{forward.3} parent=0 // pred_region
    _
  $region29: #{forward.3} parent=0 // pred_fallthru
    _
  // Predicated region
  $region30: #{forward.3} parent=0 // pred_check
    _
  $region31: #{forward.3} parent=0 // pred_check_branch
    %1856 = sbr.rel (0) target = $region33
  $region32: #{forward.3} parent=0 // pred_region
    _
  $region33: #{forward.3} parent=0 // pred_fallthru
    _

// kernel: forward.5
$region0: #{forward.5}
  #allocation0 [shape = 'u32[]', space=smem, size = 0x4, offset = 0x4, fixed_abs, tag = 'smem constant byte address 0x4 - core index']
  #allocation1 [shape = 'u32[72,128]{1,0:T(1,128)}', space=vmem, size = 0x9000, scoped, tag = 'internal scratch']
  %s0 = inlined_call_operand.vmem [shape: bf16[2,750], index: 0, kind: input, shape index: {}]
  %s1 = inlined_call_operand.vmem [shape: bf16[750,128], index: 1, kind: input, shape index: {}]
  %s2 = inlined_call_operand.vmem [shape: f32[1,128], index: 2, kind: input, shape index: {}]
  %s3 = inlined_call_operand.vmem [shape: bf16[128,10], index: 3, kind: input, shape index: {}]
  %s4 = inlined_call_operand.vmem [shape: f32[1,10], index: 4, kind: input, shape index: {}]
  %s5 = inlined_call_operand.hbm [shape: f32[2,10], index: 5, kind: output, shape index: {}]
  %s6 = sld [smem:[#allocation0]]
  $region30: #{forward.5} parent=0
    _
  %s8 = ssub.s32 1, %s6
  %s9 = scalar_select 0, %s8, %s6
  $region1: #{forward.5} parent=0
    #allocation2 [shape = 'u8[1024]{0}', space=vmem, size = 0x400, scoped, tag = 'output window, operand 0, single buffered']
    #allocation3 [shape = 's32[1]{0}', space=sflag, size = 0x4, scoped, tag = 'scoped memory for forward.5']
    %10 = vsyncpa [#allocation3], 0
    // Predicated region
    $region2: #{forward.5} parent=1 // pred_check
      _
    $region3: #{forward.5} parent=1 // pred_check_branch
      %12 = sbr.rel (0) target = $region5
    $region4: #{forward.5} parent=1 // pred_region
      _
    $region5: #{forward.5} parent=1 // pred_fallthru
      _
    // Predicated region
    $region6: #{forward.5} parent=1 // pred_check
      _
    $region7: #{forward.5} parent=1 // pred_check_branch
      %14 = sbr.rel (0) target = $region9
    $region8: #{forward.5} parent=1 // pred_region
      _
    $region9: #{forward.5} parent=1 // pred_fallthru
      _
    // Predicated region
    $region10: #{forward.5} parent=1 // pred_check
      _
    $region11: #{forward.5} parent=1 // pred_check_branch
      %16 = sbr.rel (0) target = $region13
    $region12: #{forward.5} parent=1 // pred_region
      _
    $region13: #{forward.5} parent=1 // pred_fallthru
      _
    // Predicated region
    $region14: #{forward.5} parent=1 // pred_check
      _
    $region15: #{forward.5} parent=1 // pred_check_branch
      %18 = sbr.rel (0) target = $region17
    $region16: #{forward.5} parent=1 // pred_region
      _
    $region17: #{forward.5} parent=1 // pred_fallthru
      _
    // Predicated region
    $region18: #{forward.5} parent=1 // pred_check
      _
    $region19: #{forward.5} parent=1 // pred_check_branch
      %20 = sbr.rel (0) target = $region21
    $region20: #{forward.5} parent=1 // pred_region
      _
    $region21: #{forward.5} parent=1 // pred_fallthru
      _
    %v22 = vld [vmem:[%s0] sm:$0x3f]
    %v23 = vld [vmem:[%s1] sm:$0xf]
    %v24 = vld [vmem:[%s1 + $0x4] sm:$0xf]
    %v25 = vld [vmem:[%s1 + $0x8] sm:$0xf]
    %v26 = vld [vmem:[%s1 + $0xc] sm:$0xf]
    %v27 = vld [vmem:[%s1 + $0x10] sm:$0xf]
    %v28 = vld [vmem:[%s1 + $0x14] sm:$0xf]
    %v29 = vld [vmem:[%s1 + $0x18] sm:$0xf]
    %v30 = vld [vmem:[%s1 + $0x1c] sm:$0xf]
    %v31 = vld [vmem:[%s1 + $0x20] sm:$0xf]
    %v32 = vld [vmem:[%s1 + $0x24] sm:$0xf]
    %v33 = vld [vmem:[%s1 + $0x28] sm:$0xf]
    %v34 = vld [vmem:[%s1 + $0x2c] sm:$0xf]
    %v35 = vld [vmem:[%s1 + $0x30] sm:$0xf]
    %v36 = vld [vmem:[%s1 + $0x34] sm:$0xf]
    %v37 = vld [vmem:[%s1 + $0x38] sm:$0xf]
    %v38 = vld [vmem:[%s1 + $0x3c] sm:$0xf]
    %v39 = vld [vmem:[%s1 + $0x40] sm:$0xf]
    %v40 = vld [vmem:[%s1 + $0x44] sm:$0xf]
    %v41 = vld [vmem:[%s1 + $0x48] sm:$0xf]
    %v42 = vld [vmem:[%s1 + $0x4c] sm:$0xf]
    %v43 = vld [vmem:[%s1 + $0x50] sm:$0xf]
    %v44 = vld [vmem:[%s1 + $0x54] sm:$0xf]
    %v45 = vld [vmem:[%s1 + $0x58] sm:$0xf]
    %v46 = vld [vmem:[%s1 + $0x5c] sm:$0xf]
    %v47 = vld [vmem:[%s1 + $0x60] sm:$0xf]
    %v48 = vld [vmem:[%s1 + $0x64] sm:$0xf]
    %v49 = vld [vmem:[%s1 + $0x68] sm:$0xf]
    %v50 = vld [vmem:[%s1 + $0x6c] sm:$0xf]
    %v51 = vld [vmem:[%s1 + $0x70] sm:$0xf]
    %v52 = vld [vmem:[%s1 + $0x74] sm:$0xf]
    %v53 = vld [vmem:[%s1 + $0x78] sm:$0xf]
    %v54 = vld [vmem:[%s1 + $0x7c] sm:$0xf]
    %v55 = vld [vmem:[%s1 + $0x80] sm:$0xf]
    %v56 = vld [vmem:[%s1 + $0x84] sm:$0xf]
    %v57 = vld [vmem:[%s1 + $0x88] sm:$0xf]
    %v58 = vld [vmem:[%s1 + $0x8c] sm:$0xf]
    %v59 = vld [vmem:[%s1 + $0x90] sm:$0xf]
    %v60 = vld [vmem:[%s1 + $0x94] sm:$0xf]
    %v61 = vld [vmem:[%s1 + $0x98] sm:$0xf]
    %v62 = vld [vmem:[%s1 + $0x9c] sm:$0xf]
    %v63 = vld [vmem:[%s1 + $0xa0] sm:$0xf]
    %v64 = vld [vmem:[%s1 + $0xa4] sm:$0xf]
    %v65 = vld [vmem:[%s1 + $0xa8] sm:$0xf]
    %v66 = vld [vmem:[%s1 + $0xac] sm:$0xf]
    %v67 = vld [vmem:[%s1 + $0xb0] sm:$0xf]
    %v68 = vld [vmem:[%s1 + $0xb4] sm:$0xf]
    %v69 = vld [vmem:[%s1 + $0xb8] sm:$0xf]
    %v70 = vld [vmem:[%s1 + $0xbc] sm:$0xf]
    %v71 = vld [vmem:[%s1 + $0xc0] sm:$0xf]
    %v72 = vld [vmem:[%s1 + $0xc4] sm:$0xf]
    %v73 = vld [vmem:[%s1 + $0xc8] sm:$0xf]
    %v74 = vld [vmem:[%s1 + $0xcc] sm:$0xf]
    %v75 = vld [vmem:[%s1 + $0xd0] sm:$0xf]
    %v76 = vld [vmem:[%s1 + $0xd4] sm:$0xf]
    %v77 = vld [vmem:[%s1 + $0xd8] sm:$0xf]
    %v78 = vld [vmem:[%s1 + $0xdc] sm:$0xf]
    %v79 = vld [vmem:[%s1 + $0xe0] sm:$0xf]
    %v80 = vld [vmem:[%s1 + $0xe4] sm:$0xf]
    %v81 = vld [vmem:[%s1 + $0xe8] sm:$0xf]
    %v82 = vld [vmem:[%s1 + $0xec] sm:$0xf]
    %v83 = vld [vmem:[%s1 + $0xf0] sm:$0xf]
    %v84 = vld [vmem:[%s1 + $0xf4] sm:$0xf]
    %v85 = vld [vmem:[%s1 + $0xf8] sm:$0xf]
    %v86 = vld [vmem:[%s1 + $0xfc] sm:$0xf]
    %v87 = vld [vmem:[%s1 + $0x100] sm:$0xf]
    %v88 = vld [vmem:[%s1 + $0x104] sm:$0xf]
    %v89 = vld [vmem:[%s1 + $0x108] sm:$0xf]
    %v90 = vld [vmem:[%s1 + $0x10c] sm:$0xf]
    %v91 = vld [vmem:[%s1 + $0x110] sm:$0xf]
    %v92 = vld [vmem:[%s1 + $0x114] sm:$0xf]
    %v93 = vld [vmem:[%s1 + $0x118] sm:$0xf]
    %v94 = vld [vmem:[%s1 + $0x11c] sm:$0xf]
    %v95 = vld [vmem:[%s1 + $0x120] sm:$0xf]
    %v96 = vld [vmem:[%s1 + $0x124] sm:$0xf]
    %v97 = vld [vmem:[%s1 + $0x128] sm:$0xf]
    %v98 = vld [vmem:[%s1 + $0x12c] sm:$0xf]
    %v99 = vld [vmem:[%s1 + $0x130] sm:$0xf]
    %v100 = vld [vmem:[%s1 + $0x134] sm:$0xf]
    %v101 = vld [vmem:[%s1 + $0x138] sm:$0xf]
    %v102 = vld [vmem:[%s1 + $0x13c] sm:$0xf]
    %v103 = vld [vmem:[%s1 + $0x140] sm:$0xf]
    %v104 = vld [vmem:[%s1 + $0x144] sm:$0xf]
    %v105 = vld [vmem:[%s1 + $0x148] sm:$0xf]
    %v106 = vld [vmem:[%s1 + $0x14c] sm:$0xf]
    %v107 = vld [vmem:[%s1 + $0x150] sm:$0xf]
    %v108 = vld [vmem:[%s1 + $0x154] sm:$0xf]
    %v109 = vld [vmem:[%s1 + $0x158] sm:$0xf]
    %v110 = vld [vmem:[%s1 + $0x15c] sm:$0xf]
    %v111 = vld [vmem:[%s1 + $0x160] sm:$0xf]
    %v112 = vld [vmem:[%s1 + $0x164] sm:$0xf]
    %v113 = vld [vmem:[%s1 + $0x168] sm:$0xf]
    %v114 = vld [vmem:[%s1 + $0x16c] sm:$0xf]
    %v115 = vld [vmem:[%s1 + $0x170] sm:$0xf]
    %v116 = vld [vmem:[%s1 + $0x174] sm:$0x7]
    %v117 = vld [vmem:[%s2] sm:$0x1]
    %v119 = vperm.slane %v117, 0
    %122 = vst [vmem:[#allocation1] ss:$9 sm:$0xff] %v22
    %v123 = vld [vmem:[#allocation1] sm:$0xff]
    %v124 = vld [vmem:[#allocation1 + $0x9] sm:$0xff]
    %v125 = vld [vmem:[#allocation1 + $0x12] sm:$0xff]
    %v126 = vld [vmem:[#allocation1 + $0x1b] sm:$0xff]
    %v127 = vld [vmem:[#allocation1 + $0x24] sm:$0xff]
    %v128 = vld [vmem:[#allocation1 + $0x2d] sm:$0xff]
    %v228 = vunpack.c.l.b16 %v23
    %v229 = vunpack.c.l.b16 %v24
    %v230 = vunpack.c.l.b16 %v25
    %v231 = vunpack.c.l.b16 %v26
    %v232 = vunpack.c.l.b16 %v27
    %v233 = vunpack.c.l.b16 %v28
    %v234 = vunpack.c.l.b16 %v29
    %v235 = vunpack.c.l.b16 %v30
    %v236 = vunpack.c.l.b16 %v31
    %v237 = vunpack.c.l.b16 %v32
    %v238 = vunpack.c.l.b16 %v33
    %v239 = vunpack.c.l.b16 %v34
    %v240 = vunpack.c.l.b16 %v35
    %v241 = vunpack.c.l.b16 %v36
    %v242 = vunpack.c.l.b16 %v37
    %v243 = vunpack.c.l.b16 %v38
    %v244 = vunpack.c.l.b16 %v39
    %v245 = vunpack.c.l.b16 %v40
    %v246 = vunpack.c.l.b16 %v41
    %v247 = vunpack.c.l.b16 %v42
    %v248 = vunpack.c.l.b16 %v43
    %v249 = vunpack.c.l.b16 %v44
    %v250 = vunpack.c.l.b16 %v45
    %v251 = vunpack.c.l.b16 %v46
    %v252 = vunpack.c.l.b16 %v47
    %v253 = vunpack.c.l.b16 %v48
    %v254 = vunpack.c.l.b16 %v49
    %v255 = vunpack.c.l.b16 %v50
    %v256 = vunpack.c.l.b16 %v51
    %v257 = vunpack.c.l.b16 %v52
    %v258 = vunpack.c.l.b16 %v53
    %v259 = vunpack.c.l.b16 %v54
    %v260 = vunpack.c.l.b16 %v55
    %v261 = vunpack.c.l.b16 %v56
    %v262 = vunpack.c.l.b16 %v57
    %v263 = vunpack.c.l.b16 %v58
    %v264 = vunpack.c.l.b16 %v59
    %v265 = vunpack.c.l.b16 %v60
    %v266 = vunpack.c.l.b16 %v61
    %v267 = vunpack.c.l.b16 %v62
    %v268 = vunpack.c.l.b16 %v63
    %v269 = vunpack.c.l.b16 %v64
    %v270 = vunpack.c.l.b16 %v65
    %v271 = vunpack.c.l.b16 %v66
    %v272 = vunpack.c.l.b16 %v67
    %v273 = vunpack.c.l.b16 %v68
    %v274 = vunpack.c.l.b16 %v69
    %v275 = vunpack.c.l.b16 %v70
    %v276 = vunpack.c.l.b16 %v71
    %v277 = vunpack.c.l.b16 %v72
    %v278 = vunpack.c.l.b16 %v73
    %v279 = vunpack.c.l.b16 %v74
    %v280 = vunpack.c.l.b16 %v75
    %v281 = vunpack.c.l.b16 %v76
    %v282 = vunpack.c.l.b16 %v77
    %v283 = vunpack.c.l.b16 %v78
    %v284 = vunpack.c.l.b16 %v79
    %v285 = vunpack.c.l.b16 %v80
    %v286 = vunpack.c.l.b16 %v81
    %v287 = vunpack.c.l.b16 %v82
    %v288 = vunpack.c.l.b16 %v83
    %v289 = vunpack.c.l.b16 %v84
    %v290 = vunpack.c.l.b16 %v85
    %v291 = vunpack.c.l.b16 %v86
    %v292 = vunpack.c.l.b16 %v87
    %v293 = vunpack.c.l.b16 %v88
    %v294 = vunpack.c.l.b16 %v89
    %v295 = vunpack.c.l.b16 %v90
    %v296 = vunpack.c.l.b16 %v91
    %v297 = vunpack.c.l.b16 %v92
    %v298 = vunpack.c.l.b16 %v93
    %v299 = vunpack.c.l.b16 %v94
    %v300 = vunpack.c.l.b16 %v95
    %v301 = vunpack.c.l.b16 %v96
    %v302 = vunpack.c.l.b16 %v97
    %v303 = vunpack.c.l.b16 %v98
    %v304 = vunpack.c.l.b16 %v99
    %v305 = vunpack.c.l.b16 %v100
    %v306 = vunpack.c.l.b16 %v101
    %v307 = vunpack.c.l.b16 %v102
    %v308 = vunpack.c.l.b16 %v103
    %v309 = vunpack.c.l.b16 %v104
    %v310 = vunpack.c.l.b16 %v105
    %v311 = vunpack.c.l.b16 %v106
    %v312 = vunpack.c.l.b16 %v107
    %v313 = vunpack.c.l.b16 %v108
    %v314 = vunpack.c.l.b16 %v109
    %v315 = vunpack.c.l.b16 %v110
    %v316 = vunpack.c.l.b16 %v111
    %v317 = vunpack.c.l.b16 %v112
    %v318 = vunpack.c.l.b16 %v113
    %v319 = vunpack.c.l.b16 %v114
    %v320 = vunpack.c.l.b16 %v115
    %v321 = vunpack.c.l.b16 %v116
    %v322 = vpack.c.b16 %v229, %v228
    %v323 = vpack.c.b16 %v231, %v230
    %v324 = vpack.c.b16 %v233, %v232
    %v325 = vpack.c.b16 %v235, %v234
    %v326 = vpack.c.b16 %v237, %v236
    %v327 = vpack.c.b16 %v239, %v238
    %v328 = vpack.c.b16 %v241, %v240
    %v329 = vpack.c.b16 %v243, %v242
    %v330 = vpack.c.b16 %v245, %v244
    %v331 = vpack.c.b16 %v247, %v246
    %v332 = vpack.c.b16 %v249, %v248
    %v333 = vpack.c.b16 %v251, %v250
    %v334 = vpack.c.b16 %v253, %v252
    %v335 = vpack.c.b16 %v255, %v254
    %v336 = vpack.c.b16 %v257, %v256
    %v337 = vpack.c.b16 %v259, %v258
    %v338 = vpack.c.b16 %v261, %v260
    %v339 = vpack.c.b16 %v263, %v262
    %v340 = vpack.c.b16 %v265, %v264
    %v341 = vpack.c.b16 %v267, %v266
    %v342 = vpack.c.b16 %v269, %v268
    %v343 = vpack.c.b16 %v271, %v270
    %v344 = vpack.c.b16 %v273, %v272
    %v345 = vpack.c.b16 %v275, %v274
    %v346 = vpack.c.b16 %v277, %v276
    %v347 = vpack.c.b16 %v279, %v278
    %v348 = vpack.c.b16 %v281, %v280
    %v349 = vpack.c.b16 %v283, %v282
    %v350 = vpack.c.b16 %v285, %v284
    %v351 = vpack.c.b16 %v287, %v286
    %v352 = vpack.c.b16 %v289, %v288
    %v353 = vpack.c.b16 %v291, %v290
    %v354 = vpack.c.b16 %v293, %v292
    %v355 = vpack.c.b16 %v295, %v294
    %v356 = vpack.c.b16 %v297, %v296
    %v357 = vpack.c.b16 %v299, %v298
    %v358 = vpack.c.b16 %v301, %v300
    %v359 = vpack.c.b16 %v303, %v302
    %v360 = vpack.c.b16 %v305, %v304
    %v361 = vpack.c.b16 %v307, %v306
    %v362 = vpack.c.b16 %v309, %v308
    %v363 = vpack.c.b16 %v311, %v310
    %v364 = vpack.c.b16 %v313, %v312
    %v365 = vpack.c.b16 %v315, %v314
    %v366 = vpack.c.b16 %v317, %v316
    %v367 = vpack.c.b16 %v319, %v318
    %v368 = vpack.c.b16 %v321, %v320
    %vm415 = vcmask 900096
    %v416 = vsel %vm415, %v128, 0
    %vm418 = vcmask 1046528
    %v420 = vsel %vm418, %v368, 0
    %422 = vmatpush.bf16.msra.mxu0 %v329
    %423 = vmatpush.bf16.msra.mxu0 %v328
    %424 = vmatpush.bf16.msra.mxu0 %v327
    %425 = vmatpush.bf16.msra.mxu0 %v326
    %426 = vmatpush.bf16.msra.mxu0 %v325
    %427 = vmatpush.bf16.msra.mxu0 %v324
    %428 = vmatpush.bf16.msra.mxu0 %v323
    %429 = vmatpush.bf16.msra.mxu0 %v322
    %430 = vmatmul.bf16.gmra.mxu0 %v123
    %v431 = vpop.f32.mrf.mxu0
    %v432 = vadd.f32 %v119, %v431
    %v433 = vpop.f32.mrf.mxu0
    %434 = vdwg.mxu0
    %435 = vmatpush.bf16.msra.mxu0 %v337
    %436 = vmatpush.bf16.msra.mxu0 %v336
    %437 = vmatpush.bf16.msra.mxu0 %v335
    %438 = vmatpush.bf16.msra.mxu0 %v334
    %439 = vmatpush.bf16.msra.mxu0 %v333
    %440 = vmatpush.bf16.msra.mxu0 %v332
    %441 = vmatpush.bf16.msra.mxu0 %v331
    %442 = vmatpush.bf16.msra.mxu0 %v330
    %443 = vmatmul.bf16.gmra.mxu0 %v124
    %v444 = vpop.f32.mrf.mxu0
    %v445 = vadd.f32 %v432, %v444
    %v446 = vpop.f32.mrf.mxu0
    %447 = vdwg.mxu0
    %448 = vmatpush.bf16.msra.mxu0 %v345
    %449 = vmatpush.bf16.msra.mxu0 %v344
    %450 = vmatpush.bf16.msra.mxu0 %v343
    %451 = vmatpush.bf16.msra.mxu0 %v342
    %452 = vmatpush.bf16.msra.mxu0 %v341
    %453 = vmatpush.bf16.msra.mxu0 %v340
    %454 = vmatpush.bf16.msra.mxu0 %v339
    %455 = vmatpush.bf16.msra.mxu0 %v338
    %456 = vmatmul.bf16.gmra.mxu0 %v125
    %v457 = vpop.f32.mrf.mxu0
    %v458 = vadd.f32 %v445, %v457
    %v459 = vpop.f32.mrf.mxu0
    %460 = vdwg.mxu0
    %461 = vmatpush.bf16.msra.mxu0 %v353
    %462 = vmatpush.bf16.msra.mxu0 %v352
    %463 = vmatpush.bf16.msra.mxu0 %v351
    %464 = vmatpush.bf16.msra.mxu0 %v350
    %465 = vmatpush.bf16.msra.mxu0 %v349
    %466 = vmatpush.bf16.msra.mxu0 %v348
    %467 = vmatpush.bf16.msra.mxu0 %v347
    %468 = vmatpush.bf16.msra.mxu0 %v346
    %469 = vmatmul.bf16.gmra.mxu0 %v126
    %v470 = vpop.f32.mrf.mxu0
    %v471 = vadd.f32 %v458, %v470
    %v472 = vpop.f32.mrf.mxu0
    %473 = vdwg.mxu0
    %474 = vmatpush.bf16.msra.mxu0 %v361
    %475 = vmatpush.bf16.msra.mxu0 %v360
    %476 = vmatpush.bf16.msra.mxu0 %v359
    %477 = vmatpush.bf16.msra.mxu0 %v358
    %478 = vmatpush.bf16.msra.mxu0 %v357
    %479 = vmatpush.bf16.msra.mxu0 %v356
    %480 = vmatpush.bf16.msra.mxu0 %v355
    %481 = vmatpush.bf16.msra.mxu0 %v354
    %482 = vmatmul.bf16.gmra.mxu0 %v127
    %v483 = vpop.f32.mrf.mxu0
    %v484 = vadd.f32 %v471, %v483
    %v485 = vpop.f32.mrf.mxu0
    %486 = vdwg.mxu0
    %487 = vmatpush.bf16.msra.mxu0 0
    %488 = vmatpush.bf16.msra.mxu0 %v420
    %489 = vmatpush.bf16.msra.mxu0 %v367
    %490 = vmatpush.bf16.msra.mxu0 %v366
    %491 = vmatpush.bf16.msra.mxu0 %v365
    %492 = vmatpush.bf16.msra.mxu0 %v364
    %493 = vmatpush.bf16.msra.mxu0 %v363
    %494 = vmatpush.bf16.msra.mxu0 %v362
    %495 = vmatmul.bf16.gmra.mxu0 %v416
    %v496 = vpop.f32.mrf.mxu0
    %v497 = vadd.f32 %v484, %v496
    %v498 = vpop.f32.mrf.mxu0
    %499 = vdwg.mxu0
    %v500 = vmax.f32 %v497, 0.0
    %v501 = vpack.c.bf16 %v500, %v500
    %v502 = vld [vmem:[%s3] sm:$0xf]
    %v503 = vld [vmem:[%s3 + $0x4] sm:$0xf]
    %v504 = vld [vmem:[%s3 + $0x8] sm:$0xf]
    %v505 = vld [vmem:[%s3 + $0xc] sm:$0xf]
    %v506 = vld [vmem:[%s3 + $0x10] sm:$0xf]
    %v507 = vld [vmem:[%s3 + $0x14] sm:$0xf]
    %v508 = vld [vmem:[%s3 + $0x18] sm:$0xf]
    %v509 = vld [vmem:[%s3 + $0x1c] sm:$0xf]
    %v510 = vld [vmem:[%s3 + $0x20] sm:$0xf]
    %v511 = vld [vmem:[%s3 + $0x24] sm:$0xf]
    %v512 = vld [vmem:[%s3 + $0x28] sm:$0xf]
    %v513 = vld [vmem:[%s3 + $0x2c] sm:$0xf]
    %v514 = vld [vmem:[%s3 + $0x30] sm:$0xf]
    %v515 = vld [vmem:[%s3 + $0x34] sm:$0xf]
    %v516 = vld [vmem:[%s3 + $0x38] sm:$0xf]
    %v517 = vld [vmem:[%s3 + $0x3c] sm:$0xf]
    %v518 = vld [vmem:[%s4] sm:$0x1]
    %v520 = vperm.slane %v518, 0
    %v538 = vunpack.c.l.b16 %v502
    %v539 = vunpack.c.l.b16 %v503
    %v540 = vunpack.c.l.b16 %v504
    %v541 = vunpack.c.l.b16 %v505
    %v542 = vunpack.c.l.b16 %v506
    %v543 = vunpack.c.l.b16 %v507
    %v544 = vunpack.c.l.b16 %v508
    %v545 = vunpack.c.l.b16 %v509
    %v546 = vunpack.c.l.b16 %v510
    %v547 = vunpack.c.l.b16 %v511
    %v548 = vunpack.c.l.b16 %v512
    %v549 = vunpack.c.l.b16 %v513
    %v550 = vunpack.c.l.b16 %v514
    %v551 = vunpack.c.l.b16 %v515
    %v552 = vunpack.c.l.b16 %v516
    %v553 = vunpack.c.l.b16 %v517
    %v554 = vpack.c.b16 %v539, %v538
    %v555 = vpack.c.b16 %v541, %v540
    %v556 = vpack.c.b16 %v543, %v542
    %v557 = vpack.c.b16 %v545, %v544
    %v558 = vpack.c.b16 %v547, %v546
    %v559 = vpack.c.b16 %v549, %v548
    %v560 = vpack.c.b16 %v551, %v550
    %v561 = vpack.c.b16 %v553, %v552
    %570 = vmatpush.bf16.msra.mxu0 %v561
    %571 = vmatpush.bf16.msra.mxu0 %v560
    %572 = vmatpush.bf16.msra.mxu0 %v559
    %573 = vmatpush.bf16.msra.mxu0 %v558
    %574 = vmatpush.bf16.msra.mxu0 %v557
    %575 = vmatpush.bf16.msra.mxu0 %v556
    %576 = vmatpush.bf16.msra.mxu0 %v555
    %577 = vmatpush.bf16.msra.mxu0 %v554
    %578 = vmatmul.bf16.gmra.mxu0 %v501
    %v579 = vpop.f32.mrf.mxu0
    %v580 = vadd.f32 %v520, %v579
    %v581 = vpop.f32.mrf.mxu0
    %582 = vdwg.mxu0
    %v583 = vmax.f32 %v580, 0.0
    %vm584 = vcmask 74752
    %585 = vst.msk [vmem:[#allocation2] sm:$0x3] %vm584, %v583
    // Predicated region
    $region22: #{forward.5} parent=1 // pred_check
      _
    $region23: #{forward.5} parent=1 // pred_check_branch
      %587 = sbr.rel (0) target = $region25
    $region24: #{forward.5} parent=1 // pred_region
      %589 = vsyncadd [#allocation3], 0
      %s591 = sshll.u32 [#allocation2], 4
      %s592 = int_to_ptr.vmem [resolvable:$true] %s591
      %s593 = sshll.u32 %s5, 4
      %s594 = int_to_ptr.hbm [resolvable:$true] %s593
      %596 = dma.vmem_to_hbm [thread:$0]  %s592, 32, %s594, [#allocation3]
    $region25: #{forward.5} parent=1 // pred_fallthru
      _
    // Predicated region
    $region26: #{forward.5} parent=1 // pred_check
      _
    $region27: #{forward.5} parent=1 // pred_check_branch
      %598 = sbr.rel (0) target = $region29
    $region28: #{forward.5} parent=1 // pred_region
      %600 = dma.done [#allocation3], 32
    $region29: #{forward.5} parent=1 // pred_fallthru
      _
    %601 = vsyncpa [#allocation3], 1

// kernel: forward.4
$region0: #{forward.4}
  #allocation0 [shape = 'u32[]', space=smem, size = 0x4, offset = 0x4, fixed_abs, tag = 'smem constant byte address 0x4 - core index']
  #allocation1 [shape = 'u32[72,128]{1,0:T(1,128)}', space=vmem, size = 0x9000, scoped, tag = 'internal scratch']
  %s0 = inlined_call_operand.vmem [shape: bf16[50,1600], index: 0, kind: input, shape index: {}]
  %s1 = inlined_call_operand.vmem [shape: bf16[50,1600], index: 1, kind: input, shape index: {}]
  %s2 = inlined_call_operand.vmem [shape: bf16[50,1600], index: 2, kind: input, shape index: {}]
  %s3 = inlined_call_operand.vmem [shape: bf16[50,1600], index: 3, kind: input, shape index: {}]
  %s4 = inlined_call_operand.vmem [shape: bf16[1600,30], index: 4, kind: input, shape index: {}]
  %s5 = inlined_call_operand.vmem [shape: f32[1,30], index: 5, kind: input, shape index: {}]
  %s6 = inlined_call_operand.vmem [shape: bf16[50,30], index: 6, kind: output, shape index: {}]
  %s7 = sld [smem:[#allocation0]]
  $region34: #{forward.4} parent=0
    _
  %s9 = ssub.s32 1, %s7
  %s10 = scalar_select 0, %s9, %s7
  // Predicated region
  $region2: #{forward.4} parent=0 // pred_check
    _
  $region3: #{forward.4} parent=0 // pred_check_branch
    %12 = sbr.rel (0) target = $region5
  $region4: #{forward.4} parent=0 // pred_region
    _
  $region5: #{forward.4} parent=0 // pred_fallthru
    _
  // Predicated region
  $region6: #{forward.4} parent=0 // pred_check
    _
  $region7: #{forward.4} parent=0 // pred_check_branch
    %14 = sbr.rel (0) target = $region9
  $region8: #{forward.4} parent=0 // pred_region
    _
  $region9: #{forward.4} parent=0 // pred_fallthru
    _
  // Predicated region
  $region10: #{forward.4} parent=0 // pred_check
    _
  $region11: #{forward.4} parent=0 // pred_check_branch
    %16 = sbr.rel (0) target = $region13
  $region12: #{forward.4} parent=0 // pred_region
    _
  $region13: #{forward.4} parent=0 // pred_fallthru
    _
  // Predicated region
  $region14: #{forward.4} parent=0 // pred_check
    _
  $region15: #{forward.4} parent=0 // pred_check_branch
    %18 = sbr.rel (0) target = $region17
  $region16: #{forward.4} parent=0 // pred_region
    _
  $region17: #{forward.4} parent=0 // pred_fallthru
    _
  // Predicated region
  $region18: #{forward.4} parent=0 // pred_check
    _
  $region19: #{forward.4} parent=0 // pred_check_branch
    %20 = sbr.rel (0) target = $region21
  $region20: #{forward.4} parent=0 // pred_region
    _
  $region21: #{forward.4} parent=0 // pred_fallthru
    _
  // Predicated region
  $region22: #{forward.4} parent=0 // pred_check
    _
  $region23: #{forward.4} parent=0 // pred_check_branch
    %22 = sbr.rel (0) target = $region25
  $region24: #{forward.4} parent=0 // pred_region
    _
  $region25: #{forward.4} parent=0 // pred_fallthru
    _
  %v24 = vld [vmem:[%s4] sm:$0xf]
  %v25 = vld [vmem:[%s4 + $0x4] sm:$0xf]
  %v26 = vld [vmem:[%s4 + $0x8] sm:$0xf]
  %v27 = vld [vmem:[%s4 + $0xc] sm:$0xf]
  %v28 = vld [vmem:[%s4 + $0x10] sm:$0xf]
  %v29 = vld [vmem:[%s4 + $0x14] sm:$0xf]
  %v30 = vld [vmem:[%s4 + $0x18] sm:$0xf]
  %v31 = vld [vmem:[%s4 + $0x1c] sm:$0xf]
  %v32 = vld [vmem:[%s4 + $0x20] sm:$0xf]
  %v33 = vld [vmem:[%s4 + $0x24] sm:$0xf]
  %v34 = vld [vmem:[%s4 + $0x28] sm:$0xf]
  %v35 = vld [vmem:[%s4 + $0x2c] sm:$0xf]
  %v36 = vld [vmem:[%s4 + $0x30] sm:$0xf]
  %v37 = vld [vmem:[%s4 + $0x34] sm:$0xf]
  %v38 = vld [vmem:[%s4 + $0x38] sm:$0xf]
  %v39 = vld [vmem:[%s4 + $0x3c] sm:$0xf]
  %v40 = vld [vmem:[%s4 + $0x40] sm:$0xf]
  %v41 = vld [vmem:[%s4 + $0x44] sm:$0xf]
  %v42 = vld [vmem:[%s4 + $0x48] sm:$0xf]
  %v43 = vld [vmem:[%s4 + $0x4c] sm:$0xf]
  %v44 = vld [vmem:[%s4 + $0x50] sm:$0xf]
  %v45 = vld [vmem:[%s4 + $0x54] sm:$0xf]
  %v46 = vld [vmem:[%s4 + $0x58] sm:$0xf]
  %v47 = vld [vmem:[%s4 + $0x5c] sm:$0xf]
  %v48 = vld [vmem:[%s4 + $0x60] sm:$0xf]
  %v49 = vld [vmem:[%s4 + $0x64] sm:$0xf]
  %v50 = vld [vmem:[%s4 + $0x68] sm:$0xf]
  %v51 = vld [vmem:[%s4 + $0x6c] sm:$0xf]
  %v52 = vld [vmem:[%s4 + $0x70] sm:$0xf]
  %v53 = vld [vmem:[%s4 + $0x74] sm:$0xf]
  %v54 = vld [vmem:[%s4 + $0x78] sm:$0xf]
  %v55 = vld [vmem:[%s4 + $0x7c] sm:$0xf]
  %v56 = vld [vmem:[%s4 + $0x80] sm:$0xf]
  %v57 = vld [vmem:[%s4 + $0x84] sm:$0xf]
  %v58 = vld [vmem:[%s4 + $0x88] sm:$0xf]
  %v59 = vld [vmem:[%s4 + $0x8c] sm:$0xf]
  %v60 = vld [vmem:[%s4 + $0x90] sm:$0xf]
  %v61 = vld [vmem:[%s4 + $0x94] sm:$0xf]
  %v62 = vld [vmem:[%s4 + $0x98] sm:$0xf]
  %v63 = vld [vmem:[%s4 + $0x9c] sm:$0xf]
  %v64 = vld [vmem:[%s4 + $0xa0] sm:$0xf]
  %v65 = vld [vmem:[%s4 + $0xa4] sm:$0xf]
  %v66 = vld [vmem:[%s4 + $0xa8] sm:$0xf]
  %v67 = vld [vmem:[%s4 + $0xac] sm:$0xf]
  %v68 = vld [vmem:[%s4 + $0xb0] sm:$0xf]
  %v69 = vld [vmem:[%s4 + $0xb4] sm:$0xf]
  %v70 = vld [vmem:[%s4 + $0xb8] sm:$0xf]
  %v71 = vld [vmem:[%s4 + $0xbc] sm:$0xf]
  %v72 = vld [vmem:[%s4 + $0xc0] sm:$0xf]
  %v73 = vld [vmem:[%s4 + $0xc4] sm:$0xf]
  %v74 = vld [vmem:[%s4 + $0xc8] sm:$0xf]
  %v75 = vld [vmem:[%s4 + $0xcc] sm:$0xf]
  %v76 = vld [vmem:[%s4 + $0xd0] sm:$0xf]
  %v77 = vld [vmem:[%s4 + $0xd4] sm:$0xf]
  %v78 = vld [vmem:[%s4 + $0xd8] sm:$0xf]
  %v79 = vld [vmem:[%s4 + $0xdc] sm:$0xf]
  %v80 = vld [vmem:[%s4 + $0xe0] sm:$0xf]
  %v81 = vld [vmem:[%s4 + $0xe4] sm:$0xf]
  %v82 = vld [vmem:[%s4 + $0xe8] sm:$0xf]
  %v83 = vld [vmem:[%s4 + $0xec] sm:$0xf]
  %v84 = vld [vmem:[%s4 + $0xf0] sm:$0xf]
  %v85 = vld [vmem:[%s4 + $0xf4] sm:$0xf]
  %v86 = vld [vmem:[%s4 + $0xf8] sm:$0xf]
  %v87 = vld [vmem:[%s4 + $0xfc] sm:$0xf]
  %v88 = vld [vmem:[%s4 + $0x100] sm:$0xf]
  %v89 = vld [vmem:[%s4 + $0x104] sm:$0xf]
  %v90 = vld [vmem:[%s4 + $0x108] sm:$0xf]
  %v91 = vld [vmem:[%s4 + $0x10c] sm:$0xf]
  %v92 = vld [vmem:[%s4 + $0x110] sm:$0xf]
  %v93 = vld [vmem:[%s4 + $0x114] sm:$0xf]
  %v94 = vld [vmem:[%s4 + $0x118] sm:$0xf]
  %v95 = vld [vmem:[%s4 + $0x11c] sm:$0xf]
  %v96 = vld [vmem:[%s4 + $0x120] sm:$0xf]
  %v97 = vld [vmem:[%s4 + $0x124] sm:$0xf]
  %v98 = vld [vmem:[%s4 + $0x128] sm:$0xf]
  %v99 = vld [vmem:[%s4 + $0x12c] sm:$0xf]
  %v100 = vld [vmem:[%s4 + $0x130] sm:$0xf]
  %v101 = vld [vmem:[%s4 + $0x134] sm:$0xf]
  %v102 = vld [vmem:[%s4 + $0x138] sm:$0xf]
  %v103 = vld [vmem:[%s4 + $0x13c] sm:$0xf]
  %v104 = vld [vmem:[%s4 + $0x140] sm:$0xf]
  %v105 = vld [vmem:[%s4 + $0x144] sm:$0xf]
  %v106 = vld [vmem:[%s4 + $0x148] sm:$0xf]
  %v107 = vld [vmem:[%s4 + $0x14c] sm:$0xf]
  %v108 = vld [vmem:[%s4 + $0x150] sm:$0xf]
  %v109 = vld [vmem:[%s4 + $0x154] sm:$0xf]
  %v110 = vld [vmem:[%s4 + $0x158] sm:$0xf]
  %v111 = vld [vmem:[%s4 + $0x15c] sm:$0xf]
  %v112 = vld [vmem:[%s4 + $0x160] sm:$0xf]
  %v113 = vld [vmem:[%s4 + $0x164] sm:$0xf]
  %v114 = vld [vmem:[%s4 + $0x168] sm:$0xf]
  %v115 = vld [vmem:[%s4 + $0x16c] sm:$0xf]
  %v116 = vld [vmem:[%s4 + $0x170] sm:$0xf]
  %v117 = vld [vmem:[%s4 + $0x174] sm:$0xf]
  %v118 = vld [vmem:[%s4 + $0x178] sm:$0xf]
  %v119 = vld [vmem:[%s4 + $0x17c] sm:$0xf]
  %v120 = vld [vmem:[%s4 + $0x180] sm:$0xf]
  %v121 = vld [vmem:[%s4 + $0x184] sm:$0xf]
  %v122 = vld [vmem:[%s4 + $0x188] sm:$0xf]
  %v123 = vld [vmem:[%s4 + $0x18c] sm:$0xf]
  %v124 = vld [vmem:[%s4 + $0x190] sm:$0xf]
  %v125 = vld [vmem:[%s4 + $0x194] sm:$0xf]
  %v126 = vld [vmem:[%s4 + $0x198] sm:$0xf]
  %v127 = vld [vmem:[%s4 + $0x19c] sm:$0xf]
  %v128 = vld [vmem:[%s4 + $0x1a0] sm:$0xf]
  %v129 = vld [vmem:[%s4 + $0x1a4] sm:$0xf]
  %v130 = vld [vmem:[%s4 + $0x1a8] sm:$0xf]
  %v131 = vld [vmem:[%s4 + $0x1ac] sm:$0xf]
  %v132 = vld [vmem:[%s4 + $0x1b0] sm:$0xf]
  %v133 = vld [vmem:[%s4 + $0x1b4] sm:$0xf]
  %v134 = vld [vmem:[%s4 + $0x1b8] sm:$0xf]
  %v135 = vld [vmem:[%s4 + $0x1bc] sm:$0xf]
  %v136 = vld [vmem:[%s4 + $0x1c0] sm:$0xf]
  %v137 = vld [vmem:[%s4 + $0x1c4] sm:$0xf]
  %v138 = vld [vmem:[%s4 + $0x1c8] sm:$0xf]
  %v139 = vld [vmem:[%s4 + $0x1cc] sm:$0xf]
  %v140 = vld [vmem:[%s4 + $0x1d0] sm:$0xf]
  %v141 = vld [vmem:[%s4 + $0x1d4] sm:$0xf]
  %v142 = vld [vmem:[%s4 + $0x1d8] sm:$0xf]
  %v143 = vld [vmem:[%s4 + $0x1dc] sm:$0xf]
  %v144 = vld [vmem:[%s4 + $0x1e0] sm:$0xf]
  %v145 = vld [vmem:[%s4 + $0x1e4] sm:$0xf]
  %v146 = vld [vmem:[%s4 + $0x1e8] sm:$0xf]
  %v147 = vld [vmem:[%s4 + $0x1ec] sm:$0xf]
  %v148 = vld [vmem:[%s4 + $0x1f0] sm:$0xf]
  %v149 = vld [vmem:[%s4 + $0x1f4] sm:$0xf]
  %v150 = vld [vmem:[%s4 + $0x1f8] sm:$0xf]
  %v151 = vld [vmem:[%s4 + $0x1fc] sm:$0xf]
  %v152 = vld [vmem:[%s4 + $0x200] sm:$0xf]
  %v153 = vld [vmem:[%s4 + $0x204] sm:$0xf]
  %v154 = vld [vmem:[%s4 + $0x208] sm:$0xf]
  %v155 = vld [vmem:[%s4 + $0x20c] sm:$0xf]
  %v156 = vld [vmem:[%s4 + $0x210] sm:$0xf]
  %v157 = vld [vmem:[%s4 + $0x214] sm:$0xf]
  %v158 = vld [vmem:[%s4 + $0x218] sm:$0xf]
  %v159 = vld [vmem:[%s4 + $0x21c] sm:$0xf]
  %v160 = vld [vmem:[%s4 + $0x220] sm:$0xf]
  %v161 = vld [vmem:[%s4 + $0x224] sm:$0xf]
  %v162 = vld [vmem:[%s4 + $0x228] sm:$0xf]
  %v163 = vld [vmem:[%s4 + $0x22c] sm:$0xf]
  %v164 = vld [vmem:[%s4 + $0x230] sm:$0xf]
  %v165 = vld [vmem:[%s4 + $0x234] sm:$0xf]
  %v166 = vld [vmem:[%s4 + $0x238] sm:$0xf]
  %v167 = vld [vmem:[%s4 + $0x23c] sm:$0xf]
  %v168 = vld [vmem:[%s4 + $0x240] sm:$0xf]
  %v169 = vld [vmem:[%s4 + $0x244] sm:$0xf]
  %v170 = vld [vmem:[%s4 + $0x248] sm:$0xf]
  %v171 = vld [vmem:[%s4 + $0x24c] sm:$0xf]
  %v172 = vld [vmem:[%s4 + $0x250] sm:$0xf]
  %v173 = vld [vmem:[%s4 + $0x254] sm:$0xf]
  %v174 = vld [vmem:[%s4 + $0x258] sm:$0xf]
  %v175 = vld [vmem:[%s4 + $0x25c] sm:$0xf]
  %v176 = vld [vmem:[%s4 + $0x260] sm:$0xf]
  %v177 = vld [vmem:[%s4 + $0x264] sm:$0xf]
  %v178 = vld [vmem:[%s4 + $0x268] sm:$0xf]
  %v179 = vld [vmem:[%s4 + $0x26c] sm:$0xf]
  %v180 = vld [vmem:[%s4 + $0x270] sm:$0xf]
  %v181 = vld [vmem:[%s4 + $0x274] sm:$0xf]
  %v182 = vld [vmem:[%s4 + $0x278] sm:$0xf]
  %v183 = vld [vmem:[%s4 + $0x27c] sm:$0xf]
  %v184 = vld [vmem:[%s4 + $0x280] sm:$0xf]
  %v185 = vld [vmem:[%s4 + $0x284] sm:$0xf]
  %v186 = vld [vmem:[%s4 + $0x288] sm:$0xf]
  %v187 = vld [vmem:[%s4 + $0x28c] sm:$0xf]
  %v188 = vld [vmem:[%s4 + $0x290] sm:$0xf]
  %v189 = vld [vmem:[%s4 + $0x294] sm:$0xf]
  %v190 = vld [vmem:[%s4 + $0x298] sm:$0xf]
  %v191 = vld [vmem:[%s4 + $0x29c] sm:$0xf]
  %v192 = vld [vmem:[%s4 + $0x2a0] sm:$0xf]
  %v193 = vld [vmem:[%s4 + $0x2a4] sm:$0xf]
  %v194 = vld [vmem:[%s4 + $0x2a8] sm:$0xf]
  %v195 = vld [vmem:[%s4 + $0x2ac] sm:$0xf]
  %v196 = vld [vmem:[%s4 + $0x2b0] sm:$0xf]
  %v197 = vld [vmem:[%s4 + $0x2b4] sm:$0xf]
  %v198 = vld [vmem:[%s4 + $0x2b8] sm:$0xf]
  %v199 = vld [vmem:[%s4 + $0x2bc] sm:$0xf]
  %v200 = vld [vmem:[%s4 + $0x2c0] sm:$0xf]
  %v201 = vld [vmem:[%s4 + $0x2c4] sm:$0xf]
  %v202 = vld [vmem:[%s4 + $0x2c8] sm:$0xf]
  %v203 = vld [vmem:[%s4 + $0x2cc] sm:$0xf]
  %v204 = vld [vmem:[%s4 + $0x2d0] sm:$0xf]
  %v205 = vld [vmem:[%s4 + $0x2d4] sm:$0xf]
  %v206 = vld [vmem:[%s4 + $0x2d8] sm:$0xf]
  %v207 = vld [vmem:[%s4 + $0x2dc] sm:$0xf]
  %v208 = vld [vmem:[%s4 + $0x2e0] sm:$0xf]
  %v209 = vld [vmem:[%s4 + $0x2e4] sm:$0xf]
  %v210 = vld [vmem:[%s4 + $0x2e8] sm:$0xf]
  %v211 = vld [vmem:[%s4 + $0x2ec] sm:$0xf]
  %v212 = vld [vmem:[%s4 + $0x2f0] sm:$0xf]
  %v213 = vld [vmem:[%s4 + $0x2f4] sm:$0xf]
  %v214 = vld [vmem:[%s4 + $0x2f8] sm:$0xf]
  %v215 = vld [vmem:[%s4 + $0x2fc] sm:$0xf]
  %v216 = vld [vmem:[%s4 + $0x300] sm:$0xf]
  %v217 = vld [vmem:[%s4 + $0x304] sm:$0xf]
  %v218 = vld [vmem:[%s4 + $0x308] sm:$0xf]
  %v219 = vld [vmem:[%s4 + $0x30c] sm:$0xf]
  %v220 = vld [vmem:[%s4 + $0x310] sm:$0xf]
  %v221 = vld [vmem:[%s4 + $0x314] sm:$0xf]
  %v222 = vld [vmem:[%s4 + $0x318] sm:$0xf]
  %v223 = vld [vmem:[%s4 + $0x31c] sm:$0xf]
  %v224 = vld [vmem:[%s5] sm:$0x1]
  %v225 = vld [vmem:[%s0] sm:$0xff]
  %v226 = vld [vmem:[%s0 + $0x8] sm:$0xff]
  %v227 = vld [vmem:[%s0 + $0x10] sm:$0xff]
  %v228 = vld [vmem:[%s0 + $0x18] sm:$0xff]
  %v229 = vld [vmem:[%s0 + $0x20] sm:$0xff]
  %v230 = vld [vmem:[%s0 + $0x28] sm:$0xff]
  %v231 = vld [vmem:[%s0 + $0x30] sm:$0xf]
  %v232 = vld [vmem:[%s0 + $0x34] sm:$0xff]
  %v233 = vld [vmem:[%s0 + $0x3c] sm:$0xff]
  %v234 = vld [vmem:[%s0 + $0x44] sm:$0xff]
  %v235 = vld [vmem:[%s0 + $0x4c] sm:$0xff]
  %v236 = vld [vmem:[%s0 + $0x54] sm:$0xff]
  %v237 = vld [vmem:[%s0 + $0x5c] sm:$0xff]
  %v238 = vld [vmem:[%s0 + $0x64] sm:$0xf]
  %v239 = vld [vmem:[%s0 + $0x68] sm:$0xff]
  %v240 = vld [vmem:[%s0 + $0x70] sm:$0xff]
  %v241 = vld [vmem:[%s0 + $0x78] sm:$0xff]
  %v242 = vld [vmem:[%s0 + $0x80] sm:$0xff]
  %v243 = vld [vmem:[%s0 + $0x88] sm:$0xff]
  %v244 = vld [vmem:[%s0 + $0x90] sm:$0xff]
  %v245 = vld [vmem:[%s0 + $0x98] sm:$0xf]
  %v246 = vld [vmem:[%s0 + $0x9c] sm:$0xff]
  %v247 = vld [vmem:[%s0 + $0xa4] sm:$0xff]
  %v248 = vld [vmem:[%s0 + $0xac] sm:$0xff]
  %v249 = vld [vmem:[%s0 + $0xb4] sm:$0xff]
  %v250 = vld [vmem:[%s0 + $0xbc] sm:$0xff]
  %v251 = vld [vmem:[%s0 + $0xc4] sm:$0xff]
  %v252 = vld [vmem:[%s0 + $0xcc] sm:$0xf]
  %v253 = vld [vmem:[%s0 + $0xd0] sm:$0xff]
  %v254 = vld [vmem:[%s0 + $0xd8] sm:$0xff]
  %v255 = vld [vmem:[%s0 + $0xe0] sm:$0xff]
  %v256 = vld [vmem:[%s0 + $0xe8] sm:$0xff]
  %v257 = vld [vmem:[%s0 + $0xf0] sm:$0xff]
  %v258 = vld [vmem:[%s0 + $0xf8] sm:$0xff]
  %v259 = vld [vmem:[%s0 + $0x100] sm:$0xf]
  %v260 = vld [vmem:[%s0 + $0x104] sm:$0xff]
  %v261 = vld [vmem:[%s0 + $0x10c] sm:$0xff]
  %v262 = vld [vmem:[%s0 + $0x114] sm:$0xff]
  %v263 = vld [vmem:[%s0 + $0x11c] sm:$0xff]
  %v264 = vld [vmem:[%s0 + $0x124] sm:$0xff]
  %v265 = vld [vmem:[%s0 + $0x12c] sm:$0xff]
  %v266 = vld [vmem:[%s0 + $0x134] sm:$0xf]
  %v267 = vld [vmem:[%s0 + $0x138] sm:$0x11]
  %v268 = vld [vmem:[%s0 + $0x140] sm:$0x11]
  %v269 = vld [vmem:[%s0 + $0x148] sm:$0x11]
  %v270 = vld [vmem:[%s0 + $0x150] sm:$0x11]
  %v271 = vld [vmem:[%s0 + $0x158] sm:$0x11]
  %v272 = vld [vmem:[%s0 + $0x160] sm:$0x11]
  %v273 = vld [vmem:[%s0 + $0x168] sm:$0x1]
  %v275 = vperm.slane %v224, 0
  %v326 = vunpack.c.l.b16 %v225
  %v327 = vunpack.c.h.b16 %v225
  %v328 = vunpack.c.l.b16 %v226
  %v329 = vunpack.c.h.b16 %v226
  %v330 = vunpack.c.l.b16 %v227
  %v331 = vunpack.c.h.b16 %v227
  %v332 = vunpack.c.l.b16 %v228
  %v333 = vunpack.c.h.b16 %v228
  %v334 = vunpack.c.l.b16 %v229
  %v335 = vunpack.c.h.b16 %v229
  %v336 = vunpack.c.l.b16 %v230
  %v337 = vunpack.c.h.b16 %v230
  %v338 = vunpack.c.l.b16 %v231
  %v339 = vunpack.c.l.b16 %v232
  %v340 = vunpack.c.h.b16 %v232
  %v341 = vunpack.c.l.b16 %v233
  %v342 = vunpack.c.h.b16 %v233
  %v343 = vunpack.c.l.b16 %v234
  %v344 = vunpack.c.h.b16 %v234
  %v345 = vunpack.c.l.b16 %v235
  %v346 = vunpack.c.h.b16 %v235
  %v347 = vunpack.c.l.b16 %v236
  %v348 = vunpack.c.h.b16 %v236
  %v349 = vunpack.c.l.b16 %v237
  %v350 = vunpack.c.h.b16 %v237
  %v351 = vunpack.c.l.b16 %v238
  %v352 = vunpack.c.l.b16 %v239
  %v353 = vunpack.c.h.b16 %v239
  %v354 = vunpack.c.l.b16 %v240
  %v355 = vunpack.c.h.b16 %v240
  %v356 = vunpack.c.l.b16 %v241
  %v357 = vunpack.c.h.b16 %v241
  %v358 = vunpack.c.l.b16 %v242
  %v359 = vunpack.c.h.b16 %v242
  %v360 = vunpack.c.l.b16 %v243
  %v361 = vunpack.c.h.b16 %v243
  %v362 = vunpack.c.l.b16 %v244
  %v363 = vunpack.c.h.b16 %v244
  %v364 = vunpack.c.l.b16 %v245
  %v365 = vunpack.c.l.b16 %v246
  %v366 = vunpack.c.h.b16 %v246
  %v367 = vunpack.c.l.b16 %v247
  %v368 = vunpack.c.h.b16 %v247
  %v369 = vunpack.c.l.b16 %v248
  %v370 = vunpack.c.h.b16 %v248
  %v371 = vunpack.c.l.b16 %v249
  %v372 = vunpack.c.h.b16 %v249
  %v373 = vunpack.c.l.b16 %v250
  %v374 = vunpack.c.h.b16 %v250
  %v375 = vunpack.c.l.b16 %v251
  %v376 = vunpack.c.h.b16 %v251
  %v377 = vunpack.c.l.b16 %v252
  %v378 = vunpack.c.l.b16 %v253
  %v379 = vunpack.c.h.b16 %v253
  %v380 = vunpack.c.l.b16 %v254
  %v381 = vunpack.c.h.b16 %v254
  %v382 = vunpack.c.l.b16 %v255
  %v383 = vunpack.c.h.b16 %v255
  %v384 = vunpack.c.l.b16 %v256
  %v385 = vunpack.c.h.b16 %v256
  %v386 = vunpack.c.l.b16 %v257
  %v387 = vunpack.c.h.b16 %v257
  %v388 = vunpack.c.l.b16 %v258
  %v389 = vunpack.c.h.b16 %v258
  %v390 = vunpack.c.l.b16 %v259
  %v391 = vunpack.c.l.b16 %v260
  %v392 = vunpack.c.h.b16 %v260
  %v393 = vunpack.c.l.b16 %v261
  %v394 = vunpack.c.h.b16 %v261
  %v395 = vunpack.c.l.b16 %v262
  %v396 = vunpack.c.h.b16 %v262
  %v397 = vunpack.c.l.b16 %v263
  %v398 = vunpack.c.h.b16 %v263
  %v399 = vunpack.c.l.b16 %v264
  %v400 = vunpack.c.h.b16 %v264
  %v401 = vunpack.c.l.b16 %v265
  %v402 = vunpack.c.h.b16 %v265
  %v403 = vunpack.c.l.b16 %v266
  %v404 = vunpack.c.l.b16 %v267
  %v405 = vunpack.c.h.b16 %v267
  %v406 = vunpack.c.l.b16 %v268
  %v407 = vunpack.c.h.b16 %v268
  %v408 = vunpack.c.l.b16 %v269
  %v409 = vunpack.c.h.b16 %v269
  %v410 = vunpack.c.l.b16 %v270
  %v411 = vunpack.c.h.b16 %v270
  %v412 = vunpack.c.l.b16 %v271
  %v413 = vunpack.c.h.b16 %v271
  %v414 = vunpack.c.l.b16 %v272
  %v415 = vunpack.c.h.b16 %v272
  %v416 = vunpack.c.l.b16 %v273
  %v417 = vpack.c.b16 %v339, %v326
  %v418 = vpack.c.b16 %v340, %v327
  %v419 = vpack.c.b16 %v341, %v328
  %v420 = vpack.c.b16 %v342, %v329
  %v421 = vpack.c.b16 %v343, %v330
  %v422 = vpack.c.b16 %v344, %v331
  %v423 = vpack.c.b16 %v345, %v332
  %v424 = vpack.c.b16 %v346, %v333
  %v425 = vpack.c.b16 %v347, %v334
  %v426 = vpack.c.b16 %v348, %v335
  %v427 = vpack.c.b16 %v349, %v336
  %v428 = vpack.c.b16 %v350, %v337
  %v429 = vpack.c.b16 %v351, %v338
  %v430 = vpack.c.b16 %v365, %v352
  %v431 = vpack.c.b16 %v366, %v353
  %v432 = vpack.c.b16 %v367, %v354
  %v433 = vpack.c.b16 %v368, %v355
  %v434 = vpack.c.b16 %v369, %v356
  %v435 = vpack.c.b16 %v370, %v357
  %v436 = vpack.c.b16 %v371, %v358
  %v437 = vpack.c.b16 %v372, %v359
  %v438 = vpack.c.b16 %v373, %v360
  %v439 = vpack.c.b16 %v374, %v361
  %v440 = vpack.c.b16 %v375, %v362
  %v441 = vpack.c.b16 %v376, %v363
  %v442 = vpack.c.b16 %v377, %v364
  %v443 = vpack.c.b16 %v391, %v378
  %v444 = vpack.c.b16 %v392, %v379
  %v445 = vpack.c.b16 %v393, %v380
  %v446 = vpack.c.b16 %v394, %v381
  %v447 = vpack.c.b16 %v395, %v382
  %v448 = vpack.c.b16 %v396, %v383
  %v449 = vpack.c.b16 %v397, %v384
  %v450 = vpack.c.b16 %v398, %v385
  %v451 = vpack.c.b16 %v399, %v386
  %v452 = vpack.c.b16 %v400, %v387
  %v453 = vpack.c.b16 %v401, %v388
  %v454 = vpack.c.b16 %v402, %v389
  %v455 = vpack.c.b16 %v403, %v390
  %v456 = vpack.c.b16 %v404, %v404
  %v457 = vpack.c.b16 %v405, %v405
  %v458 = vpack.c.b16 %v406, %v406
  %v459 = vpack.c.b16 %v407, %v407
  %v460 = vpack.c.b16 %v408, %v408
  %v461 = vpack.c.b16 %v409, %v409
  %v462 = vpack.c.b16 %v410, %v410
  %v463 = vpack.c.b16 %v411, %v411
  %v464 = vpack.c.b16 %v412, %v412
  %v465 = vpack.c.b16 %v413, %v413
  %v466 = vpack.c.b16 %v414, %v414
  %v467 = vpack.c.b16 %v415, %v415
  %v468 = vpack.c.b16 %v416, %v416
  %v717 = vunpack.c.l.b16 %v24
  %v718 = vunpack.c.l.b16 %v25
  %v719 = vunpack.c.l.b16 %v26
  %v720 = vunpack.c.l.b16 %v27
  %v721 = vunpack.c.l.b16 %v28
  %v722 = vunpack.c.l.b16 %v29
  %v723 = vunpack.c.l.b16 %v30
  %v724 = vunpack.c.l.b16 %v31
  %v725 = vunpack.c.l.b16 %v32
  %v726 = vunpack.c.l.b16 %v33
  %v727 = vunpack.c.l.b16 %v34
  %v728 = vunpack.c.l.b16 %v35
  %v729 = vunpack.c.l.b16 %v36
  %v730 = vunpack.c.l.b16 %v37
  %v731 = vunpack.c.l.b16 %v38
  %v732 = vunpack.c.l.b16 %v39
  %v733 = vunpack.c.l.b16 %v40
  %v734 = vunpack.c.l.b16 %v41
  %v735 = vunpack.c.l.b16 %v42
  %v736 = vunpack.c.l.b16 %v43
  %v737 = vunpack.c.l.b16 %v44
  %v738 = vunpack.c.l.b16 %v45
  %v739 = vunpack.c.l.b16 %v46
  %v740 = vunpack.c.l.b16 %v47
  %v741 = vunpack.c.l.b16 %v48
  %v742 = vunpack.c.l.b16 %v49
  %v743 = vunpack.c.l.b16 %v50
  %v744 = vunpack.c.l.b16 %v51
  %v745 = vunpack.c.l.b16 %v52
  %v746 = vunpack.c.l.b16 %v53
  %v747 = vunpack.c.l.b16 %v54
  %v748 = vunpack.c.l.b16 %v55
  %v749 = vunpack.c.l.b16 %v56
  %v750 = vunpack.c.l.b16 %v57
  %v751 = vunpack.c.l.b16 %v58
  %v752 = vunpack.c.l.b16 %v59
  %v753 = vunpack.c.l.b16 %v60
  %v754 = vunpack.c.l.b16 %v61
  %v755 = vunpack.c.l.b16 %v62
  %v756 = vunpack.c.l.b16 %v63
  %v757 = vunpack.c.l.b16 %v64
  %v758 = vunpack.c.l.b16 %v65
  %v759 = vunpack.c.l.b16 %v66
  %v760 = vunpack.c.l.b16 %v67
  %v761 = vunpack.c.l.b16 %v68
  %v762 = vunpack.c.l.b16 %v69
  %v763 = vunpack.c.l.b16 %v70
  %v764 = vunpack.c.l.b16 %v71
  %v765 = vunpack.c.l.b16 %v72
  %v766 = vunpack.c.l.b16 %v73
  %v767 = vunpack.c.l.b16 %v74
  %v768 = vunpack.c.l.b16 %v75
  %v769 = vunpack.c.l.b16 %v76
  %v770 = vunpack.c.l.b16 %v77
  %v771 = vunpack.c.l.b16 %v78
  %v772 = vunpack.c.l.b16 %v79
  %v773 = vunpack.c.l.b16 %v80
  %v774 = vunpack.c.l.b16 %v81
  %v775 = vunpack.c.l.b16 %v82
  %v776 = vunpack.c.l.b16 %v83
  %v777 = vunpack.c.l.b16 %v84
  %v778 = vunpack.c.l.b16 %v85
  %v779 = vunpack.c.l.b16 %v86
  %v780 = vunpack.c.l.b16 %v87
  %v781 = vunpack.c.l.b16 %v88
  %v782 = vunpack.c.l.b16 %v89
  %v783 = vunpack.c.l.b16 %v90
  %v784 = vunpack.c.l.b16 %v91
  %v785 = vunpack.c.l.b16 %v92
  %v786 = vunpack.c.l.b16 %v93
  %v787 = vunpack.c.l.b16 %v94
  %v788 = vunpack.c.l.b16 %v95
  %v789 = vunpack.c.l.b16 %v96
  %v790 = vunpack.c.l.b16 %v97
  %v791 = vunpack.c.l.b16 %v98
  %v792 = vunpack.c.l.b16 %v99
  %v793 = vunpack.c.l.b16 %v100
  %v794 = vunpack.c.l.b16 %v101
  %v795 = vunpack.c.l.b16 %v102
  %v796 = vunpack.c.l.b16 %v103
  %v797 = vunpack.c.l.b16 %v104
  %v798 = vunpack.c.l.b16 %v105
  %v799 = vunpack.c.l.b16 %v106
  %v800 = vunpack.c.l.b16 %v107
  %v801 = vunpack.c.l.b16 %v108
  %v802 = vunpack.c.l.b16 %v109
  %v803 = vunpack.c.l.b16 %v110
  %v804 = vunpack.c.l.b16 %v111
  %v805 = vunpack.c.l.b16 %v112
  %v806 = vunpack.c.l.b16 %v113
  %v807 = vunpack.c.l.b16 %v114
  %v808 = vunpack.c.l.b16 %v115
  %v809 = vunpack.c.l.b16 %v116
  %v810 = vunpack.c.l.b16 %v117
  %v811 = vunpack.c.l.b16 %v118
  %v812 = vunpack.c.l.b16 %v119
  %v813 = vunpack.c.l.b16 %v120
  %v814 = vunpack.c.l.b16 %v121
  %v815 = vunpack.c.l.b16 %v122
  %v816 = vunpack.c.l.b16 %v123
  %v817 = vunpack.c.l.b16 %v124
  %v818 = vunpack.c.l.b16 %v125
  %v819 = vunpack.c.l.b16 %v126
  %v820 = vunpack.c.l.b16 %v127
  %v821 = vunpack.c.l.b16 %v128
  %v822 = vunpack.c.l.b16 %v129
  %v823 = vunpack.c.l.b16 %v130
  %v824 = vunpack.c.l.b16 %v131
  %v825 = vunpack.c.l.b16 %v132
  %v826 = vunpack.c.l.b16 %v133
  %v827 = vunpack.c.l.b16 %v134
  %v828 = vunpack.c.l.b16 %v135
  %v829 = vunpack.c.l.b16 %v136
  %v830 = vunpack.c.l.b16 %v137
  %v831 = vunpack.c.l.b16 %v138
  %v832 = vunpack.c.l.b16 %v139
  %v833 = vunpack.c.l.b16 %v140
  %v834 = vunpack.c.l.b16 %v141
  %v835 = vunpack.c.l.b16 %v142
  %v836 = vunpack.c.l.b16 %v143
  %v837 = vunpack.c.l.b16 %v144
  %v838 = vunpack.c.l.b16 %v145
  %v839 = vunpack.c.l.b16 %v146
  %v840 = vunpack.c.l.b16 %v147
  %v841 = vunpack.c.l.b16 %v148
  %v842 = vunpack.c.l.b16 %v149
  %v843 = vunpack.c.l.b16 %v150
  %v844 = vunpack.c.l.b16 %v151
  %v845 = vunpack.c.l.b16 %v152
  %v846 = vunpack.c.l.b16 %v153
  %v847 = vunpack.c.l.b16 %v154
  %v848 = vunpack.c.l.b16 %v155
  %v849 = vunpack.c.l.b16 %v156
  %v850 = vunpack.c.l.b16 %v157
  %v851 = vunpack.c.l.b16 %v158
  %v852 = vunpack.c.l.b16 %v159
  %v853 = vunpack.c.l.b16 %v160
  %v854 = vunpack.c.l.b16 %v161
  %v855 = vunpack.c.l.b16 %v162
  %v856 = vunpack.c.l.b16 %v163
  %v857 = vunpack.c.l.b16 %v164
  %v858 = vunpack.c.l.b16 %v165
  %v859 = vunpack.c.l.b16 %v166
  %v860 = vunpack.c.l.b16 %v167
  %v861 = vunpack.c.l.b16 %v168
  %v862 = vunpack.c.l.b16 %v169
  %v863 = vunpack.c.l.b16 %v170
  %v864 = vunpack.c.l.b16 %v171
  %v865 = vunpack.c.l.b16 %v172
  %v866 = vunpack.c.l.b16 %v173
  %v867 = vunpack.c.l.b16 %v174
  %v868 = vunpack.c.l.b16 %v175
  %v869 = vunpack.c.l.b16 %v176
  %v870 = vunpack.c.l.b16 %v177
  %v871 = vunpack.c.l.b16 %v178
  %v872 = vunpack.c.l.b16 %v179
  %v873 = vunpack.c.l.b16 %v180
  %v874 = vunpack.c.l.b16 %v181
  %v875 = vunpack.c.l.b16 %v182
  %v876 = vunpack.c.l.b16 %v183
  %v877 = vunpack.c.l.b16 %v184
  %v878 = vunpack.c.l.b16 %v185
  %v879 = vunpack.c.l.b16 %v186
  %v880 = vunpack.c.l.b16 %v187
  %v881 = vunpack.c.l.b16 %v188
  %v882 = vunpack.c.l.b16 %v189
  %v883 = vunpack.c.l.b16 %v190
  %v884 = vunpack.c.l.b16 %v191
  %v885 = vunpack.c.l.b16 %v192
  %v886 = vunpack.c.l.b16 %v193
  %v887 = vunpack.c.l.b16 %v194
  %v888 = vunpack.c.l.b16 %v195
  %v889 = vunpack.c.l.b16 %v196
  %v890 = vunpack.c.l.b16 %v197
  %v891 = vunpack.c.l.b16 %v198
  %v892 = vunpack.c.l.b16 %v199
  %v893 = vunpack.c.l.b16 %v200
  %v894 = vunpack.c.l.b16 %v201
  %v895 = vunpack.c.l.b16 %v202
  %v896 = vunpack.c.l.b16 %v203
  %v897 = vunpack.c.l.b16 %v204
  %v898 = vunpack.c.l.b16 %v205
  %v899 = vunpack.c.l.b16 %v206
  %v900 = vunpack.c.l.b16 %v207
  %v901 = vunpack.c.l.b16 %v208
  %v902 = vunpack.c.l.b16 %v209
  %v903 = vunpack.c.l.b16 %v210
  %v904 = vunpack.c.l.b16 %v211
  %v905 = vunpack.c.l.b16 %v212
  %v906 = vunpack.c.l.b16 %v213
  %v907 = vunpack.c.l.b16 %v214
  %v908 = vunpack.c.l.b16 %v215
  %v909 = vunpack.c.l.b16 %v216
  %v910 = vunpack.c.l.b16 %v217
  %v911 = vunpack.c.l.b16 %v218
  %v912 = vunpack.c.l.b16 %v219
  %v913 = vunpack.c.l.b16 %v220
  %v914 = vunpack.c.l.b16 %v221
  %v915 = vunpack.c.l.b16 %v222
  %v916 = vunpack.c.l.b16 %v223
  %v917 = vpack.c.b16 %v718, %v717
  %v918 = vpack.c.b16 %v720, %v719
  %v919 = vpack.c.b16 %v722, %v721
  %v920 = vpack.c.b16 %v724, %v723
  %v921 = vpack.c.b16 %v726, %v725
  %v922 = vpack.c.b16 %v728, %v727
  %v923 = vpack.c.b16 %v730, %v729
  %v924 = vpack.c.b16 %v732, %v731
  %v925 = vpack.c.b16 %v734, %v733
  %v926 = vpack.c.b16 %v736, %v735
  %v927 = vpack.c.b16 %v738, %v737
  %v928 = vpack.c.b16 %v740, %v739
  %v929 = vpack.c.b16 %v742, %v741
  %v930 = vpack.c.b16 %v744, %v743
  %v931 = vpack.c.b16 %v746, %v745
  %v932 = vpack.c.b16 %v748, %v747
  %v933 = vpack.c.b16 %v750, %v749
  %v934 = vpack.c.b16 %v752, %v751
  %v935 = vpack.c.b16 %v754, %v753
  %v936 = vpack.c.b16 %v756, %v755
  %v937 = vpack.c.b16 %v758, %v757
  %v938 = vpack.c.b16 %v760, %v759
  %v939 = vpack.c.b16 %v762, %v761
  %v940 = vpack.c.b16 %v764, %v763
  %v941 = vpack.c.b16 %v766, %v765
  %v942 = vpack.c.b16 %v768, %v767
  %v943 = vpack.c.b16 %v770, %v769
  %v944 = vpack.c.b16 %v772, %v771
  %v945 = vpack.c.b16 %v774, %v773
  %v946 = vpack.c.b16 %v776, %v775
  %v947 = vpack.c.b16 %v778, %v777
  %v948 = vpack.c.b16 %v780, %v779
  %v949 = vpack.c.b16 %v782, %v781
  %v950 = vpack.c.b16 %v784, %v783
  %v951 = vpack.c.b16 %v786, %v785
  %v952 = vpack.c.b16 %v788, %v787
  %v953 = vpack.c.b16 %v790, %v789
  %v954 = vpack.c.b16 %v792, %v791
  %v955 = vpack.c.b16 %v794, %v793
  %v956 = vpack.c.b16 %v796, %v795
  %v957 = vpack.c.b16 %v798, %v797
  %v958 = vpack.c.b16 %v800, %v799
  %v959 = vpack.c.b16 %v802, %v801
  %v960 = vpack.c.b16 %v804, %v803
  %v961 = vpack.c.b16 %v806, %v805
  %v962 = vpack.c.b16 %v808, %v807
  %v963 = vpack.c.b16 %v810, %v809
  %v964 = vpack.c.b16 %v812, %v811
  %v965 = vpack.c.b16 %v814, %v813
  %v966 = vpack.c.b16 %v816, %v815
  %v967 = vpack.c.b16 %v818, %v817
  %v968 = vpack.c.b16 %v820, %v819
  %v969 = vpack.c.b16 %v822, %v821
  %v970 = vpack.c.b16 %v824, %v823
  %v971 = vpack.c.b16 %v826, %v825
  %v972 = vpack.c.b16 %v828, %v827
  %v973 = vpack.c.b16 %v830, %v829
  %v974 = vpack.c.b16 %v832, %v831
  %v975 = vpack.c.b16 %v834, %v833
  %v976 = vpack.c.b16 %v836, %v835
  %v977 = vpack.c.b16 %v838, %v837
  %v978 = vpack.c.b16 %v840, %v839
  %v979 = vpack.c.b16 %v842, %v841
  %v980 = vpack.c.b16 %v844, %v843
  %v981 = vpack.c.b16 %v846, %v845
  %v982 = vpack.c.b16 %v848, %v847
  %v983 = vpack.c.b16 %v850, %v849
  %v984 = vpack.c.b16 %v852, %v851
  %v985 = vpack.c.b16 %v854, %v853
  %v986 = vpack.c.b16 %v856, %v855
  %v987 = vpack.c.b16 %v858, %v857
  %v988 = vpack.c.b16 %v860, %v859
  %v989 = vpack.c.b16 %v862, %v861
  %v990 = vpack.c.b16 %v864, %v863
  %v991 = vpack.c.b16 %v866, %v865
  %v992 = vpack.c.b16 %v868, %v867
  %v993 = vpack.c.b16 %v870, %v869
  %v994 = vpack.c.b16 %v872, %v871
  %v995 = vpack.c.b16 %v874, %v873
  %v996 = vpack.c.b16 %v876, %v875
  %v997 = vpack.c.b16 %v878, %v877
  %v998 = vpack.c.b16 %v880, %v879
  %v999 = vpack.c.b16 %v882, %v881
  %v1000 = vpack.c.b16 %v884, %v883
  %v1001 = vpack.c.b16 %v886, %v885
  %v1002 = vpack.c.b16 %v888, %v887
  %v1003 = vpack.c.b16 %v890, %v889
  %v1004 = vpack.c.b16 %v892, %v891
  %v1005 = vpack.c.b16 %v894, %v893
  %v1006 = vpack.c.b16 %v896, %v895
  %v1007 = vpack.c.b16 %v898, %v897
  %v1008 = vpack.c.b16 %v900, %v899
  %v1009 = vpack.c.b16 %v902, %v901
  %v1010 = vpack.c.b16 %v904, %v903
  %v1011 = vpack.c.b16 %v906, %v905
  %v1012 = vpack.c.b16 %v908, %v907
  %v1013 = vpack.c.b16 %v910, %v909
  %v1014 = vpack.c.b16 %v912, %v911
  %v1015 = vpack.c.b16 %v914, %v913
  %v1016 = vpack.c.b16 %v916, %v915
  %vm1117 = vcmask 523264
  %v1119 = vsel %vm1117, %v429, 0
  %v1122 = vsel %vm1117, %v442, 0
  %v1125 = vsel %vm1117, %v455, 0
  %v1128 = vsel %vm1117, %v468, 0
  %1130 = vmatpush.bf16.msra.mxu0 %v924
  %1131 = vmatpush.bf16.msra.mxu0 %v923
  %1132 = vmatpush.bf16.msra.mxu0 %v922
  %1133 = vmatpush.bf16.msra.mxu0 %v921
  %1134 = vmatpush.bf16.msra.mxu0 %v920
  %1135 = vmatpush.bf16.msra.mxu0 %v919
  %1136 = vmatpush.bf16.msra.mxu0 %v918
  %1137 = vmatpush.bf16.msra.mxu0 %v917
  %1138 = vmatmul.bf16.gmra.mxu0 %v417
  %v1139 = vpop.f32.mrf.mxu0
  %v1140 = vadd.f32 %v275, %v1139
  %v1141 = vpop.f32.mrf.mxu0
  %v1142 = vadd.f32 %v275, %v1141
  %1143 = vmatmul.bf16.gmra.mxu0 %v430
  %v1144 = vpop.f32.mrf.mxu0
  %v1145 = vadd.f32 %v275, %v1144
  %v1146 = vpop.f32.mrf.mxu0
  %v1147 = vadd.f32 %v275, %v1146
  %1148 = vmatmul.bf16.gmra.mxu0 %v443
  %v1149 = vpop.f32.mrf.mxu0
  %v1150 = vadd.f32 %v275, %v1149
  %v1151 = vpop.f32.mrf.mxu0
  %v1152 = vadd.f32 %v275, %v1151
  %1153 = vmatmul.bf16.gmra.mxu0 %v456
  %v1154 = vpop.f32.mrf.mxu0
  %v1155 = vadd.f32 %v275, %v1154
  %v1156 = vpop.f32.mrf.mxu0
  %1157 = vdwg.mxu0
  %1158 = vmatpush.bf16.msra.mxu0 %v932
  %1159 = vmatpush.bf16.msra.mxu0 %v931
  %1160 = vmatpush.bf16.msra.mxu0 %v930
  %1161 = vmatpush.bf16.msra.mxu0 %v929
  %1162 = vmatpush.bf16.msra.mxu0 %v928
  %1163 = vmatpush.bf16.msra.mxu0 %v927
  %1164 = vmatpush.bf16.msra.mxu0 %v926
  %1165 = vmatpush.bf16.msra.mxu0 %v925
  %1166 = vmatmul.bf16.gmra.mxu0 %v418
  %v1167 = vpop.f32.mrf.mxu0
  %v1168 = vadd.f32 %v1140, %v1167
  %v1169 = vpop.f32.mrf.mxu0
  %v1170 = vadd.f32 %v1142, %v1169
  %1171 = vmatmul.bf16.gmra.mxu0 %v431
  %v1172 = vpop.f32.mrf.mxu0
  %v1173 = vadd.f32 %v1145, %v1172
  %v1174 = vpop.f32.mrf.mxu0
  %v1175 = vadd.f32 %v1147, %v1174
  %1176 = vmatmul.bf16.gmra.mxu0 %v444
  %v1177 = vpop.f32.mrf.mxu0
  %v1178 = vadd.f32 %v1150, %v1177
  %v1179 = vpop.f32.mrf.mxu0
  %v1180 = vadd.f32 %v1152, %v1179
  %1181 = vmatmul.bf16.gmra.mxu0 %v457
  %v1182 = vpop.f32.mrf.mxu0
  %v1183 = vadd.f32 %v1155, %v1182
  %v1184 = vpop.f32.mrf.mxu0
  %1185 = vdwg.mxu0
  %1186 = vmatpush.bf16.msra.mxu0 %v940
  %1187 = vmatpush.bf16.msra.mxu0 %v939
  %1188 = vmatpush.bf16.msra.mxu0 %v938
  %1189 = vmatpush.bf16.msra.mxu0 %v937
  %1190 = vmatpush.bf16.msra.mxu0 %v936
  %1191 = vmatpush.bf16.msra.mxu0 %v935
  %1192 = vmatpush.bf16.msra.mxu0 %v934
  %1193 = vmatpush.bf16.msra.mxu0 %v933
  %1194 = vmatmul.bf16.gmra.mxu0 %v419
  %v1195 = vpop.f32.mrf.mxu0
  %v1196 = vadd.f32 %v1168, %v1195
  %v1197 = vpop.f32.mrf.mxu0
  %v1198 = vadd.f32 %v1170, %v1197
  %1199 = vmatmul.bf16.gmra.mxu0 %v432
  %v1200 = vpop.f32.mrf.mxu0
  %v1201 = vadd.f32 %v1173, %v1200
  %v1202 = vpop.f32.mrf.mxu0
  %v1203 = vadd.f32 %v1175, %v1202
  %1204 = vmatmul.bf16.gmra.mxu0 %v445
  %v1205 = vpop.f32.mrf.mxu0
  %v1206 = vadd.f32 %v1178, %v1205
  %v1207 = vpop.f32.mrf.mxu0
  %v1208 = vadd.f32 %v1180, %v1207
  %1209 = vmatmul.bf16.gmra.mxu0 %v458
  %v1210 = vpop.f32.mrf.mxu0
  %v1211 = vadd.f32 %v1183, %v1210
  %v1212 = vpop.f32.mrf.mxu0
  %1213 = vdwg.mxu0
  %1214 = vmatpush.bf16.msra.mxu0 %v948
  %1215 = vmatpush.bf16.msra.mxu0 %v947
  %1216 = vmatpush.bf16.msra.mxu0 %v946
  %1217 = vmatpush.bf16.msra.mxu0 %v945
  %1218 = vmatpush.bf16.msra.mxu0 %v944
  %1219 = vmatpush.bf16.msra.mxu0 %v943
  %1220 = vmatpush.bf16.msra.mxu0 %v942
  %1221 = vmatpush.bf16.msra.mxu0 %v941
  %1222 = vmatmul.bf16.gmra.mxu0 %v420
  %v1223 = vpop.f32.mrf.mxu0
  %v1224 = vadd.f32 %v1196, %v1223
  %v1225 = vpop.f32.mrf.mxu0
  %v1226 = vadd.f32 %v1198, %v1225
  %1227 = vmatmul.bf16.gmra.mxu0 %v433
  %v1228 = vpop.f32.mrf.mxu0
  %v1229 = vadd.f32 %v1201, %v1228
  %v1230 = vpop.f32.mrf.mxu0
  %v1231 = vadd.f32 %v1203, %v1230
  %1232 = vmatmul.bf16.gmra.mxu0 %v446
  %v1233 = vpop.f32.mrf.mxu0
  %v1234 = vadd.f32 %v1206, %v1233
  %v1235 = vpop.f32.mrf.mxu0
  %v1236 = vadd.f32 %v1208, %v1235
  %1237 = vmatmul.bf16.gmra.mxu0 %v459
  %v1238 = vpop.f32.mrf.mxu0
  %v1239 = vadd.f32 %v1211, %v1238
  %v1240 = vpop.f32.mrf.mxu0
  %1241 = vdwg.mxu0
  %1242 = vmatpush.bf16.msra.mxu0 %v956
  %1243 = vmatpush.bf16.msra.mxu0 %v955
  %1244 = vmatpush.bf16.msra.mxu0 %v954
  %1245 = vmatpush.bf16.msra.mxu0 %v953
  %1246 = vmatpush.bf16.msra.mxu0 %v952
  %1247 = vmatpush.bf16.msra.mxu0 %v951
  %1248 = vmatpush.bf16.msra.mxu0 %v950
  %1249 = vmatpush.bf16.msra.mxu0 %v949
  %1250 = vmatmul.bf16.gmra.mxu0 %v421
  %v1251 = vpop.f32.mrf.mxu0
  %v1252 = vadd.f32 %v1224, %v1251
  %v1253 = vpop.f32.mrf.mxu0
  %v1254 = vadd.f32 %v1226, %v1253
  %1255 = vmatmul.bf16.gmra.mxu0 %v434
  %v1256 = vpop.f32.mrf.mxu0
  %v1257 = vadd.f32 %v1229, %v1256
  %v1258 = vpop.f32.mrf.mxu0
  %v1259 = vadd.f32 %v1231, %v1258
  %1260 = vmatmul.bf16.gmra.mxu0 %v447
  %v1261 = vpop.f32.mrf.mxu0
  %v1262 = vadd.f32 %v1234, %v1261
  %v1263 = vpop.f32.mrf.mxu0
  %v1264 = vadd.f32 %v1236, %v1263
  %1265 = vmatmul.bf16.gmra.mxu0 %v460
  %v1266 = vpop.f32.mrf.mxu0
  %v1267 = vadd.f32 %v1239, %v1266
  %v1268 = vpop.f32.mrf.mxu0
  %1269 = vdwg.mxu0
  %1270 = vmatpush.bf16.msra.mxu0 %v964
  %1271 = vmatpush.bf16.msra.mxu0 %v963
  %1272 = vmatpush.bf16.msra.mxu0 %v962
  %1273 = vmatpush.bf16.msra.mxu0 %v961
  %1274 = vmatpush.bf16.msra.mxu0 %v960
  %1275 = vmatpush.bf16.msra.mxu0 %v959
  %1276 = vmatpush.bf16.msra.mxu0 %v958
  %1277 = vmatpush.bf16.msra.mxu0 %v957
  %1278 = vmatmul.bf16.gmra.mxu0 %v422
  %v1279 = vpop.f32.mrf.mxu0
  %v1280 = vadd.f32 %v1252, %v1279
  %v1281 = vpop.f32.mrf.mxu0
  %v1282 = vadd.f32 %v1254, %v1281
  %1283 = vmatmul.bf16.gmra.mxu0 %v435
  %v1284 = vpop.f32.mrf.mxu0
  %v1285 = vadd.f32 %v1257, %v1284
  %v1286 = vpop.f32.mrf.mxu0
  %v1287 = vadd.f32 %v1259, %v1286
  %1288 = vmatmul.bf16.gmra.mxu0 %v448
  %v1289 = vpop.f32.mrf.mxu0
  %v1290 = vadd.f32 %v1262, %v1289
  %v1291 = vpop.f32.mrf.mxu0
  %v1292 = vadd.f32 %v1264, %v1291
  %1293 = vmatmul.bf16.gmra.mxu0 %v461
  %v1294 = vpop.f32.mrf.mxu0
  %v1295 = vadd.f32 %v1267, %v1294
  %v1296 = vpop.f32.mrf.mxu0
  %1297 = vdwg.mxu0
  %1298 = vmatpush.bf16.msra.mxu0 %v972
  %1299 = vmatpush.bf16.msra.mxu0 %v971
  %1300 = vmatpush.bf16.msra.mxu0 %v970
  %1301 = vmatpush.bf16.msra.mxu0 %v969
  %1302 = vmatpush.bf16.msra.mxu0 %v968
  %1303 = vmatpush.bf16.msra.mxu0 %v967
  %1304 = vmatpush.bf16.msra.mxu0 %v966
  %1305 = vmatpush.bf16.msra.mxu0 %v965
  %1306 = vmatmul.bf16.gmra.mxu0 %v423
  %v1307 = vpop.f32.mrf.mxu0
  %v1308 = vadd.f32 %v1280, %v1307
  %v1309 = vpop.f32.mrf.mxu0
  %v1310 = vadd.f32 %v1282, %v1309
  %1311 = vmatmul.bf16.gmra.mxu0 %v436
  %v1312 = vpop.f32.mrf.mxu0
  %v1313 = vadd.f32 %v1285, %v1312
  %v1314 = vpop.f32.mrf.mxu0
  %v1315 = vadd.f32 %v1287, %v1314
  %1316 = vmatmul.bf16.gmra.mxu0 %v449
  %v1317 = vpop.f32.mrf.mxu0
  %v1318 = vadd.f32 %v1290, %v1317
  %v1319 = vpop.f32.mrf.mxu0
  %v1320 = vadd.f32 %v1292, %v1319
  %1321 = vmatmul.bf16.gmra.mxu0 %v462
  %v1322 = vpop.f32.mrf.mxu0
  %v1323 = vadd.f32 %v1295, %v1322
  %v1324 = vpop.f32.mrf.mxu0
  %1325 = vdwg.mxu0
  %1326 = vmatpush.bf16.msra.mxu0 %v980
  %1327 = vmatpush.bf16.msra.mxu0 %v979
  %1328 = vmatpush.bf16.msra.mxu0 %v978
  %1329 = vmatpush.bf16.msra.mxu0 %v977
  %1330 = vmatpush.bf16.msra.mxu0 %v976
  %1331 = vmatpush.bf16.msra.mxu0 %v975
  %1332 = vmatpush.bf16.msra.mxu0 %v974
  %1333 = vmatpush.bf16.msra.mxu0 %v973
  %1334 = vmatmul.bf16.gmra.mxu0 %v424
  %v1335 = vpop.f32.mrf.mxu0
  %v1336 = vadd.f32 %v1308, %v1335
  %v1337 = vpop.f32.mrf.mxu0
  %v1338 = vadd.f32 %v1310, %v1337
  %1339 = vmatmul.bf16.gmra.mxu0 %v437
  %v1340 = vpop.f32.mrf.mxu0
  %v1341 = vadd.f32 %v1313, %v1340
  %v1342 = vpop.f32.mrf.mxu0
  %v1343 = vadd.f32 %v1315, %v1342
  %1344 = vmatmul.bf16.gmra.mxu0 %v450
  %v1345 = vpop.f32.mrf.mxu0
  %v1346 = vadd.f32 %v1318, %v1345
  %v1347 = vpop.f32.mrf.mxu0
  %v1348 = vadd.f32 %v1320, %v1347
  %1349 = vmatmul.bf16.gmra.mxu0 %v463
  %v1350 = vpop.f32.mrf.mxu0
  %v1351 = vadd.f32 %v1323, %v1350
  %v1352 = vpop.f32.mrf.mxu0
  %1353 = vdwg.mxu0
  %1354 = vmatpush.bf16.msra.mxu0 %v988
  %1355 = vmatpush.bf16.msra.mxu0 %v987
  %1356 = vmatpush.bf16.msra.mxu0 %v986
  %1357 = vmatpush.bf16.msra.mxu0 %v985
  %1358 = vmatpush.bf16.msra.mxu0 %v984
  %1359 = vmatpush.bf16.msra.mxu0 %v983
  %1360 = vmatpush.bf16.msra.mxu0 %v982
  %1361 = vmatpush.bf16.msra.mxu0 %v981
  %1362 = vmatmul.bf16.gmra.mxu0 %v425
  %v1363 = vpop.f32.mrf.mxu0
  %v1364 = vadd.f32 %v1336, %v1363
  %v1365 = vpop.f32.mrf.mxu0
  %v1366 = vadd.f32 %v1338, %v1365
  %1367 = vmatmul.bf16.gmra.mxu0 %v438
  %v1368 = vpop.f32.mrf.mxu0
  %v1369 = vadd.f32 %v1341, %v1368
  %v1370 = vpop.f32.mrf.mxu0
  %v1371 = vadd.f32 %v1343, %v1370
  %1372 = vmatmul.bf16.gmra.mxu0 %v451
  %v1373 = vpop.f32.mrf.mxu0
  %v1374 = vadd.f32 %v1346, %v1373
  %v1375 = vpop.f32.mrf.mxu0
  %v1376 = vadd.f32 %v1348, %v1375
  %1377 = vmatmul.bf16.gmra.mxu0 %v464
  %v1378 = vpop.f32.mrf.mxu0
  %v1379 = vadd.f32 %v1351, %v1378
  %v1380 = vpop.f32.mrf.mxu0
  %1381 = vdwg.mxu0
  %1382 = vmatpush.bf16.msra.mxu0 %v996
  %1383 = vmatpush.bf16.msra.mxu0 %v995
  %1384 = vmatpush.bf16.msra.mxu0 %v994
  %1385 = vmatpush.bf16.msra.mxu0 %v993
  %1386 = vmatpush.bf16.msra.mxu0 %v992
  %1387 = vmatpush.bf16.msra.mxu0 %v991
  %1388 = vmatpush.bf16.msra.mxu0 %v990
  %1389 = vmatpush.bf16.msra.mxu0 %v989
  %1390 = vmatmul.bf16.gmra.mxu0 %v426
  %v1391 = vpop.f32.mrf.mxu0
  %v1392 = vadd.f32 %v1364, %v1391
  %v1393 = vpop.f32.mrf.mxu0
  %v1394 = vadd.f32 %v1366, %v1393
  %1395 = vmatmul.bf16.gmra.mxu0 %v439
  %v1396 = vpop.f32.mrf.mxu0
  %v1397 = vadd.f32 %v1369, %v1396
  %v1398 = vpop.f32.mrf.mxu0
  %v1399 = vadd.f32 %v1371, %v1398
  %1400 = vmatmul.bf16.gmra.mxu0 %v452
  %v1401 = vpop.f32.mrf.mxu0
  %v1402 = vadd.f32 %v1374, %v1401
  %v1403 = vpop.f32.mrf.mxu0
  %v1404 = vadd.f32 %v1376, %v1403
  %1405 = vmatmul.bf16.gmra.mxu0 %v465
  %v1406 = vpop.f32.mrf.mxu0
  %v1407 = vadd.f32 %v1379, %v1406
  %v1408 = vpop.f32.mrf.mxu0
  %1409 = vdwg.mxu0
  %1410 = vmatpush.bf16.msra.mxu0 %v1004
  %1411 = vmatpush.bf16.msra.mxu0 %v1003
  %1412 = vmatpush.bf16.msra.mxu0 %v1002
  %1413 = vmatpush.bf16.msra.mxu0 %v1001
  %1414 = vmatpush.bf16.msra.mxu0 %v1000
  %1415 = vmatpush.bf16.msra.mxu0 %v999
  %1416 = vmatpush.bf16.msra.mxu0 %v998
  %1417 = vmatpush.bf16.msra.mxu0 %v997
  %1418 = vmatmul.bf16.gmra.mxu0 %v427
  %v1419 = vpop.f32.mrf.mxu0
  %v1420 = vadd.f32 %v1392, %v1419
  %v1421 = vpop.f32.mrf.mxu0
  %v1422 = vadd.f32 %v1394, %v1421
  %1423 = vmatmul.bf16.gmra.mxu0 %v440
  %v1424 = vpop.f32.mrf.mxu0
  %v1425 = vadd.f32 %v1397, %v1424
  %v1426 = vpop.f32.mrf.mxu0
  %v1427 = vadd.f32 %v1399, %v1426
  %1428 = vmatmul.bf16.gmra.mxu0 %v453
  %v1429 = vpop.f32.mrf.mxu0
  %v1430 = vadd.f32 %v1402, %v1429
  %v1431 = vpop.f32.mrf.mxu0
  %v1432 = vadd.f32 %v1404, %v1431
  %1433 = vmatmul.bf16.gmra.mxu0 %v466
  %v1434 = vpop.f32.mrf.mxu0
  %v1435 = vadd.f32 %v1407, %v1434
  %v1436 = vpop.f32.mrf.mxu0
  %1437 = vdwg.mxu0
  %1438 = vmatpush.bf16.msra.mxu0 %v1012
  %1439 = vmatpush.bf16.msra.mxu0 %v1011
  %1440 = vmatpush.bf16.msra.mxu0 %v1010
  %1441 = vmatpush.bf16.msra.mxu0 %v1009
  %1442 = vmatpush.bf16.msra.mxu0 %v1008
  %1443 = vmatpush.bf16.msra.mxu0 %v1007
  %1444 = vmatpush.bf16.msra.mxu0 %v1006
  %1445 = vmatpush.bf16.msra.mxu0 %v1005
  %1446 = vmatmul.bf16.gmra.mxu0 %v428
  %v1447 = vpop.f32.mrf.mxu0
  %v1448 = vadd.f32 %v1420, %v1447
  %v1449 = vpop.f32.mrf.mxu0
  %v1450 = vadd.f32 %v1422, %v1449
  %1451 = vmatmul.bf16.gmra.mxu0 %v441
  %v1452 = vpop.f32.mrf.mxu0
  %v1453 = vadd.f32 %v1425, %v1452
  %v1454 = vpop.f32.mrf.mxu0
  %v1455 = vadd.f32 %v1427, %v1454
  %1456 = vmatmul.bf16.gmra.mxu0 %v454
  %v1457 = vpop.f32.mrf.mxu0
  %v1458 = vadd.f32 %v1430, %v1457
  %v1459 = vpop.f32.mrf.mxu0
  %v1460 = vadd.f32 %v1432, %v1459
  %1461 = vmatmul.bf16.gmra.mxu0 %v467
  %v1462 = vpop.f32.mrf.mxu0
  %v1463 = vadd.f32 %v1435, %v1462
  %v1464 = vpop.f32.mrf.mxu0
  %1465 = vdwg.mxu0
  %1466 = vmatpush.bf16.msra.mxu0 0
  %1467 = vmatpush.bf16.msra.mxu0 0
  %1468 = vmatpush.bf16.msra.mxu0 0
  %1469 = vmatpush.bf16.msra.mxu0 0
  %1470 = vmatpush.bf16.msra.mxu0 %v1016
  %1471 = vmatpush.bf16.msra.mxu0 %v1015
  %1472 = vmatpush.bf16.msra.mxu0 %v1014
  %1473 = vmatpush.bf16.msra.mxu0 %v1013
  %1474 = vmatmul.bf16.gmra.mxu0 %v1119
  %v1475 = vpop.f32.mrf.mxu0
  %v1476 = vadd.f32 %v1448, %v1475
  %v1477 = vpop.f32.mrf.mxu0
  %v1478 = vadd.f32 %v1450, %v1477
  %1479 = vmatmul.bf16.gmra.mxu0 %v1122
  %v1480 = vpop.f32.mrf.mxu0
  %v1481 = vadd.f32 %v1453, %v1480
  %v1482 = vpop.f32.mrf.mxu0
  %v1483 = vadd.f32 %v1455, %v1482
  %1484 = vmatmul.bf16.gmra.mxu0 %v1125
  %v1485 = vpop.f32.mrf.mxu0
  %v1486 = vadd.f32 %v1458, %v1485
  %v1487 = vpop.f32.mrf.mxu0
  %v1488 = vadd.f32 %v1460, %v1487
  %1489 = vmatmul.bf16.gmra.mxu0 %v1128
  %v1490 = vpop.f32.mrf.mxu0
  %v1491 = vadd.f32 %v1463, %v1490
  %v1492 = vpop.f32.mrf.mxu0
  %1493 = vdwg.mxu0
  %v1494 = vmax.f32 %v1476, 0.0
  %v1495 = vmax.f32 %v1478, 0.0
  %v1496 = vmax.f32 %v1481, 0.0
  %v1497 = vmax.f32 %v1483, 0.0
  %v1498 = vmax.f32 %v1486, 0.0
  %v1499 = vmax.f32 %v1488, 0.0
  %v1500 = vmax.f32 %v1491, 0.0
  %v1501 = vld [vmem:[%s1] sm:$0xff]
  %v1502 = vld [vmem:[%s1 + $0x8] sm:$0xff]
  %v1503 = vld [vmem:[%s1 + $0x10] sm:$0xff]
  %v1504 = vld [vmem:[%s1 + $0x18] sm:$0xff]
  %v1505 = vld [vmem:[%s1 + $0x20] sm:$0xff]
  %v1506 = vld [vmem:[%s1 + $0x28] sm:$0xff]
  %v1507 = vld [vmem:[%s1 + $0x30] sm:$0xf]
  %v1508 = vld [vmem:[%s1 + $0x34] sm:$0xff]
  %v1509 = vld [vmem:[%s1 + $0x3c] sm:$0xff]
  %v1510 = vld [vmem:[%s1 + $0x44] sm:$0xff]
  %v1511 = vld [vmem:[%s1 + $0x4c] sm:$0xff]
  %v1512 = vld [vmem:[%s1 + $0x54] sm:$0xff]
  %v1513 = vld [vmem:[%s1 + $0x5c] sm:$0xff]
  %v1514 = vld [vmem:[%s1 + $0x64] sm:$0xf]
  %v1515 = vld [vmem:[%s1 + $0x68] sm:$0xff]
  %v1516 = vld [vmem:[%s1 + $0x70] sm:$0xff]
  %v1517 = vld [vmem:[%s1 + $0x78] sm:$0xff]
  %v1518 = vld [vmem:[%s1 + $0x80] sm:$0xff]
  %v1519 = vld [vmem:[%s1 + $0x88] sm:$0xff]
  %v1520 = vld [vmem:[%s1 + $0x90] sm:$0xff]
  %v1521 = vld [vmem:[%s1 + $0x98] sm:$0xf]
  %v1522 = vld [vmem:[%s1 + $0x9c] sm:$0xff]
  %v1523 = vld [vmem:[%s1 + $0xa4] sm:$0xff]
  %v1524 = vld [vmem:[%s1 + $0xac] sm:$0xff]
  %v1525 = vld [vmem:[%s1 + $0xb4] sm:$0xff]
  %v1526 = vld [vmem:[%s1 + $0xbc] sm:$0xff]
  %v1527 = vld [vmem:[%s1 + $0xc4] sm:$0xff]
  %v1528 = vld [vmem:[%s1 + $0xcc] sm:$0xf]
  %v1529 = vld [vmem:[%s1 + $0xd0] sm:$0xff]
  %v1530 = vld [vmem:[%s1 + $0xd8] sm:$0xff]
  %v1531 = vld [vmem:[%s1 + $0xe0] sm:$0xff]
  %v1532 = vld [vmem:[%s1 + $0xe8] sm:$0xff]
  %v1533 = vld [vmem:[%s1 + $0xf0] sm:$0xff]
  %v1534 = vld [vmem:[%s1 + $0xf8] sm:$0xff]
  %v1535 = vld [vmem:[%s1 + $0x100] sm:$0xf]
  %v1536 = vld [vmem:[%s1 + $0x104] sm:$0xff]
  %v1537 = vld [vmem:[%s1 + $0x10c] sm:$0xff]
  %v1538 = vld [vmem:[%s1 + $0x114] sm:$0xff]
  %v1539 = vld [vmem:[%s1 + $0x11c] sm:$0xff]
  %v1540 = vld [vmem:[%s1 + $0x124] sm:$0xff]
  %v1541 = vld [vmem:[%s1 + $0x12c] sm:$0xff]
  %v1542 = vld [vmem:[%s1 + $0x134] sm:$0xf]
  %v1543 = vld [vmem:[%s1 + $0x138] sm:$0x11]
  %v1544 = vld [vmem:[%s1 + $0x140] sm:$0x11]
  %v1545 = vld [vmem:[%s1 + $0x148] sm:$0x11]
  %v1546 = vld [vmem:[%s1 + $0x150] sm:$0x11]
  %v1547 = vld [vmem:[%s1 + $0x158] sm:$0x11]
  %v1548 = vld [vmem:[%s1 + $0x160] sm:$0x11]
  %v1549 = vld [vmem:[%s1 + $0x168] sm:$0x1]
  %v1599 = vunpack.c.l.b16 %v1501
  %v1600 = vunpack.c.h.b16 %v1501
  %v1601 = vunpack.c.l.b16 %v1502
  %v1602 = vunpack.c.h.b16 %v1502
  %v1603 = vunpack.c.l.b16 %v1503
  %v1604 = vunpack.c.h.b16 %v1503
  %v1605 = vunpack.c.l.b16 %v1504
  %v1606 = vunpack.c.h.b16 %v1504
  %v1607 = vunpack.c.l.b16 %v1505
  %v1608 = vunpack.c.h.b16 %v1505
  %v1609 = vunpack.c.l.b16 %v1506
  %v1610 = vunpack.c.h.b16 %v1506
  %v1611 = vunpack.c.l.b16 %v1507
  %v1612 = vunpack.c.l.b16 %v1508
  %v1613 = vunpack.c.h.b16 %v1508
  %v1614 = vunpack.c.l.b16 %v1509
  %v1615 = vunpack.c.h.b16 %v1509
  %v1616 = vunpack.c.l.b16 %v1510
  %v1617 = vunpack.c.h.b16 %v1510
  %v1618 = vunpack.c.l.b16 %v1511
  %v1619 = vunpack.c.h.b16 %v1511
  %v1620 = vunpack.c.l.b16 %v1512
  %v1621 = vunpack.c.h.b16 %v1512
  %v1622 = vunpack.c.l.b16 %v1513
  %v1623 = vunpack.c.h.b16 %v1513
  %v1624 = vunpack.c.l.b16 %v1514
  %v1625 = vunpack.c.l.b16 %v1515
  %v1626 = vunpack.c.h.b16 %v1515
  %v1627 = vunpack.c.l.b16 %v1516
  %v1628 = vunpack.c.h.b16 %v1516
  %v1629 = vunpack.c.l.b16 %v1517
  %v1630 = vunpack.c.h.b16 %v1517
  %v1631 = vunpack.c.l.b16 %v1518
  %v1632 = vunpack.c.h.b16 %v1518
  %v1633 = vunpack.c.l.b16 %v1519
  %v1634 = vunpack.c.h.b16 %v1519
  %v1635 = vunpack.c.l.b16 %v1520
  %v1636 = vunpack.c.h.b16 %v1520
  %v1637 = vunpack.c.l.b16 %v1521
  %v1638 = vunpack.c.l.b16 %v1522
  %v1639 = vunpack.c.h.b16 %v1522
  %v1640 = vunpack.c.l.b16 %v1523
  %v1641 = vunpack.c.h.b16 %v1523
  %v1642 = vunpack.c.l.b16 %v1524
  %v1643 = vunpack.c.h.b16 %v1524
  %v1644 = vunpack.c.l.b16 %v1525
  %v1645 = vunpack.c.h.b16 %v1525
  %v1646 = vunpack.c.l.b16 %v1526
  %v1647 = vunpack.c.h.b16 %v1526
  %v1648 = vunpack.c.l.b16 %v1527
  %v1649 = vunpack.c.h.b16 %v1527
  %v1650 = vunpack.c.l.b16 %v1528
  %v1651 = vunpack.c.l.b16 %v1529
  %v1652 = vunpack.c.h.b16 %v1529
  %v1653 = vunpack.c.l.b16 %v1530
  %v1654 = vunpack.c.h.b16 %v1530
  %v1655 = vunpack.c.l.b16 %v1531
  %v1656 = vunpack.c.h.b16 %v1531
  %v1657 = vunpack.c.l.b16 %v1532
  %v1658 = vunpack.c.h.b16 %v1532
  %v1659 = vunpack.c.l.b16 %v1533
  %v1660 = vunpack.c.h.b16 %v1533
  %v1661 = vunpack.c.l.b16 %v1534
  %v1662 = vunpack.c.h.b16 %v1534
  %v1663 = vunpack.c.l.b16 %v1535
  %v1664 = vunpack.c.l.b16 %v1536
  %v1665 = vunpack.c.h.b16 %v1536
  %v1666 = vunpack.c.l.b16 %v1537
  %v1667 = vunpack.c.h.b16 %v1537
  %v1668 = vunpack.c.l.b16 %v1538
  %v1669 = vunpack.c.h.b16 %v1538
  %v1670 = vunpack.c.l.b16 %v1539
  %v1671 = vunpack.c.h.b16 %v1539
  %v1672 = vunpack.c.l.b16 %v1540
  %v1673 = vunpack.c.h.b16 %v1540
  %v1674 = vunpack.c.l.b16 %v1541
  %v1675 = vunpack.c.h.b16 %v1541
  %v1676 = vunpack.c.l.b16 %v1542
  %v1677 = vunpack.c.l.b16 %v1543
  %v1678 = vunpack.c.h.b16 %v1543
  %v1679 = vunpack.c.l.b16 %v1544
  %v1680 = vunpack.c.h.b16 %v1544
  %v1681 = vunpack.c.l.b16 %v1545
  %v1682 = vunpack.c.h.b16 %v1545
  %v1683 = vunpack.c.l.b16 %v1546
  %v1684 = vunpack.c.h.b16 %v1546
  %v1685 = vunpack.c.l.b16 %v1547
  %v1686 = vunpack.c.h.b16 %v1547
  %v1687 = vunpack.c.l.b16 %v1548
  %v1688 = vunpack.c.h.b16 %v1548
  %v1689 = vunpack.c.l.b16 %v1549
  %v1690 = vpack.c.b16 %v1612, %v1599
  %v1691 = vpack.c.b16 %v1613, %v1600
  %v1692 = vpack.c.b16 %v1614, %v1601
  %v1693 = vpack.c.b16 %v1615, %v1602
  %v1694 = vpack.c.b16 %v1616, %v1603
  %v1695 = vpack.c.b16 %v1617, %v1604
  %v1696 = vpack.c.b16 %v1618, %v1605
  %v1697 = vpack.c.b16 %v1619, %v1606
  %v1698 = vpack.c.b16 %v1620, %v1607
  %v1699 = vpack.c.b16 %v1621, %v1608
  %v1700 = vpack.c.b16 %v1622, %v1609
  %v1701 = vpack.c.b16 %v1623, %v1610
  %v1702 = vpack.c.b16 %v1624, %v1611
  %v1703 = vpack.c.b16 %v1638, %v1625
  %v1704 = vpack.c.b16 %v1639, %v1626
  %v1705 = vpack.c.b16 %v1640, %v1627
  %v1706 = vpack.c.b16 %v1641, %v1628
  %v1707 = vpack.c.b16 %v1642, %v1629
  %v1708 = vpack.c.b16 %v1643, %v1630
  %v1709 = vpack.c.b16 %v1644, %v1631
  %v1710 = vpack.c.b16 %v1645, %v1632
  %v1711 = vpack.c.b16 %v1646, %v1633
  %v1712 = vpack.c.b16 %v1647, %v1634
  %v1713 = vpack.c.b16 %v1648, %v1635
  %v1714 = vpack.c.b16 %v1649, %v1636
  %v1715 = vpack.c.b16 %v1650, %v1637
  %v1716 = vpack.c.b16 %v1664, %v1651
  %v1717 = vpack.c.b16 %v1665, %v1652
  %v1718 = vpack.c.b16 %v1666, %v1653
  %v1719 = vpack.c.b16 %v1667, %v1654
  %v1720 = vpack.c.b16 %v1668, %v1655
  %v1721 = vpack.c.b16 %v1669, %v1656
  %v1722 = vpack.c.b16 %v1670, %v1657
  %v1723 = vpack.c.b16 %v1671, %v1658
  %v1724 = vpack.c.b16 %v1672, %v1659
  %v1725 = vpack.c.b16 %v1673, %v1660
  %v1726 = vpack.c.b16 %v1674, %v1661
  %v1727 = vpack.c.b16 %v1675, %v1662
  %v1728 = vpack.c.b16 %v1676, %v1663
  %v1729 = vpack.c.b16 %v1677, %v1677
  %v1730 = vpack.c.b16 %v1678, %v1678
  %v1731 = vpack.c.b16 %v1679, %v1679
  %v1732 = vpack.c.b16 %v1680, %v1680
  %v1733 = vpack.c.b16 %v1681, %v1681
  %v1734 = vpack.c.b16 %v1682, %v1682
  %v1735 = vpack.c.b16 %v1683, %v1683
  %v1736 = vpack.c.b16 %v1684, %v1684
  %v1737 = vpack.c.b16 %v1685, %v1685
  %v1738 = vpack.c.b16 %v1686, %v1686
  %v1739 = vpack.c.b16 %v1687, %v1687
  %v1740 = vpack.c.b16 %v1688, %v1688
  %v1741 = vpack.c.b16 %v1689, %v1689
  %v1791 = vsel %vm1117, %v1702, 0
  %v1794 = vsel %vm1117, %v1715, 0
  %v1797 = vsel %vm1117, %v1728, 0
  %v1800 = vsel %vm1117, %v1741, 0
  %1802 = vmatpush.bf16.msra.mxu0 %v924
  %1803 = vmatpush.bf16.msra.mxu0 %v923
  %1804 = vmatpush.bf16.msra.mxu0 %v922
  %1805 = vmatpush.bf16.msra.mxu0 %v921
  %1806 = vmatpush.bf16.msra.mxu0 %v920
  %1807 = vmatpush.bf16.msra.mxu0 %v919
  %1808 = vmatpush.bf16.msra.mxu0 %v918
  %1809 = vmatpush.bf16.msra.mxu0 %v917
  %1810 = vmatmul.bf16.gmra.mxu0 %v1690
  %v1811 = vpop.f32.mrf.mxu0
  %v1812 = vadd.f32 %v275, %v1811
  %v1813 = vpop.f32.mrf.mxu0
  %v1814 = vadd.f32 %v275, %v1813
  %1815 = vmatmul.bf16.gmra.mxu0 %v1703
  %v1816 = vpop.f32.mrf.mxu0
  %v1817 = vadd.f32 %v275, %v1816
  %v1818 = vpop.f32.mrf.mxu0
  %v1819 = vadd.f32 %v275, %v1818
  %1820 = vmatmul.bf16.gmra.mxu0 %v1716
  %v1821 = vpop.f32.mrf.mxu0
  %v1822 = vadd.f32 %v275, %v1821
  %v1823 = vpop.f32.mrf.mxu0
  %v1824 = vadd.f32 %v275, %v1823
  %1825 = vmatmul.bf16.gmra.mxu0 %v1729
  %v1826 = vpop.f32.mrf.mxu0
  %v1827 = vadd.f32 %v275, %v1826
  %v1828 = vpop.f32.mrf.mxu0
  %1829 = vdwg.mxu0
  %1830 = vmatpush.bf16.msra.mxu0 %v932
  %1831 = vmatpush.bf16.msra.mxu0 %v931
  %1832 = vmatpush.bf16.msra.mxu0 %v930
  %1833 = vmatpush.bf16.msra.mxu0 %v929
  %1834 = vmatpush.bf16.msra.mxu0 %v928
  %1835 = vmatpush.bf16.msra.mxu0 %v927
  %1836 = vmatpush.bf16.msra.mxu0 %v926
  %1837 = vmatpush.bf16.msra.mxu0 %v925
  %1838 = vmatmul.bf16.gmra.mxu0 %v1691
  %v1839 = vpop.f32.mrf.mxu0
  %v1840 = vadd.f32 %v1812, %v1839
  %v1841 = vpop.f32.mrf.mxu0
  %v1842 = vadd.f32 %v1814, %v1841
  %1843 = vmatmul.bf16.gmra.mxu0 %v1704
  %v1844 = vpop.f32.mrf.mxu0
  %v1845 = vadd.f32 %v1817, %v1844
  %v1846 = vpop.f32.mrf.mxu0
  %v1847 = vadd.f32 %v1819, %v1846
  %1848 = vmatmul.bf16.gmra.mxu0 %v1717
  %v1849 = vpop.f32.mrf.mxu0
  %v1850 = vadd.f32 %v1822, %v1849
  %v1851 = vpop.f32.mrf.mxu0
  %v1852 = vadd.f32 %v1824, %v1851
  %1853 = vmatmul.bf16.gmra.mxu0 %v1730
  %v1854 = vpop.f32.mrf.mxu0
  %v1855 = vadd.f32 %v1827, %v1854
  %v1856 = vpop.f32.mrf.mxu0
  %1857 = vdwg.mxu0
  %1858 = vmatpush.bf16.msra.mxu0 %v940
  %1859 = vmatpush.bf16.msra.mxu0 %v939
  %1860 = vmatpush.bf16.msra.mxu0 %v938
  %1861 = vmatpush.bf16.msra.mxu0 %v937
  %1862 = vmatpush.bf16.msra.mxu0 %v936
  %1863 = vmatpush.bf16.msra.mxu0 %v935
  %1864 = vmatpush.bf16.msra.mxu0 %v934
  %1865 = vmatpush.bf16.msra.mxu0 %v933
  %1866 = vmatmul.bf16.gmra.mxu0 %v1692
  %v1867 = vpop.f32.mrf.mxu0
  %v1868 = vadd.f32 %v1840, %v1867
  %v1869 = vpop.f32.mrf.mxu0
  %v1870 = vadd.f32 %v1842, %v1869
  %1871 = vmatmul.bf16.gmra.mxu0 %v1705
  %v1872 = vpop.f32.mrf.mxu0
  %v1873 = vadd.f32 %v1845, %v1872
  %v1874 = vpop.f32.mrf.mxu0
  %v1875 = vadd.f32 %v1847, %v1874
  %1876 = vmatmul.bf16.gmra.mxu0 %v1718
  %v1877 = vpop.f32.mrf.mxu0
  %v1878 = vadd.f32 %v1850, %v1877
  %v1879 = vpop.f32.mrf.mxu0
  %v1880 = vadd.f32 %v1852, %v1879
  %1881 = vmatmul.bf16.gmra.mxu0 %v1731
  %v1882 = vpop.f32.mrf.mxu0
  %v1883 = vadd.f32 %v1855, %v1882
  %v1884 = vpop.f32.mrf.mxu0
  %1885 = vdwg.mxu0
  %1886 = vmatpush.bf16.msra.mxu0 %v948
  %1887 = vmatpush.bf16.msra.mxu0 %v947
  %1888 = vmatpush.bf16.msra.mxu0 %v946
  %1889 = vmatpush.bf16.msra.mxu0 %v945
  %1890 = vmatpush.bf16.msra.mxu0 %v944
  %1891 = vmatpush.bf16.msra.mxu0 %v943
  %1892 = vmatpush.bf16.msra.mxu0 %v942
  %1893 = vmatpush.bf16.msra.mxu0 %v941
  %1894 = vmatmul.bf16.gmra.mxu0 %v1693
  %v1895 = vpop.f32.mrf.mxu0
  %v1896 = vadd.f32 %v1868, %v1895
  %v1897 = vpop.f32.mrf.mxu0
  %v1898 = vadd.f32 %v1870, %v1897
  %1899 = vmatmul.bf16.gmra.mxu0 %v1706
  %v1900 = vpop.f32.mrf.mxu0
  %v1901 = vadd.f32 %v1873, %v1900
  %v1902 = vpop.f32.mrf.mxu0
  %v1903 = vadd.f32 %v1875, %v1902
  %1904 = vmatmul.bf16.gmra.mxu0 %v1719
  %v1905 = vpop.f32.mrf.mxu0
  %v1906 = vadd.f32 %v1878, %v1905
  %v1907 = vpop.f32.mrf.mxu0
  %v1908 = vadd.f32 %v1880, %v1907
  %1909 = vmatmul.bf16.gmra.mxu0 %v1732
  %v1910 = vpop.f32.mrf.mxu0
  %v1911 = vadd.f32 %v1883, %v1910
  %v1912 = vpop.f32.mrf.mxu0
  %1913 = vdwg.mxu0
  %1914 = vmatpush.bf16.msra.mxu0 %v956
  %1915 = vmatpush.bf16.msra.mxu0 %v955
  %1916 = vmatpush.bf16.msra.mxu0 %v954
  %1917 = vmatpush.bf16.msra.mxu0 %v953
  %1918 = vmatpush.bf16.msra.mxu0 %v952
  %1919 = vmatpush.bf16.msra.mxu0 %v951
  %1920 = vmatpush.bf16.msra.mxu0 %v950
  %1921 = vmatpush.bf16.msra.mxu0 %v949
  %1922 = vmatmul.bf16.gmra.mxu0 %v1694
  %v1923 = vpop.f32.mrf.mxu0
  %v1924 = vadd.f32 %v1896, %v1923
  %v1925 = vpop.f32.mrf.mxu0
  %v1926 = vadd.f32 %v1898, %v1925
  %1927 = vmatmul.bf16.gmra.mxu0 %v1707
  %v1928 = vpop.f32.mrf.mxu0
  %v1929 = vadd.f32 %v1901, %v1928
  %v1930 = vpop.f32.mrf.mxu0
  %v1931 = vadd.f32 %v1903, %v1930
  %1932 = vmatmul.bf16.gmra.mxu0 %v1720
  %v1933 = vpop.f32.mrf.mxu0
  %v1934 = vadd.f32 %v1906, %v1933
  %v1935 = vpop.f32.mrf.mxu0
  %v1936 = vadd.f32 %v1908, %v1935
  %1937 = vmatmul.bf16.gmra.mxu0 %v1733
  %v1938 = vpop.f32.mrf.mxu0
  %v1939 = vadd.f32 %v1911, %v1938
  %v1940 = vpop.f32.mrf.mxu0
  %1941 = vdwg.mxu0
  %1942 = vmatpush.bf16.msra.mxu0 %v964
  %1943 = vmatpush.bf16.msra.mxu0 %v963
  %1944 = vmatpush.bf16.msra.mxu0 %v962
  %1945 = vmatpush.bf16.msra.mxu0 %v961
  %1946 = vmatpush.bf16.msra.mxu0 %v960
  %1947 = vmatpush.bf16.msra.mxu0 %v959
  %1948 = vmatpush.bf16.msra.mxu0 %v958
  %1949 = vmatpush.bf16.msra.mxu0 %v957
  %1950 = vmatmul.bf16.gmra.mxu0 %v1695
  %v1951 = vpop.f32.mrf.mxu0
  %v1952 = vadd.f32 %v1924, %v1951
  %v1953 = vpop.f32.mrf.mxu0
  %v1954 = vadd.f32 %v1926, %v1953
  %1955 = vmatmul.bf16.gmra.mxu0 %v1708
  %v1956 = vpop.f32.mrf.mxu0
  %v1957 = vadd.f32 %v1929, %v1956
  %v1958 = vpop.f32.mrf.mxu0
  %v1959 = vadd.f32 %v1931, %v1958
  %1960 = vmatmul.bf16.gmra.mxu0 %v1721
  %v1961 = vpop.f32.mrf.mxu0
  %v1962 = vadd.f32 %v1934, %v1961
  %v1963 = vpop.f32.mrf.mxu0
  %v1964 = vadd.f32 %v1936, %v1963
  %1965 = vmatmul.bf16.gmra.mxu0 %v1734
  %v1966 = vpop.f32.mrf.mxu0
  %v1967 = vadd.f32 %v1939, %v1966
  %v1968 = vpop.f32.mrf.mxu0
  %1969 = vdwg.mxu0
  %1970 = vmatpush.bf16.msra.mxu0 %v972
  %1971 = vmatpush.bf16.msra.mxu0 %v971
  %1972 = vmatpush.bf16.msra.mxu0 %v970
  %1973 = vmatpush.bf16.msra.mxu0 %v969
  %1974 = vmatpush.bf16.msra.mxu0 %v968
  %1975 = vmatpush.bf16.msra.mxu0 %v967
  %1976 = vmatpush.bf16.msra.mxu0 %v966
  %1977 = vmatpush.bf16.msra.mxu0 %v965
  %1978 = vmatmul.bf16.gmra.mxu0 %v1696
  %v1979 = vpop.f32.mrf.mxu0
  %v1980 = vadd.f32 %v1952, %v1979
  %v1981 = vpop.f32.mrf.mxu0
  %v1982 = vadd.f32 %v1954, %v1981
  %1983 = vmatmul.bf16.gmra.mxu0 %v1709
  %v1984 = vpop.f32.mrf.mxu0
  %v1985 = vadd.f32 %v1957, %v1984
  %v1986 = vpop.f32.mrf.mxu0
  %v1987 = vadd.f32 %v1959, %v1986
  %1988 = vmatmul.bf16.gmra.mxu0 %v1722
  %v1989 = vpop.f32.mrf.mxu0
  %v1990 = vadd.f32 %v1962, %v1989
  %v1991 = vpop.f32.mrf.mxu0
  %v1992 = vadd.f32 %v1964, %v1991
  %1993 = vmatmul.bf16.gmra.mxu0 %v1735
  %v1994 = vpop.f32.mrf.mxu0
  %v1995 = vadd.f32 %v1967, %v1994
  %v1996 = vpop.f32.mrf.mxu0
  %1997 = vdwg.mxu0
  %1998 = vmatpush.bf16.msra.mxu0 %v980
  %1999 = vmatpush.bf16.msra.mxu0 %v979
  %2000 = vmatpush.bf16.msra.mxu0 %v978
  %2001 = vmatpush.bf16.msra.mxu0 %v977
  %2002 = vmatpush.bf16.msra.mxu0 %v976
  %2003 = vmatpush.bf16.msra.mxu0 %v975
  %2004 = vmatpush.bf16.msra.mxu0 %v974
  %2005 = vmatpush.bf16.msra.mxu0 %v973
  %2006 = vmatmul.bf16.gmra.mxu0 %v1697
  %v2007 = vpop.f32.mrf.mxu0
  %v2008 = vadd.f32 %v1980, %v2007
  %v2009 = vpop.f32.mrf.mxu0
  %v2010 = vadd.f32 %v1982, %v2009
  %2011 = vmatmul.bf16.gmra.mxu0 %v1710
  %v2012 = vpop.f32.mrf.mxu0
  %v2013 = vadd.f32 %v1985, %v2012
  %v2014 = vpop.f32.mrf.mxu0
  %v2015 = vadd.f32 %v1987, %v2014
  %2016 = vmatmul.bf16.gmra.mxu0 %v1723
  %v2017 = vpop.f32.mrf.mxu0
  %v2018 = vadd.f32 %v1990, %v2017
  %v2019 = vpop.f32.mrf.mxu0
  %v2020 = vadd.f32 %v1992, %v2019
  %2021 = vmatmul.bf16.gmra.mxu0 %v1736
  %v2022 = vpop.f32.mrf.mxu0
  %v2023 = vadd.f32 %v1995, %v2022
  %v2024 = vpop.f32.mrf.mxu0
  %2025 = vdwg.mxu0
  %2026 = vmatpush.bf16.msra.mxu0 %v988
  %2027 = vmatpush.bf16.msra.mxu0 %v987
  %2028 = vmatpush.bf16.msra.mxu0 %v986
  %2029 = vmatpush.bf16.msra.mxu0 %v985
  %2030 = vmatpush.bf16.msra.mxu0 %v984
  %2031 = vmatpush.bf16.msra.mxu0 %v983
  %2032 = vmatpush.bf16.msra.mxu0 %v982
  %2033 = vmatpush.bf16.msra.mxu0 %v981
  %2034 = vmatmul.bf16.gmra.mxu0 %v1698
  %v2035 = vpop.f32.mrf.mxu0
  %v2036 = vadd.f32 %v2008, %v2035
  %v2037 = vpop.f32.mrf.mxu0
  %v2038 = vadd.f32 %v2010, %v2037
  %2039 = vmatmul.bf16.gmra.mxu0 %v1711
  %v2040 = vpop.f32.mrf.mxu0
  %v2041 = vadd.f32 %v2013, %v2040
  %v2042 = vpop.f32.mrf.mxu0
  %v2043 = vadd.f32 %v2015, %v2042
  %2044 = vmatmul.bf16.gmra.mxu0 %v1724
  %v2045 = vpop.f32.mrf.mxu0
  %v2046 = vadd.f32 %v2018, %v2045
  %v2047 = vpop.f32.mrf.mxu0
  %v2048 = vadd.f32 %v2020, %v2047
  %2049 = vmatmul.bf16.gmra.mxu0 %v1737
  %v2050 = vpop.f32.mrf.mxu0
  %v2051 = vadd.f32 %v2023, %v2050
  %v2052 = vpop.f32.mrf.mxu0
  %2053 = vdwg.mxu0
  %2054 = vmatpush.bf16.msra.mxu0 %v996
  %2055 = vmatpush.bf16.msra.mxu0 %v995
  %2056 = vmatpush.bf16.msra.mxu0 %v994
  %2057 = vmatpush.bf16.msra.mxu0 %v993
  %2058 = vmatpush.bf16.msra.mxu0 %v992
  %2059 = vmatpush.bf16.msra.mxu0 %v991
  %2060 = vmatpush.bf16.msra.mxu0 %v990
  %2061 = vmatpush.bf16.msra.mxu0 %v989
  %2062 = vmatmul.bf16.gmra.mxu0 %v1699
  %v2063 = vpop.f32.mrf.mxu0
  %v2064 = vadd.f32 %v2036, %v2063
  %v2065 = vpop.f32.mrf.mxu0
  %v2066 = vadd.f32 %v2038, %v2065
  %2067 = vmatmul.bf16.gmra.mxu0 %v1712
  %v2068 = vpop.f32.mrf.mxu0
  %v2069 = vadd.f32 %v2041, %v2068
  %v2070 = vpop.f32.mrf.mxu0
  %v2071 = vadd.f32 %v2043, %v2070
  %2072 = vmatmul.bf16.gmra.mxu0 %v1725
  %v2073 = vpop.f32.mrf.mxu0
  %v2074 = vadd.f32 %v2046, %v2073
  %v2075 = vpop.f32.mrf.mxu0
  %v2076 = vadd.f32 %v2048, %v2075
  %2077 = vmatmul.bf16.gmra.mxu0 %v1738
  %v2078 = vpop.f32.mrf.mxu0
  %v2079 = vadd.f32 %v2051, %v2078
  %v2080 = vpop.f32.mrf.mxu0
  %2081 = vdwg.mxu0
  %2082 = vmatpush.bf16.msra.mxu0 %v1004
  %2083 = vmatpush.bf16.msra.mxu0 %v1003
  %2084 = vmatpush.bf16.msra.mxu0 %v1002
  %2085 = vmatpush.bf16.msra.mxu0 %v1001
  %2086 = vmatpush.bf16.msra.mxu0 %v1000
  %2087 = vmatpush.bf16.msra.mxu0 %v999
  %2088 = vmatpush.bf16.msra.mxu0 %v998
  %2089 = vmatpush.bf16.msra.mxu0 %v997
  %2090 = vmatmul.bf16.gmra.mxu0 %v1700
  %v2091 = vpop.f32.mrf.mxu0
  %v2092 = vadd.f32 %v2064, %v2091
  %v2093 = vpop.f32.mrf.mxu0
  %v2094 = vadd.f32 %v2066, %v2093
  %2095 = vmatmul.bf16.gmra.mxu0 %v1713
  %v2096 = vpop.f32.mrf.mxu0
  %v2097 = vadd.f32 %v2069, %v2096
  %v2098 = vpop.f32.mrf.mxu0
  %v2099 = vadd.f32 %v2071, %v2098
  %2100 = vmatmul.bf16.gmra.mxu0 %v1726
  %v2101 = vpop.f32.mrf.mxu0
  %v2102 = vadd.f32 %v2074, %v2101
  %v2103 = vpop.f32.mrf.mxu0
  %v2104 = vadd.f32 %v2076, %v2103
  %2105 = vmatmul.bf16.gmra.mxu0 %v1739
  %v2106 = vpop.f32.mrf.mxu0
  %v2107 = vadd.f32 %v2079, %v2106
  %v2108 = vpop.f32.mrf.mxu0
  %2109 = vdwg.mxu0
  %2110 = vmatpush.bf16.msra.mxu0 %v1012
  %2111 = vmatpush.bf16.msra.mxu0 %v1011
  %2112 = vmatpush.bf16.msra.mxu0 %v1010
  %2113 = vmatpush.bf16.msra.mxu0 %v1009
  %2114 = vmatpush.bf16.msra.mxu0 %v1008
  %2115 = vmatpush.bf16.msra.mxu0 %v1007
  %2116 = vmatpush.bf16.msra.mxu0 %v1006
  %2117 = vmatpush.bf16.msra.mxu0 %v1005
  %2118 = vmatmul.bf16.gmra.mxu0 %v1701
  %v2119 = vpop.f32.mrf.mxu0
  %v2120 = vadd.f32 %v2092, %v2119
  %v2121 = vpop.f32.mrf.mxu0
  %v2122 = vadd.f32 %v2094, %v2121
  %2123 = vmatmul.bf16.gmra.mxu0 %v1714
  %v2124 = vpop.f32.mrf.mxu0
  %v2125 = vadd.f32 %v2097, %v2124
  %v2126 = vpop.f32.mrf.mxu0
  %v2127 = vadd.f32 %v2099, %v2126
  %2128 = vmatmul.bf16.gmra.mxu0 %v1727
  %v2129 = vpop.f32.mrf.mxu0
  %v2130 = vadd.f32 %v2102, %v2129
  %v2131 = vpop.f32.mrf.mxu0
  %v2132 = vadd.f32 %v2104, %v2131
  %2133 = vmatmul.bf16.gmra.mxu0 %v1740
  %v2134 = vpop.f32.mrf.mxu0
  %v2135 = vadd.f32 %v2107, %v2134
  %v2136 = vpop.f32.mrf.mxu0
  %2137 = vdwg.mxu0
  %2138 = vmatpush.bf16.msra.mxu0 0
  %2139 = vmatpush.bf16.msra.mxu0 0
  %2140 = vmatpush.bf16.msra.mxu0 0
  %2141 = vmatpush.bf16.msra.mxu0 0
  %2142 = vmatpush.bf16.msra.mxu0 %v1016
  %2143 = vmatpush.bf16.msra.mxu0 %v1015
  %2144 = vmatpush.bf16.msra.mxu0 %v1014
  %2145 = vmatpush.bf16.msra.mxu0 %v1013
  %2146 = vmatmul.bf16.gmra.mxu0 %v1791
  %v2147 = vpop.f32.mrf.mxu0
  %v2148 = vadd.f32 %v2120, %v2147
  %v2149 = vpop.f32.mrf.mxu0
  %v2150 = vadd.f32 %v2122, %v2149
  %2151 = vmatmul.bf16.gmra.mxu0 %v1794
  %v2152 = vpop.f32.mrf.mxu0
  %v2153 = vadd.f32 %v2125, %v2152
  %v2154 = vpop.f32.mrf.mxu0
  %v2155 = vadd.f32 %v2127, %v2154
  %2156 = vmatmul.bf16.gmra.mxu0 %v1797
  %v2157 = vpop.f32.mrf.mxu0
  %v2158 = vadd.f32 %v2130, %v2157
  %v2159 = vpop.f32.mrf.mxu0
  %v2160 = vadd.f32 %v2132, %v2159
  %2161 = vmatmul.bf16.gmra.mxu0 %v1800
  %v2162 = vpop.f32.mrf.mxu0
  %v2163 = vadd.f32 %v2135, %v2162
  %v2164 = vpop.f32.mrf.mxu0
  %2165 = vdwg.mxu0
  %v2166 = vmax.f32 %v2148, 0.0
  %v2167 = vmax.f32 %v2150, 0.0
  %v2168 = vmax.f32 %v2153, 0.0
  %v2169 = vmax.f32 %v2155, 0.0
  %v2170 = vmax.f32 %v2158, 0.0
  %v2171 = vmax.f32 %v2160, 0.0
  %v2172 = vmax.f32 %v2163, 0.0
  %v2173 = vmax.f32 %v1494, %v2166
  %v2174 = vmax.f32 %v1495, %v2167
  %v2175 = vmax.f32 %v1496, %v2168
  %v2176 = vmax.f32 %v1497, %v2169
  %v2177 = vmax.f32 %v1498, %v2170
  %v2178 = vmax.f32 %v1499, %v2171
  %v2179 = vmax.f32 %v1500, %v2172
  %v2180 = vld [vmem:[%s2] sm:$0xff]
  %v2181 = vld [vmem:[%s2 + $0x8] sm:$0xff]
  %v2182 = vld [vmem:[%s2 + $0x10] sm:$0xff]
  %v2183 = vld [vmem:[%s2 + $0x18] sm:$0xff]
  %v2184 = vld [vmem:[%s2 + $0x20] sm:$0xff]
  %v2185 = vld [vmem:[%s2 + $0x28] sm:$0xff]
  %v2186 = vld [vmem:[%s2 + $0x30] sm:$0xf]
  %v2187 = vld [vmem:[%s2 + $0x34] sm:$0xff]
  %v2188 = vld [vmem:[%s2 + $0x3c] sm:$0xff]
  %v2189 = vld [vmem:[%s2 + $0x44] sm:$0xff]
  %v2190 = vld [vmem:[%s2 + $0x4c] sm:$0xff]
  %v2191 = vld [vmem:[%s2 + $0x54] sm:$0xff]
  %v2192 = vld [vmem:[%s2 + $0x5c] sm:$0xff]
  %v2193 = vld [vmem:[%s2 + $0x64] sm:$0xf]
  %v2194 = vld [vmem:[%s2 + $0x68] sm:$0xff]
  %v2195 = vld [vmem:[%s2 + $0x70] sm:$0xff]
  %v2196 = vld [vmem:[%s2 + $0x78] sm:$0xff]
  %v2197 = vld [vmem:[%s2 + $0x80] sm:$0xff]
  %v2198 = vld [vmem:[%s2 + $0x88] sm:$0xff]
  %v2199 = vld [vmem:[%s2 + $0x90] sm:$0xff]
  %v2200 = vld [vmem:[%s2 + $0x98] sm:$0xf]
  %v2201 = vld [vmem:[%s2 + $0x9c] sm:$0xff]
  %v2202 = vld [vmem:[%s2 + $0xa4] sm:$0xff]
  %v2203 = vld [vmem:[%s2 + $0xac] sm:$0xff]
  %v2204 = vld [vmem:[%s2 + $0xb4] sm:$0xff]
  %v2205 = vld [vmem:[%s2 + $0xbc] sm:$0xff]
  %v2206 = vld [vmem:[%s2 + $0xc4] sm:$0xff]
  %v2207 = vld [vmem:[%s2 + $0xcc] sm:$0xf]
  %v2208 = vld [vmem:[%s2 + $0xd0] sm:$0xff]
  %v2209 = vld [vmem:[%s2 + $0xd8] sm:$0xff]
  %v2210 = vld [vmem:[%s2 + $0xe0] sm:$0xff]
  %v2211 = vld [vmem:[%s2 + $0xe8] sm:$0xff]
  %v2212 = vld [vmem:[%s2 + $0xf0] sm:$0xff]
  %v2213 = vld [vmem:[%s2 + $0xf8] sm:$0xff]
  %v2214 = vld [vmem:[%s2 + $0x100] sm:$0xf]
  %v2215 = vld [vmem:[%s2 + $0x104] sm:$0xff]
  %v2216 = vld [vmem:[%s2 + $0x10c] sm:$0xff]
  %v2217 = vld [vmem:[%s2 + $0x114] sm:$0xff]
  %v2218 = vld [vmem:[%s2 + $0x11c] sm:$0xff]
  %v2219 = vld [vmem:[%s2 + $0x124] sm:$0xff]
  %v2220 = vld [vmem:[%s2 + $0x12c] sm:$0xff]
  %v2221 = vld [vmem:[%s2 + $0x134] sm:$0xf]
  %v2222 = vld [vmem:[%s2 + $0x138] sm:$0x11]
  %v2223 = vld [vmem:[%s2 + $0x140] sm:$0x11]
  %v2224 = vld [vmem:[%s2 + $0x148] sm:$0x11]
  %v2225 = vld [vmem:[%s2 + $0x150] sm:$0x11]
  %v2226 = vld [vmem:[%s2 + $0x158] sm:$0x11]
  %v2227 = vld [vmem:[%s2 + $0x160] sm:$0x11]
  %v2228 = vld [vmem:[%s2 + $0x168] sm:$0x1]
  %v2278 = vunpack.c.l.b16 %v2180
  %v2279 = vunpack.c.h.b16 %v2180
  %v2280 = vunpack.c.l.b16 %v2181
  %v2281 = vunpack.c.h.b16 %v2181
  %v2282 = vunpack.c.l.b16 %v2182
  %v2283 = vunpack.c.h.b16 %v2182
  %v2284 = vunpack.c.l.b16 %v2183
  %v2285 = vunpack.c.h.b16 %v2183
  %v2286 = vunpack.c.l.b16 %v2184
  %v2287 = vunpack.c.h.b16 %v2184
  %v2288 = vunpack.c.l.b16 %v2185
  %v2289 = vunpack.c.h.b16 %v2185
  %v2290 = vunpack.c.l.b16 %v2186
  %v2291 = vunpack.c.l.b16 %v2187
  %v2292 = vunpack.c.h.b16 %v2187
  %v2293 = vunpack.c.l.b16 %v2188
  %v2294 = vunpack.c.h.b16 %v2188
  %v2295 = vunpack.c.l.b16 %v2189
  %v2296 = vunpack.c.h.b16 %v2189
  %v2297 = vunpack.c.l.b16 %v2190
  %v2298 = vunpack.c.h.b16 %v2190
  %v2299 = vunpack.c.l.b16 %v2191
  %v2300 = vunpack.c.h.b16 %v2191
  %v2301 = vunpack.c.l.b16 %v2192
  %v2302 = vunpack.c.h.b16 %v2192
  %v2303 = vunpack.c.l.b16 %v2193
  %v2304 = vunpack.c.l.b16 %v2194
  %v2305 = vunpack.c.h.b16 %v2194
  %v2306 = vunpack.c.l.b16 %v2195
  %v2307 = vunpack.c.h.b16 %v2195
  %v2308 = vunpack.c.l.b16 %v2196
  %v2309 = vunpack.c.h.b16 %v2196
  %v2310 = vunpack.c.l.b16 %v2197
  %v2311 = vunpack.c.h.b16 %v2197
  %v2312 = vunpack.c.l.b16 %v2198
  %v2313 = vunpack.c.h.b16 %v2198
  %v2314 = vunpack.c.l.b16 %v2199
  %v2315 = vunpack.c.h.b16 %v2199
  %v2316 = vunpack.c.l.b16 %v2200
  %v2317 = vunpack.c.l.b16 %v2201
  %v2318 = vunpack.c.h.b16 %v2201
  %v2319 = vunpack.c.l.b16 %v2202
  %v2320 = vunpack.c.h.b16 %v2202
  %v2321 = vunpack.c.l.b16 %v2203
  %v2322 = vunpack.c.h.b16 %v2203
  %v2323 = vunpack.c.l.b16 %v2204
  %v2324 = vunpack.c.h.b16 %v2204
  %v2325 = vunpack.c.l.b16 %v2205
  %v2326 = vunpack.c.h.b16 %v2205
  %v2327 = vunpack.c.l.b16 %v2206
  %v2328 = vunpack.c.h.b16 %v2206
  %v2329 = vunpack.c.l.b16 %v2207
  %v2330 = vunpack.c.l.b16 %v2208
  %v2331 = vunpack.c.h.b16 %v2208
  %v2332 = vunpack.c.l.b16 %v2209
  %v2333 = vunpack.c.h.b16 %v2209
  %v2334 = vunpack.c.l.b16 %v2210
  %v2335 = vunpack.c.h.b16 %v2210
  %v2336 = vunpack.c.l.b16 %v2211
  %v2337 = vunpack.c.h.b16 %v2211
  %v2338 = vunpack.c.l.b16 %v2212
  %v2339 = vunpack.c.h.b16 %v2212
  %v2340 = vunpack.c.l.b16 %v2213
  %v2341 = vunpack.c.h.b16 %v2213
  %v2342 = vunpack.c.l.b16 %v2214
  %v2343 = vunpack.c.l.b16 %v2215
  %v2344 = vunpack.c.h.b16 %v2215
  %v2345 = vunpack.c.l.b16 %v2216
  %v2346 = vunpack.c.h.b16 %v2216
  %v2347 = vunpack.c.l.b16 %v2217
  %v2348 = vunpack.c.h.b16 %v2217
  %v2349 = vunpack.c.l.b16 %v2218
  %v2350 = vunpack.c.h.b16 %v2218
  %v2351 = vunpack.c.l.b16 %v2219
  %v2352 = vunpack.c.h.b16 %v2219
  %v2353 = vunpack.c.l.b16 %v2220
  %v2354 = vunpack.c.h.b16 %v2220
  %v2355 = vunpack.c.l.b16 %v2221
  %v2356 = vunpack.c.l.b16 %v2222
  %v2357 = vunpack.c.h.b16 %v2222
  %v2358 = vunpack.c.l.b16 %v2223
  %v2359 = vunpack.c.h.b16 %v2223
  %v2360 = vunpack.c.l.b16 %v2224
  %v2361 = vunpack.c.h.b16 %v2224
  %v2362 = vunpack.c.l.b16 %v2225
  %v2363 = vunpack.c.h.b16 %v2225
  %v2364 = vunpack.c.l.b16 %v2226
  %v2365 = vunpack.c.h.b16 %v2226
  %v2366 = vunpack.c.l.b16 %v2227
  %v2367 = vunpack.c.h.b16 %v2227
  %v2368 = vunpack.c.l.b16 %v2228
  %v2369 = vpack.c.b16 %v2291, %v2278
  %v2370 = vpack.c.b16 %v2292, %v2279
  %v2371 = vpack.c.b16 %v2293, %v2280
  %v2372 = vpack.c.b16 %v2294, %v2281
  %v2373 = vpack.c.b16 %v2295, %v2282
  %v2374 = vpack.c.b16 %v2296, %v2283
  %v2375 = vpack.c.b16 %v2297, %v2284
  %v2376 = vpack.c.b16 %v2298, %v2285
  %v2377 = vpack.c.b16 %v2299, %v2286
  %v2378 = vpack.c.b16 %v2300, %v2287
  %v2379 = vpack.c.b16 %v2301, %v2288
  %v2380 = vpack.c.b16 %v2302, %v2289
  %v2381 = vpack.c.b16 %v2303, %v2290
  %v2382 = vpack.c.b16 %v2317, %v2304
  %v2383 = vpack.c.b16 %v2318, %v2305
  %v2384 = vpack.c.b16 %v2319, %v2306
  %v2385 = vpack.c.b16 %v2320, %v2307
  %v2386 = vpack.c.b16 %v2321, %v2308
  %v2387 = vpack.c.b16 %v2322, %v2309
  %v2388 = vpack.c.b16 %v2323, %v2310
  %v2389 = vpack.c.b16 %v2324, %v2311
  %v2390 = vpack.c.b16 %v2325, %v2312
  %v2391 = vpack.c.b16 %v2326, %v2313
  %v2392 = vpack.c.b16 %v2327, %v2314
  %v2393 = vpack.c.b16 %v2328, %v2315
  %v2394 = vpack.c.b16 %v2329, %v2316
  %v2395 = vpack.c.b16 %v2343, %v2330
  %v2396 = vpack.c.b16 %v2344, %v2331
  %v2397 = vpack.c.b16 %v2345, %v2332
  %v2398 = vpack.c.b16 %v2346, %v2333
  %v2399 = vpack.c.b16 %v2347, %v2334
  %v2400 = vpack.c.b16 %v2348, %v2335
  %v2401 = vpack.c.b16 %v2349, %v2336
  %v2402 = vpack.c.b16 %v2350, %v2337
  %v2403 = vpack.c.b16 %v2351, %v2338
  %v2404 = vpack.c.b16 %v2352, %v2339
  %v2405 = vpack.c.b16 %v2353, %v2340
  %v2406 = vpack.c.b16 %v2354, %v2341
  %v2407 = vpack.c.b16 %v2355, %v2342
  %v2408 = vpack.c.b16 %v2356, %v2356
  %v2409 = vpack.c.b16 %v2357, %v2357
  %v2410 = vpack.c.b16 %v2358, %v2358
  %v2411 = vpack.c.b16 %v2359, %v2359
  %v2412 = vpack.c.b16 %v2360, %v2360
  %v2413 = vpack.c.b16 %v2361, %v2361
  %v2414 = vpack.c.b16 %v2362, %v2362
  %v2415 = vpack.c.b16 %v2363, %v2363
  %v2416 = vpack.c.b16 %v2364, %v2364
  %v2417 = vpack.c.b16 %v2365, %v2365
  %v2418 = vpack.c.b16 %v2366, %v2366
  %v2419 = vpack.c.b16 %v2367, %v2367
  %v2420 = vpack.c.b16 %v2368, %v2368
  %v2470 = vsel %vm1117, %v2381, 0
  %v2473 = vsel %vm1117, %v2394, 0
  %v2476 = vsel %vm1117, %v2407, 0
  %v2479 = vsel %vm1117, %v2420, 0
  %2481 = vmatpush.bf16.msra.mxu0 %v924
  %2482 = vmatpush.bf16.msra.mxu0 %v923
  %2483 = vmatpush.bf16.msra.mxu0 %v922
  %2484 = vmatpush.bf16.msra.mxu0 %v921
  %2485 = vmatpush.bf16.msra.mxu0 %v920
  %2486 = vmatpush.bf16.msra.mxu0 %v919
  %2487 = vmatpush.bf16.msra.mxu0 %v918
  %2488 = vmatpush.bf16.msra.mxu0 %v917
  %2489 = vmatmul.bf16.gmra.mxu0 %v2369
  %v2490 = vpop.f32.mrf.mxu0
  %v2491 = vadd.f32 %v275, %v2490
  %v2492 = vpop.f32.mrf.mxu0
  %v2493 = vadd.f32 %v275, %v2492
  %2494 = vmatmul.bf16.gmra.mxu0 %v2382
  %v2495 = vpop.f32.mrf.mxu0
  %v2496 = vadd.f32 %v275, %v2495
  %v2497 = vpop.f32.mrf.mxu0
  %v2498 = vadd.f32 %v275, %v2497
  %2499 = vmatmul.bf16.gmra.mxu0 %v2395
  %v2500 = vpop.f32.mrf.mxu0
  %v2501 = vadd.f32 %v275, %v2500
  %v2502 = vpop.f32.mrf.mxu0
  %v2503 = vadd.f32 %v275, %v2502
  %2504 = vmatmul.bf16.gmra.mxu0 %v2408
  %v2505 = vpop.f32.mrf.mxu0
  %v2506 = vadd.f32 %v275, %v2505
  %v2507 = vpop.f32.mrf.mxu0
  %2508 = vdwg.mxu0
  %2509 = vmatpush.bf16.msra.mxu0 %v932
  %2510 = vmatpush.bf16.msra.mxu0 %v931
  %2511 = vmatpush.bf16.msra.mxu0 %v930
  %2512 = vmatpush.bf16.msra.mxu0 %v929
  %2513 = vmatpush.bf16.msra.mxu0 %v928
  %2514 = vmatpush.bf16.msra.mxu0 %v927
  %2515 = vmatpush.bf16.msra.mxu0 %v926
  %2516 = vmatpush.bf16.msra.mxu0 %v925
  %2517 = vmatmul.bf16.gmra.mxu0 %v2370
  %v2518 = vpop.f32.mrf.mxu0
  %v2519 = vadd.f32 %v2491, %v2518
  %v2520 = vpop.f32.mrf.mxu0
  %v2521 = vadd.f32 %v2493, %v2520
  %2522 = vmatmul.bf16.gmra.mxu0 %v2383
  %v2523 = vpop.f32.mrf.mxu0
  %v2524 = vadd.f32 %v2496, %v2523
  %v2525 = vpop.f32.mrf.mxu0
  %v2526 = vadd.f32 %v2498, %v2525
  %2527 = vmatmul.bf16.gmra.mxu0 %v2396
  %v2528 = vpop.f32.mrf.mxu0
  %v2529 = vadd.f32 %v2501, %v2528
  %v2530 = vpop.f32.mrf.mxu0
  %v2531 = vadd.f32 %v2503, %v2530
  %2532 = vmatmul.bf16.gmra.mxu0 %v2409
  %v2533 = vpop.f32.mrf.mxu0
  %v2534 = vadd.f32 %v2506, %v2533
  %v2535 = vpop.f32.mrf.mxu0
  %2536 = vdwg.mxu0
  %2537 = vmatpush.bf16.msra.mxu0 %v940
  %2538 = vmatpush.bf16.msra.mxu0 %v939
  %2539 = vmatpush.bf16.msra.mxu0 %v938
  %2540 = vmatpush.bf16.msra.mxu0 %v937
  %2541 = vmatpush.bf16.msra.mxu0 %v936
  %2542 = vmatpush.bf16.msra.mxu0 %v935
  %2543 = vmatpush.bf16.msra.mxu0 %v934
  %2544 = vmatpush.bf16.msra.mxu0 %v933
  %2545 = vmatmul.bf16.gmra.mxu0 %v2371
  %v2546 = vpop.f32.mrf.mxu0
  %v2547 = vadd.f32 %v2519, %v2546
  %v2548 = vpop.f32.mrf.mxu0
  %v2549 = vadd.f32 %v2521, %v2548
  %2550 = vmatmul.bf16.gmra.mxu0 %v2384
  %v2551 = vpop.f32.mrf.mxu0
  %v2552 = vadd.f32 %v2524, %v2551
  %v2553 = vpop.f32.mrf.mxu0
  %v2554 = vadd.f32 %v2526, %v2553
  %2555 = vmatmul.bf16.gmra.mxu0 %v2397
  %v2556 = vpop.f32.mrf.mxu0
  %v2557 = vadd.f32 %v2529, %v2556
  %v2558 = vpop.f32.mrf.mxu0
  %v2559 = vadd.f32 %v2531, %v2558
  %2560 = vmatmul.bf16.gmra.mxu0 %v2410
  %v2561 = vpop.f32.mrf.mxu0
  %v2562 = vadd.f32 %v2534, %v2561
  %v2563 = vpop.f32.mrf.mxu0
  %2564 = vdwg.mxu0
  %2565 = vmatpush.bf16.msra.mxu0 %v948
  %2566 = vmatpush.bf16.msra.mxu0 %v947
  %2567 = vmatpush.bf16.msra.mxu0 %v946
  %2568 = vmatpush.bf16.msra.mxu0 %v945
  %2569 = vmatpush.bf16.msra.mxu0 %v944
  %2570 = vmatpush.bf16.msra.mxu0 %v943
  %2571 = vmatpush.bf16.msra.mxu0 %v942
  %2572 = vmatpush.bf16.msra.mxu0 %v941
  %2573 = vmatmul.bf16.gmra.mxu0 %v2372
  %v2574 = vpop.f32.mrf.mxu0
  %v2575 = vadd.f32 %v2547, %v2574
  %v2576 = vpop.f32.mrf.mxu0
  %v2577 = vadd.f32 %v2549, %v2576
  %2578 = vmatmul.bf16.gmra.mxu0 %v2385
  %v2579 = vpop.f32.mrf.mxu0
  %v2580 = vadd.f32 %v2552, %v2579
  %v2581 = vpop.f32.mrf.mxu0
  %v2582 = vadd.f32 %v2554, %v2581
  %2583 = vmatmul.bf16.gmra.mxu0 %v2398
  %v2584 = vpop.f32.mrf.mxu0
  %v2585 = vadd.f32 %v2557, %v2584
  %v2586 = vpop.f32.mrf.mxu0
  %v2587 = vadd.f32 %v2559, %v2586
  %2588 = vmatmul.bf16.gmra.mxu0 %v2411
  %v2589 = vpop.f32.mrf.mxu0
  %v2590 = vadd.f32 %v2562, %v2589
  %v2591 = vpop.f32.mrf.mxu0
  %2592 = vdwg.mxu0
  %2593 = vmatpush.bf16.msra.mxu0 %v956
  %2594 = vmatpush.bf16.msra.mxu0 %v955
  %2595 = vmatpush.bf16.msra.mxu0 %v954
  %2596 = vmatpush.bf16.msra.mxu0 %v953
  %2597 = vmatpush.bf16.msra.mxu0 %v952
  %2598 = vmatpush.bf16.msra.mxu0 %v951
  %2599 = vmatpush.bf16.msra.mxu0 %v950
  %2600 = vmatpush.bf16.msra.mxu0 %v949
  %2601 = vmatmul.bf16.gmra.mxu0 %v2373
  %v2602 = vpop.f32.mrf.mxu0
  %v2603 = vadd.f32 %v2575, %v2602
  %v2604 = vpop.f32.mrf.mxu0
  %v2605 = vadd.f32 %v2577, %v2604
  %2606 = vmatmul.bf16.gmra.mxu0 %v2386
  %v2607 = vpop.f32.mrf.mxu0
  %v2608 = vadd.f32 %v2580, %v2607
  %v2609 = vpop.f32.mrf.mxu0
  %v2610 = vadd.f32 %v2582, %v2609
  %2611 = vmatmul.bf16.gmra.mxu0 %v2399
  %v2612 = vpop.f32.mrf.mxu0
  %v2613 = vadd.f32 %v2585, %v2612
  %v2614 = vpop.f32.mrf.mxu0
  %v2615 = vadd.f32 %v2587, %v2614
  %2616 = vmatmul.bf16.gmra.mxu0 %v2412
  %v2617 = vpop.f32.mrf.mxu0
  %v2618 = vadd.f32 %v2590, %v2617
  %v2619 = vpop.f32.mrf.mxu0
  %2620 = vdwg.mxu0
  %2621 = vmatpush.bf16.msra.mxu0 %v964
  %2622 = vmatpush.bf16.msra.mxu0 %v963
  %2623 = vmatpush.bf16.msra.mxu0 %v962
  %2624 = vmatpush.bf16.msra.mxu0 %v961
  %2625 = vmatpush.bf16.msra.mxu0 %v960
  %2626 = vmatpush.bf16.msra.mxu0 %v959
  %2627 = vmatpush.bf16.msra.mxu0 %v958
  %2628 = vmatpush.bf16.msra.mxu0 %v957
  %2629 = vmatmul.bf16.gmra.mxu0 %v2374
  %v2630 = vpop.f32.mrf.mxu0
  %v2631 = vadd.f32 %v2603, %v2630
  %v2632 = vpop.f32.mrf.mxu0
  %v2633 = vadd.f32 %v2605, %v2632
  %2634 = vmatmul.bf16.gmra.mxu0 %v2387
  %v2635 = vpop.f32.mrf.mxu0
  %v2636 = vadd.f32 %v2608, %v2635
  %v2637 = vpop.f32.mrf.mxu0
  %v2638 = vadd.f32 %v2610, %v2637
  %2639 = vmatmul.bf16.gmra.mxu0 %v2400
  %v2640 = vpop.f32.mrf.mxu0
  %v2641 = vadd.f32 %v2613, %v2640
  %v2642 = vpop.f32.mrf.mxu0
  %v2643 = vadd.f32 %v2615, %v2642
  %2644 = vmatmul.bf16.gmra.mxu0 %v2413
  %v2645 = vpop.f32.mrf.mxu0
  %v2646 = vadd.f32 %v2618, %v2645
  %v2647 = vpop.f32.mrf.mxu0
  %2648 = vdwg.mxu0
  %2649 = vmatpush.bf16.msra.mxu0 %v972
  %2650 = vmatpush.bf16.msra.mxu0 %v971
  %2651 = vmatpush.bf16.msra.mxu0 %v970
  %2652 = vmatpush.bf16.msra.mxu0 %v969
  %2653 = vmatpush.bf16.msra.mxu0 %v968
  %2654 = vmatpush.bf16.msra.mxu0 %v967
  %2655 = vmatpush.bf16.msra.mxu0 %v966
  %2656 = vmatpush.bf16.msra.mxu0 %v965
  %2657 = vmatmul.bf16.gmra.mxu0 %v2375
  %v2658 = vpop.f32.mrf.mxu0
  %v2659 = vadd.f32 %v2631, %v2658
  %v2660 = vpop.f32.mrf.mxu0
  %v2661 = vadd.f32 %v2633, %v2660
  %2662 = vmatmul.bf16.gmra.mxu0 %v2388
  %v2663 = vpop.f32.mrf.mxu0
  %v2664 = vadd.f32 %v2636, %v2663
  %v2665 = vpop.f32.mrf.mxu0
  %v2666 = vadd.f32 %v2638, %v2665
  %2667 = vmatmul.bf16.gmra.mxu0 %v2401
  %v2668 = vpop.f32.mrf.mxu0
  %v2669 = vadd.f32 %v2641, %v2668
  %v2670 = vpop.f32.mrf.mxu0
  %v2671 = vadd.f32 %v2643, %v2670
  %2672 = vmatmul.bf16.gmra.mxu0 %v2414
  %v2673 = vpop.f32.mrf.mxu0
  %v2674 = vadd.f32 %v2646, %v2673
  %v2675 = vpop.f32.mrf.mxu0
  %2676 = vdwg.mxu0
  %2677 = vmatpush.bf16.msra.mxu0 %v980
  %2678 = vmatpush.bf16.msra.mxu0 %v979
  %2679 = vmatpush.bf16.msra.mxu0 %v978
  %2680 = vmatpush.bf16.msra.mxu0 %v977
  %2681 = vmatpush.bf16.msra.mxu0 %v976
  %2682 = vmatpush.bf16.msra.mxu0 %v975
  %2683 = vmatpush.bf16.msra.mxu0 %v974
  %2684 = vmatpush.bf16.msra.mxu0 %v973
  %2685 = vmatmul.bf16.gmra.mxu0 %v2376
  %v2686 = vpop.f32.mrf.mxu0
  %v2687 = vadd.f32 %v2659, %v2686
  %v2688 = vpop.f32.mrf.mxu0
  %v2689 = vadd.f32 %v2661, %v2688
  %2690 = vmatmul.bf16.gmra.mxu0 %v2389
  %v2691 = vpop.f32.mrf.mxu0
  %v2692 = vadd.f32 %v2664, %v2691
  %v2693 = vpop.f32.mrf.mxu0
  %v2694 = vadd.f32 %v2666, %v2693
  %2695 = vmatmul.bf16.gmra.mxu0 %v2402
  %v2696 = vpop.f32.mrf.mxu0
  %v2697 = vadd.f32 %v2669, %v2696
  %v2698 = vpop.f32.mrf.mxu0
  %v2699 = vadd.f32 %v2671, %v2698
  %2700 = vmatmul.bf16.gmra.mxu0 %v2415
  %v2701 = vpop.f32.mrf.mxu0
  %v2702 = vadd.f32 %v2674, %v2701
  %v2703 = vpop.f32.mrf.mxu0
  %2704 = vdwg.mxu0
  %2705 = vmatpush.bf16.msra.mxu0 %v988
  %2706 = vmatpush.bf16.msra.mxu0 %v987
  %2707 = vmatpush.bf16.msra.mxu0 %v986
  %2708 = vmatpush.bf16.msra.mxu0 %v985
  %2709 = vmatpush.bf16.msra.mxu0 %v984
  %2710 = vmatpush.bf16.msra.mxu0 %v983
  %2711 = vmatpush.bf16.msra.mxu0 %v982
  %2712 = vmatpush.bf16.msra.mxu0 %v981
  %2713 = vmatmul.bf16.gmra.mxu0 %v2377
  %v2714 = vpop.f32.mrf.mxu0
  %v2715 = vadd.f32 %v2687, %v2714
  %v2716 = vpop.f32.mrf.mxu0
  %v2717 = vadd.f32 %v2689, %v2716
  %2718 = vmatmul.bf16.gmra.mxu0 %v2390
  %v2719 = vpop.f32.mrf.mxu0
  %v2720 = vadd.f32 %v2692, %v2719
  %v2721 = vpop.f32.mrf.mxu0
  %v2722 = vadd.f32 %v2694, %v2721
  %2723 = vmatmul.bf16.gmra.mxu0 %v2403
  %v2724 = vpop.f32.mrf.mxu0
  %v2725 = vadd.f32 %v2697, %v2724
  %v2726 = vpop.f32.mrf.mxu0
  %v2727 = vadd.f32 %v2699, %v2726
  %2728 = vmatmul.bf16.gmra.mxu0 %v2416
  %v2729 = vpop.f32.mrf.mxu0
  %v2730 = vadd.f32 %v2702, %v2729
  %v2731 = vpop.f32.mrf.mxu0
  %2732 = vdwg.mxu0
  %2733 = vmatpush.bf16.msra.mxu0 %v996
  %2734 = vmatpush.bf16.msra.mxu0 %v995
  %2735 = vmatpush.bf16.msra.mxu0 %v994
  %2736 = vmatpush.bf16.msra.mxu0 %v993
  %2737 = vmatpush.bf16.msra.mxu0 %v992
  %2738 = vmatpush.bf16.msra.mxu0 %v991
  %2739 = vmatpush.bf16.msra.mxu0 %v990
  %2740 = vmatpush.bf16.msra.mxu0 %v989
  %2741 = vmatmul.bf16.gmra.mxu0 %v2378
  %v2742 = vpop.f32.mrf.mxu0
  %v2743 = vadd.f32 %v2715, %v2742
  %v2744 = vpop.f32.mrf.mxu0
  %v2745 = vadd.f32 %v2717, %v2744
  %2746 = vmatmul.bf16.gmra.mxu0 %v2391
  %v2747 = vpop.f32.mrf.mxu0
  %v2748 = vadd.f32 %v2720, %v2747
  %v2749 = vpop.f32.mrf.mxu0
  %v2750 = vadd.f32 %v2722, %v2749
  %2751 = vmatmul.bf16.gmra.mxu0 %v2404
  %v2752 = vpop.f32.mrf.mxu0
  %v2753 = vadd.f32 %v2725, %v2752
  %v2754 = vpop.f32.mrf.mxu0
  %v2755 = vadd.f32 %v2727, %v2754
  %2756 = vmatmul.bf16.gmra.mxu0 %v2417
  %v2757 = vpop.f32.mrf.mxu0
  %v2758 = vadd.f32 %v2730, %v2757
  %v2759 = vpop.f32.mrf.mxu0
  %2760 = vdwg.mxu0
  %2761 = vmatpush.bf16.msra.mxu0 %v1004
  %2762 = vmatpush.bf16.msra.mxu0 %v1003
  %2763 = vmatpush.bf16.msra.mxu0 %v1002
  %2764 = vmatpush.bf16.msra.mxu0 %v1001
  %2765 = vmatpush.bf16.msra.mxu0 %v1000
  %2766 = vmatpush.bf16.msra.mxu0 %v999
  %2767 = vmatpush.bf16.msra.mxu0 %v998
  %2768 = vmatpush.bf16.msra.mxu0 %v997
  %2769 = vmatmul.bf16.gmra.mxu0 %v2379
  %v2770 = vpop.f32.mrf.mxu0
  %v2771 = vadd.f32 %v2743, %v2770
  %v2772 = vpop.f32.mrf.mxu0
  %v2773 = vadd.f32 %v2745, %v2772
  %2774 = vmatmul.bf16.gmra.mxu0 %v2392
  %v2775 = vpop.f32.mrf.mxu0
  %v2776 = vadd.f32 %v2748, %v2775
  %v2777 = vpop.f32.mrf.mxu0
  %v2778 = vadd.f32 %v2750, %v2777
  %2779 = vmatmul.bf16.gmra.mxu0 %v2405
  %v2780 = vpop.f32.mrf.mxu0
  %v2781 = vadd.f32 %v2753, %v2780
  %v2782 = vpop.f32.mrf.mxu0
  %v2783 = vadd.f32 %v2755, %v2782
  %2784 = vmatmul.bf16.gmra.mxu0 %v2418
  %v2785 = vpop.f32.mrf.mxu0
  %v2786 = vadd.f32 %v2758, %v2785
  %v2787 = vpop.f32.mrf.mxu0
  %2788 = vdwg.mxu0
  %2789 = vmatpush.bf16.msra.mxu0 %v1012
  %2790 = vmatpush.bf16.msra.mxu0 %v1011
  %2791 = vmatpush.bf16.msra.mxu0 %v1010
  %2792 = vmatpush.bf16.msra.mxu0 %v1009
  %2793 = vmatpush.bf16.msra.mxu0 %v1008
  %2794 = vmatpush.bf16.msra.mxu0 %v1007
  %2795 = vmatpush.bf16.msra.mxu0 %v1006
  %2796 = vmatpush.bf16.msra.mxu0 %v1005
  %2797 = vmatmul.bf16.gmra.mxu0 %v2380
  %v2798 = vpop.f32.mrf.mxu0
  %v2799 = vadd.f32 %v2771, %v2798
  %v2800 = vpop.f32.mrf.mxu0
  %v2801 = vadd.f32 %v2773, %v2800
  %2802 = vmatmul.bf16.gmra.mxu0 %v2393
  %v2803 = vpop.f32.mrf.mxu0
  %v2804 = vadd.f32 %v2776, %v2803
  %v2805 = vpop.f32.mrf.mxu0
  %v2806 = vadd.f32 %v2778, %v2805
  %2807 = vmatmul.bf16.gmra.mxu0 %v2406
  %v2808 = vpop.f32.mrf.mxu0
  %v2809 = vadd.f32 %v2781, %v2808
  %v2810 = vpop.f32.mrf.mxu0
  %v2811 = vadd.f32 %v2783, %v2810
  %2812 = vmatmul.bf16.gmra.mxu0 %v2419
  %v2813 = vpop.f32.mrf.mxu0
  %v2814 = vadd.f32 %v2786, %v2813
  %v2815 = vpop.f32.mrf.mxu0
  %2816 = vdwg.mxu0
  %2817 = vmatpush.bf16.msra.mxu0 0
  %2818 = vmatpush.bf16.msra.mxu0 0
  %2819 = vmatpush.bf16.msra.mxu0 0
  %2820 = vmatpush.bf16.msra.mxu0 0
  %2821 = vmatpush.bf16.msra.mxu0 %v1016
  %2822 = vmatpush.bf16.msra.mxu0 %v1015
  %2823 = vmatpush.bf16.msra.mxu0 %v1014
  %2824 = vmatpush.bf16.msra.mxu0 %v1013
  %2825 = vmatmul.bf16.gmra.mxu0 %v2470
  %v2826 = vpop.f32.mrf.mxu0
  %v2827 = vadd.f32 %v2799, %v2826
  %v2828 = vpop.f32.mrf.mxu0
  %v2829 = vadd.f32 %v2801, %v2828
  %2830 = vmatmul.bf16.gmra.mxu0 %v2473
  %v2831 = vpop.f32.mrf.mxu0
  %v2832 = vadd.f32 %v2804, %v2831
  %v2833 = vpop.f32.mrf.mxu0
  %v2834 = vadd.f32 %v2806, %v2833
  %2835 = vmatmul.bf16.gmra.mxu0 %v2476
  %v2836 = vpop.f32.mrf.mxu0
  %v2837 = vadd.f32 %v2809, %v2836
  %v2838 = vpop.f32.mrf.mxu0
  %v2839 = vadd.f32 %v2811, %v2838
  %2840 = vmatmul.bf16.gmra.mxu0 %v2479
  %v2841 = vpop.f32.mrf.mxu0
  %v2842 = vadd.f32 %v2814, %v2841
  %v2843 = vpop.f32.mrf.mxu0
  %2844 = vdwg.mxu0
  %v2845 = vmax.f32 %v2827, 0.0
  %v2846 = vmax.f32 %v2829, 0.0
  %v2847 = vmax.f32 %v2832, 0.0
  %v2848 = vmax.f32 %v2834, 0.0
  %v2849 = vmax.f32 %v2837, 0.0
  %v2850 = vmax.f32 %v2839, 0.0
  %v2851 = vmax.f32 %v2842, 0.0
  %v2852 = vmax.f32 %v2173, %v2845
  %v2853 = vmax.f32 %v2174, %v2846
  %v2854 = vmax.f32 %v2175, %v2847
  %v2855 = vmax.f32 %v2176, %v2848
  %v2856 = vmax.f32 %v2177, %v2849
  %v2857 = vmax.f32 %v2178, %v2850
  %v2858 = vmax.f32 %v2179, %v2851
  %v2859 = vld [vmem:[%s3] sm:$0xff]
  %v2860 = vld [vmem:[%s3 + $0x8] sm:$0xff]
  %v2861 = vld [vmem:[%s3 + $0x10] sm:$0xff]
  %v2862 = vld [vmem:[%s3 + $0x18] sm:$0xff]
  %v2863 = vld [vmem:[%s3 + $0x20] sm:$0xff]
  %v2864 = vld [vmem:[%s3 + $0x28] sm:$0xff]
  %v2865 = vld [vmem:[%s3 + $0x30] sm:$0xf]
  %v2866 = vld [vmem:[%s3 + $0x34] sm:$0xff]
  %v2867 = vld [vmem:[%s3 + $0x3c] sm:$0xff]
  %v2868 = vld [vmem:[%s3 + $0x44] sm:$0xff]
  %v2869 = vld [vmem:[%s3 + $0x4c] sm:$0xff]
  %v2870 = vld [vmem:[%s3 + $0x54] sm:$0xff]
  %v2871 = vld [vmem:[%s3 + $0x5c] sm:$0xff]
  %v2872 = vld [vmem:[%s3 + $0x64] sm:$0xf]
  %v2873 = vld [vmem:[%s3 + $0x68] sm:$0xff]
  %v2874 = vld [vmem:[%s3 + $0x70] sm:$0xff]
  %v2875 = vld [vmem:[%s3 + $0x78] sm:$0xff]
  %v2876 = vld [vmem:[%s3 + $0x80] sm:$0xff]
  %v2877 = vld [vmem:[%s3 + $0x88] sm:$0xff]
  %v2878 = vld [vmem:[%s3 + $0x90] sm:$0xff]
  %v2879 = vld [vmem:[%s3 + $0x98] sm:$0xf]
  %v2880 = vld [vmem:[%s3 + $0x9c] sm:$0xff]
  %v2881 = vld [vmem:[%s3 + $0xa4] sm:$0xff]
  %v2882 = vld [vmem:[%s3 + $0xac] sm:$0xff]
  %v2883 = vld [vmem:[%s3 + $0xb4] sm:$0xff]
  %v2884 = vld [vmem:[%s3 + $0xbc] sm:$0xff]
  %v2885 = vld [vmem:[%s3 + $0xc4] sm:$0xff]
  %v2886 = vld [vmem:[%s3 + $0xcc] sm:$0xf]
  %v2887 = vld [vmem:[%s3 + $0xd0] sm:$0xff]
  %v2888 = vld [vmem:[%s3 + $0xd8] sm:$0xff]
  %v2889 = vld [vmem:[%s3 + $0xe0] sm:$0xff]
  %v2890 = vld [vmem:[%s3 + $0xe8] sm:$0xff]
  %v2891 = vld [vmem:[%s3 + $0xf0] sm:$0xff]
  %v2892 = vld [vmem:[%s3 + $0xf8] sm:$0xff]
  %v2893 = vld [vmem:[%s3 + $0x100] sm:$0xf]
  %v2894 = vld [vmem:[%s3 + $0x104] sm:$0xff]
  %v2895 = vld [vmem:[%s3 + $0x10c] sm:$0xff]
  %v2896 = vld [vmem:[%s3 + $0x114] sm:$0xff]
  %v2897 = vld [vmem:[%s3 + $0x11c] sm:$0xff]
  %v2898 = vld [vmem:[%s3 + $0x124] sm:$0xff]
  %v2899 = vld [vmem:[%s3 + $0x12c] sm:$0xff]
  %v2900 = vld [vmem:[%s3 + $0x134] sm:$0xf]
  %v2901 = vld [vmem:[%s3 + $0x138] sm:$0x11]
  %v2902 = vld [vmem:[%s3 + $0x140] sm:$0x11]
  %v2903 = vld [vmem:[%s3 + $0x148] sm:$0x11]
  %v2904 = vld [vmem:[%s3 + $0x150] sm:$0x11]
  %v2905 = vld [vmem:[%s3 + $0x158] sm:$0x11]
  %v2906 = vld [vmem:[%s3 + $0x160] sm:$0x11]
  %v2907 = vld [vmem:[%s3 + $0x168] sm:$0x1]
  %v2957 = vunpack.c.l.b16 %v2859
  %v2958 = vunpack.c.h.b16 %v2859
  %v2959 = vunpack.c.l.b16 %v2860
  %v2960 = vunpack.c.h.b16 %v2860
  %v2961 = vunpack.c.l.b16 %v2861
  %v2962 = vunpack.c.h.b16 %v2861
  %v2963 = vunpack.c.l.b16 %v2862
  %v2964 = vunpack.c.h.b16 %v2862
  %v2965 = vunpack.c.l.b16 %v2863
  %v2966 = vunpack.c.h.b16 %v2863
  %v2967 = vunpack.c.l.b16 %v2864
  %v2968 = vunpack.c.h.b16 %v2864
  %v2969 = vunpack.c.l.b16 %v2865
  %v2970 = vunpack.c.l.b16 %v2866
  %v2971 = vunpack.c.h.b16 %v2866
  %v2972 = vunpack.c.l.b16 %v2867
  %v2973 = vunpack.c.h.b16 %v2867
  %v2974 = vunpack.c.l.b16 %v2868
  %v2975 = vunpack.c.h.b16 %v2868
  %v2976 = vunpack.c.l.b16 %v2869
  %v2977 = vunpack.c.h.b16 %v2869
  %v2978 = vunpack.c.l.b16 %v2870
  %v2979 = vunpack.c.h.b16 %v2870
  %v2980 = vunpack.c.l.b16 %v2871
  %v2981 = vunpack.c.h.b16 %v2871
  %v2982 = vunpack.c.l.b16 %v2872
  %v2983 = vunpack.c.l.b16 %v2873
  %v2984 = vunpack.c.h.b16 %v2873
  %v2985 = vunpack.c.l.b16 %v2874
  %v2986 = vunpack.c.h.b16 %v2874
  %v2987 = vunpack.c.l.b16 %v2875
  %v2988 = vunpack.c.h.b16 %v2875
  %v2989 = vunpack.c.l.b16 %v2876
  %v2990 = vunpack.c.h.b16 %v2876
  %v2991 = vunpack.c.l.b16 %v2877
  %v2992 = vunpack.c.h.b16 %v2877
  %v2993 = vunpack.c.l.b16 %v2878
  %v2994 = vunpack.c.h.b16 %v2878
  %v2995 = vunpack.c.l.b16 %v2879
  %v2996 = vunpack.c.l.b16 %v2880
  %v2997 = vunpack.c.h.b16 %v2880
  %v2998 = vunpack.c.l.b16 %v2881
  %v2999 = vunpack.c.h.b16 %v2881
  %v3000 = vunpack.c.l.b16 %v2882
  %v3001 = vunpack.c.h.b16 %v2882
  %v3002 = vunpack.c.l.b16 %v2883
  %v3003 = vunpack.c.h.b16 %v2883
  %v3004 = vunpack.c.l.b16 %v2884
  %v3005 = vunpack.c.h.b16 %v2884
  %v3006 = vunpack.c.l.b16 %v2885
  %v3007 = vunpack.c.h.b16 %v2885
  %v3008 = vunpack.c.l.b16 %v2886
  %v3009 = vunpack.c.l.b16 %v2887
  %v3010 = vunpack.c.h.b16 %v2887
  %v3011 = vunpack.c.l.b16 %v2888
  %v3012 = vunpack.c.h.b16 %v2888
  %v3013 = vunpack.c.l.b16 %v2889
  %v3014 = vunpack.c.h.b16 %v2889
  %v3015 = vunpack.c.l.b16 %v2890
  %v3016 = vunpack.c.h.b16 %v2890
  %v3017 = vunpack.c.l.b16 %v2891
  %v3018 = vunpack.c.h.b16 %v2891
  %v3019 = vunpack.c.l.b16 %v2892
  %v3020 = vunpack.c.h.b16 %v2892
  %v3021 = vunpack.c.l.b16 %v2893
  %v3022 = vunpack.c.l.b16 %v2894
  %v3023 = vunpack.c.h.b16 %v2894
  %v3024 = vunpack.c.l.b16 %v2895
  %v3025 = vunpack.c.h.b16 %v2895
  %v3026 = vunpack.c.l.b16 %v2896
  %v3027 = vunpack.c.h.b16 %v2896
  %v3028 = vunpack.c.l.b16 %v2897
  %v3029 = vunpack.c.h.b16 %v2897
  %v3030 = vunpack.c.l.b16 %v2898
  %v3031 = vunpack.c.h.b16 %v2898
  %v3032 = vunpack.c.l.b16 %v2899
  %v3033 = vunpack.c.h.b16 %v2899
  %v3034 = vunpack.c.l.b16 %v2900
  %v3035 = vunpack.c.l.b16 %v2901
  %v3036 = vunpack.c.h.b16 %v2901
  %v3037 = vunpack.c.l.b16 %v2902
  %v3038 = vunpack.c.h.b16 %v2902
  %v3039 = vunpack.c.l.b16 %v2903
  %v3040 = vunpack.c.h.b16 %v2903
  %v3041 = vunpack.c.l.b16 %v2904
  %v3042 = vunpack.c.h.b16 %v2904
  %v3043 = vunpack.c.l.b16 %v2905
  %v3044 = vunpack.c.h.b16 %v2905
  %v3045 = vunpack.c.l.b16 %v2906
  %v3046 = vunpack.c.h.b16 %v2906
  %v3047 = vunpack.c.l.b16 %v2907
  %v3048 = vpack.c.b16 %v2970, %v2957
  %v3049 = vpack.c.b16 %v2971, %v2958
  %v3050 = vpack.c.b16 %v2972, %v2959
  %v3051 = vpack.c.b16 %v2973, %v2960
  %v3052 = vpack.c.b16 %v2974, %v2961
  %v3053 = vpack.c.b16 %v2975, %v2962
  %v3054 = vpack.c.b16 %v2976, %v2963
  %v3055 = vpack.c.b16 %v2977, %v2964
  %v3056 = vpack.c.b16 %v2978, %v2965
  %v3057 = vpack.c.b16 %v2979, %v2966
  %v3058 = vpack.c.b16 %v2980, %v2967
  %v3059 = vpack.c.b16 %v2981, %v2968
  %v3060 = vpack.c.b16 %v2982, %v2969
  %v3061 = vpack.c.b16 %v2996, %v2983
  %v3062 = vpack.c.b16 %v2997, %v2984
  %v3063 = vpack.c.b16 %v2998, %v2985
  %v3064 = vpack.c.b16 %v2999, %v2986
  %v3065 = vpack.c.b16 %v3000, %v2987
  %v3066 = vpack.c.b16 %v3001, %v2988
  %v3067 = vpack.c.b16 %v3002, %v2989
  %v3068 = vpack.c.b16 %v3003, %v2990
  %v3069 = vpack.c.b16 %v3004, %v2991
  %v3070 = vpack.c.b16 %v3005, %v2992
  %v3071 = vpack.c.b16 %v3006, %v2993
  %v3072 = vpack.c.b16 %v3007, %v2994
  %v3073 = vpack.c.b16 %v3008, %v2995
  %v3074 = vpack.c.b16 %v3022, %v3009
  %v3075 = vpack.c.b16 %v3023, %v3010
  %v3076 = vpack.c.b16 %v3024, %v3011
  %v3077 = vpack.c.b16 %v3025, %v3012
  %v3078 = vpack.c.b16 %v3026, %v3013
  %v3079 = vpack.c.b16 %v3027, %v3014
  %v3080 = vpack.c.b16 %v3028, %v3015
  %v3081 = vpack.c.b16 %v3029, %v3016
  %v3082 = vpack.c.b16 %v3030, %v3017
  %v3083 = vpack.c.b16 %v3031, %v3018
  %v3084 = vpack.c.b16 %v3032, %v3019
  %v3085 = vpack.c.b16 %v3033, %v3020
  %v3086 = vpack.c.b16 %v3034, %v3021
  %v3087 = vpack.c.b16 %v3035, %v3035
  %v3088 = vpack.c.b16 %v3036, %v3036
  %v3089 = vpack.c.b16 %v3037, %v3037
  %v3090 = vpack.c.b16 %v3038, %v3038
  %v3091 = vpack.c.b16 %v3039, %v3039
  %v3092 = vpack.c.b16 %v3040, %v3040
  %v3093 = vpack.c.b16 %v3041, %v3041
  %v3094 = vpack.c.b16 %v3042, %v3042
  %v3095 = vpack.c.b16 %v3043, %v3043
  %v3096 = vpack.c.b16 %v3044, %v3044
  %v3097 = vpack.c.b16 %v3045, %v3045
  %v3098 = vpack.c.b16 %v3046, %v3046
  %v3099 = vpack.c.b16 %v3047, %v3047
  %v3149 = vsel %vm1117, %v3060, 0
  %v3152 = vsel %vm1117, %v3073, 0
  %v3155 = vsel %vm1117, %v3086, 0
  %v3158 = vsel %vm1117, %v3099, 0
  %3160 = vmatpush.bf16.msra.mxu0 %v924
  %3161 = vmatpush.bf16.msra.mxu0 %v923
  %3162 = vmatpush.bf16.msra.mxu0 %v922
  %3163 = vmatpush.bf16.msra.mxu0 %v921
  %3164 = vmatpush.bf16.msra.mxu0 %v920
  %3165 = vmatpush.bf16.msra.mxu0 %v919
  %3166 = vmatpush.bf16.msra.mxu0 %v918
  %3167 = vmatpush.bf16.msra.mxu0 %v917
  %3168 = vmatmul.bf16.gmra.mxu0 %v3048
  %v3169 = vpop.f32.mrf.mxu0
  %v3170 = vadd.f32 %v275, %v3169
  %v3171 = vpop.f32.mrf.mxu0
  %v3172 = vadd.f32 %v275, %v3171
  %3173 = vmatmul.bf16.gmra.mxu0 %v3061
  %v3174 = vpop.f32.mrf.mxu0
  %v3175 = vadd.f32 %v275, %v3174
  %v3176 = vpop.f32.mrf.mxu0
  %v3177 = vadd.f32 %v275, %v3176
  %3178 = vmatmul.bf16.gmra.mxu0 %v3074
  %v3179 = vpop.f32.mrf.mxu0
  %v3180 = vadd.f32 %v275, %v3179
  %v3181 = vpop.f32.mrf.mxu0
  %v3182 = vadd.f32 %v275, %v3181
  %3183 = vmatmul.bf16.gmra.mxu0 %v3087
  %v3184 = vpop.f32.mrf.mxu0
  %v3185 = vadd.f32 %v275, %v3184
  %v3186 = vpop.f32.mrf.mxu0
  %3187 = vdwg.mxu0
  %3188 = vmatpush.bf16.msra.mxu0 %v932
  %3189 = vmatpush.bf16.msra.mxu0 %v931
  %3190 = vmatpush.bf16.msra.mxu0 %v930
  %3191 = vmatpush.bf16.msra.mxu0 %v929
  %3192 = vmatpush.bf16.msra.mxu0 %v928
  %3193 = vmatpush.bf16.msra.mxu0 %v927
  %3194 = vmatpush.bf16.msra.mxu0 %v926
  %3195 = vmatpush.bf16.msra.mxu0 %v925
  %3196 = vmatmul.bf16.gmra.mxu0 %v3049
  %v3197 = vpop.f32.mrf.mxu0
  %v3198 = vadd.f32 %v3170, %v3197
  %v3199 = vpop.f32.mrf.mxu0
  %v3200 = vadd.f32 %v3172, %v3199
  %3201 = vmatmul.bf16.gmra.mxu0 %v3062
  %v3202 = vpop.f32.mrf.mxu0
  %v3203 = vadd.f32 %v3175, %v3202
  %v3204 = vpop.f32.mrf.mxu0
  %v3205 = vadd.f32 %v3177, %v3204
  %3206 = vmatmul.bf16.gmra.mxu0 %v3075
  %v3207 = vpop.f32.mrf.mxu0
  %v3208 = vadd.f32 %v3180, %v3207
  %v3209 = vpop.f32.mrf.mxu0
  %v3210 = vadd.f32 %v3182, %v3209
  %3211 = vmatmul.bf16.gmra.mxu0 %v3088
  %v3212 = vpop.f32.mrf.mxu0
  %v3213 = vadd.f32 %v3185, %v3212
  %v3214 = vpop.f32.mrf.mxu0
  %3215 = vdwg.mxu0
  %3216 = vmatpush.bf16.msra.mxu0 %v940
  %3217 = vmatpush.bf16.msra.mxu0 %v939
  %3218 = vmatpush.bf16.msra.mxu0 %v938
  %3219 = vmatpush.bf16.msra.mxu0 %v937
  %3220 = vmatpush.bf16.msra.mxu0 %v936
  %3221 = vmatpush.bf16.msra.mxu0 %v935
  %3222 = vmatpush.bf16.msra.mxu0 %v934
  %3223 = vmatpush.bf16.msra.mxu0 %v933
  %3224 = vmatmul.bf16.gmra.mxu0 %v3050
  %v3225 = vpop.f32.mrf.mxu0
  %v3226 = vadd.f32 %v3198, %v3225
  %v3227 = vpop.f32.mrf.mxu0
  %v3228 = vadd.f32 %v3200, %v3227
  %3229 = vmatmul.bf16.gmra.mxu0 %v3063
  %v3230 = vpop.f32.mrf.mxu0
  %v3231 = vadd.f32 %v3203, %v3230
  %v3232 = vpop.f32.mrf.mxu0
  %v3233 = vadd.f32 %v3205, %v3232
  %3234 = vmatmul.bf16.gmra.mxu0 %v3076
  %v3235 = vpop.f32.mrf.mxu0
  %v3236 = vadd.f32 %v3208, %v3235
  %v3237 = vpop.f32.mrf.mxu0
  %v3238 = vadd.f32 %v3210, %v3237
  %3239 = vmatmul.bf16.gmra.mxu0 %v3089
  %v3240 = vpop.f32.mrf.mxu0
  %v3241 = vadd.f32 %v3213, %v3240
  %v3242 = vpop.f32.mrf.mxu0
  %3243 = vdwg.mxu0
  %3244 = vmatpush.bf16.msra.mxu0 %v948
  %3245 = vmatpush.bf16.msra.mxu0 %v947
  %3246 = vmatpush.bf16.msra.mxu0 %v946
  %3247 = vmatpush.bf16.msra.mxu0 %v945
  %3248 = vmatpush.bf16.msra.mxu0 %v944
  %3249 = vmatpush.bf16.msra.mxu0 %v943
  %3250 = vmatpush.bf16.msra.mxu0 %v942
  %3251 = vmatpush.bf16.msra.mxu0 %v941
  %3252 = vmatmul.bf16.gmra.mxu0 %v3051
  %v3253 = vpop.f32.mrf.mxu0
  %v3254 = vadd.f32 %v3226, %v3253
  %v3255 = vpop.f32.mrf.mxu0
  %v3256 = vadd.f32 %v3228, %v3255
  %3257 = vmatmul.bf16.gmra.mxu0 %v3064
  %v3258 = vpop.f32.mrf.mxu0
  %v3259 = vadd.f32 %v3231, %v3258
  %v3260 = vpop.f32.mrf.mxu0
  %v3261 = vadd.f32 %v3233, %v3260
  %3262 = vmatmul.bf16.gmra.mxu0 %v3077
  %v3263 = vpop.f32.mrf.mxu0
  %v3264 = vadd.f32 %v3236, %v3263
  %v3265 = vpop.f32.mrf.mxu0
  %v3266 = vadd.f32 %v3238, %v3265
  %3267 = vmatmul.bf16.gmra.mxu0 %v3090
  %v3268 = vpop.f32.mrf.mxu0
  %v3269 = vadd.f32 %v3241, %v3268
  %v3270 = vpop.f32.mrf.mxu0
  %3271 = vdwg.mxu0
  %3272 = vmatpush.bf16.msra.mxu0 %v956
  %3273 = vmatpush.bf16.msra.mxu0 %v955
  %3274 = vmatpush.bf16.msra.mxu0 %v954
  %3275 = vmatpush.bf16.msra.mxu0 %v953
  %3276 = vmatpush.bf16.msra.mxu0 %v952
  %3277 = vmatpush.bf16.msra.mxu0 %v951
  %3278 = vmatpush.bf16.msra.mxu0 %v950
  %3279 = vmatpush.bf16.msra.mxu0 %v949
  %3280 = vmatmul.bf16.gmra.mxu0 %v3052
  %v3281 = vpop.f32.mrf.mxu0
  %v3282 = vadd.f32 %v3254, %v3281
  %v3283 = vpop.f32.mrf.mxu0
  %v3284 = vadd.f32 %v3256, %v3283
  %3285 = vmatmul.bf16.gmra.mxu0 %v3065
  %v3286 = vpop.f32.mrf.mxu0
  %v3287 = vadd.f32 %v3259, %v3286
  %v3288 = vpop.f32.mrf.mxu0
  %v3289 = vadd.f32 %v3261, %v3288
  %3290 = vmatmul.bf16.gmra.mxu0 %v3078
  %v3291 = vpop.f32.mrf.mxu0
  %v3292 = vadd.f32 %v3264, %v3291
  %v3293 = vpop.f32.mrf.mxu0
  %v3294 = vadd.f32 %v3266, %v3293
  %3295 = vmatmul.bf16.gmra.mxu0 %v3091
  %v3296 = vpop.f32.mrf.mxu0
  %v3297 = vadd.f32 %v3269, %v3296
  %v3298 = vpop.f32.mrf.mxu0
  %3299 = vdwg.mxu0
  %3300 = vmatpush.bf16.msra.mxu0 %v964
  %3301 = vmatpush.bf16.msra.mxu0 %v963
  %3302 = vmatpush.bf16.msra.mxu0 %v962
  %3303 = vmatpush.bf16.msra.mxu0 %v961
  %3304 = vmatpush.bf16.msra.mxu0 %v960
  %3305 = vmatpush.bf16.msra.mxu0 %v959
  %3306 = vmatpush.bf16.msra.mxu0 %v958
  %3307 = vmatpush.bf16.msra.mxu0 %v957
  %3308 = vmatmul.bf16.gmra.mxu0 %v3053
  %v3309 = vpop.f32.mrf.mxu0
  %v3310 = vadd.f32 %v3282, %v3309
  %v3311 = vpop.f32.mrf.mxu0
  %v3312 = vadd.f32 %v3284, %v3311
  %3313 = vmatmul.bf16.gmra.mxu0 %v3066
  %v3314 = vpop.f32.mrf.mxu0
  %v3315 = vadd.f32 %v3287, %v3314
  %v3316 = vpop.f32.mrf.mxu0
  %v3317 = vadd.f32 %v3289, %v3316
  %3318 = vmatmul.bf16.gmra.mxu0 %v3079
  %v3319 = vpop.f32.mrf.mxu0
  %v3320 = vadd.f32 %v3292, %v3319
  %v3321 = vpop.f32.mrf.mxu0
  %v3322 = vadd.f32 %v3294, %v3321
  %3323 = vmatmul.bf16.gmra.mxu0 %v3092
  %v3324 = vpop.f32.mrf.mxu0
  %v3325 = vadd.f32 %v3297, %v3324
  %v3326 = vpop.f32.mrf.mxu0
  %3327 = vdwg.mxu0
  %3328 = vmatpush.bf16.msra.mxu0 %v972
  %3329 = vmatpush.bf16.msra.mxu0 %v971
  %3330 = vmatpush.bf16.msra.mxu0 %v970
  %3331 = vmatpush.bf16.msra.mxu0 %v969
  %3332 = vmatpush.bf16.msra.mxu0 %v968
  %3333 = vmatpush.bf16.msra.mxu0 %v967
  %3334 = vmatpush.bf16.msra.mxu0 %v966
  %3335 = vmatpush.bf16.msra.mxu0 %v965
  %3336 = vmatmul.bf16.gmra.mxu0 %v3054
  %v3337 = vpop.f32.mrf.mxu0
  %v3338 = vadd.f32 %v3310, %v3337
  %v3339 = vpop.f32.mrf.mxu0
  %v3340 = vadd.f32 %v3312, %v3339
  %3341 = vmatmul.bf16.gmra.mxu0 %v3067
  %v3342 = vpop.f32.mrf.mxu0
  %v3343 = vadd.f32 %v3315, %v3342
  %v3344 = vpop.f32.mrf.mxu0
  %v3345 = vadd.f32 %v3317, %v3344
  %3346 = vmatmul.bf16.gmra.mxu0 %v3080
  %v3347 = vpop.f32.mrf.mxu0
  %v3348 = vadd.f32 %v3320, %v3347
  %v3349 = vpop.f32.mrf.mxu0
  %v3350 = vadd.f32 %v3322, %v3349
  %3351 = vmatmul.bf16.gmra.mxu0 %v3093
  %v3352 = vpop.f32.mrf.mxu0
  %v3353 = vadd.f32 %v3325, %v3352
  %v3354 = vpop.f32.mrf.mxu0
  %3355 = vdwg.mxu0
  %3356 = vmatpush.bf16.msra.mxu0 %v980
  %3357 = vmatpush.bf16.msra.mxu0 %v979
  %3358 = vmatpush.bf16.msra.mxu0 %v978
  %3359 = vmatpush.bf16.msra.mxu0 %v977
  %3360 = vmatpush.bf16.msra.mxu0 %v976
  %3361 = vmatpush.bf16.msra.mxu0 %v975
  %3362 = vmatpush.bf16.msra.mxu0 %v974
  %3363 = vmatpush.bf16.msra.mxu0 %v973
  %3364 = vmatmul.bf16.gmra.mxu0 %v3055
  %v3365 = vpop.f32.mrf.mxu0
  %v3366 = vadd.f32 %v3338, %v3365
  %v3367 = vpop.f32.mrf.mxu0
  %v3368 = vadd.f32 %v3340, %v3367
  %3369 = vmatmul.bf16.gmra.mxu0 %v3068
  %v3370 = vpop.f32.mrf.mxu0
  %v3371 = vadd.f32 %v3343, %v3370
  %v3372 = vpop.f32.mrf.mxu0
  %v3373 = vadd.f32 %v3345, %v3372
  %3374 = vmatmul.bf16.gmra.mxu0 %v3081
  %v3375 = vpop.f32.mrf.mxu0
  %v3376 = vadd.f32 %v3348, %v3375
  %v3377 = vpop.f32.mrf.mxu0
  %v3378 = vadd.f32 %v3350, %v3377
  %3379 = vmatmul.bf16.gmra.mxu0 %v3094
  %v3380 = vpop.f32.mrf.mxu0
  %v3381 = vadd.f32 %v3353, %v3380
  %v3382 = vpop.f32.mrf.mxu0
  %3383 = vdwg.mxu0
  %3384 = vmatpush.bf16.msra.mxu0 %v988
  %3385 = vmatpush.bf16.msra.mxu0 %v987
  %3386 = vmatpush.bf16.msra.mxu0 %v986
  %3387 = vmatpush.bf16.msra.mxu0 %v985
  %3388 = vmatpush.bf16.msra.mxu0 %v984
  %3389 = vmatpush.bf16.msra.mxu0 %v983
  %3390 = vmatpush.bf16.msra.mxu0 %v982
  %3391 = vmatpush.bf16.msra.mxu0 %v981
  %3392 = vmatmul.bf16.gmra.mxu0 %v3056
  %v3393 = vpop.f32.mrf.mxu0
  %v3394 = vadd.f32 %v3366, %v3393
  %v3395 = vpop.f32.mrf.mxu0
  %v3396 = vadd.f32 %v3368, %v3395
  %3397 = vmatmul.bf16.gmra.mxu0 %v3069
  %v3398 = vpop.f32.mrf.mxu0
  %v3399 = vadd.f32 %v3371, %v3398
  %v3400 = vpop.f32.mrf.mxu0
  %v3401 = vadd.f32 %v3373, %v3400
  %3402 = vmatmul.bf16.gmra.mxu0 %v3082
  %v3403 = vpop.f32.mrf.mxu0
  %v3404 = vadd.f32 %v3376, %v3403
  %v3405 = vpop.f32.mrf.mxu0
  %v3406 = vadd.f32 %v3378, %v3405
  %3407 = vmatmul.bf16.gmra.mxu0 %v3095
  %v3408 = vpop.f32.mrf.mxu0
  %v3409 = vadd.f32 %v3381, %v3408
  %v3410 = vpop.f32.mrf.mxu0
  %3411 = vdwg.mxu0
  %3412 = vmatpush.bf16.msra.mxu0 %v996
  %3413 = vmatpush.bf16.msra.mxu0 %v995
  %3414 = vmatpush.bf16.msra.mxu0 %v994
  %3415 = vmatpush.bf16.msra.mxu0 %v993
  %3416 = vmatpush.bf16.msra.mxu0 %v992
  %3417 = vmatpush.bf16.msra.mxu0 %v991
  %3418 = vmatpush.bf16.msra.mxu0 %v990
  %3419 = vmatpush.bf16.msra.mxu0 %v989
  %3420 = vmatmul.bf16.gmra.mxu0 %v3057
  %v3421 = vpop.f32.mrf.mxu0
  %v3422 = vadd.f32 %v3394, %v3421
  %v3423 = vpop.f32.mrf.mxu0
  %v3424 = vadd.f32 %v3396, %v3423
  %3425 = vmatmul.bf16.gmra.mxu0 %v3070
  %v3426 = vpop.f32.mrf.mxu0
  %v3427 = vadd.f32 %v3399, %v3426
  %v3428 = vpop.f32.mrf.mxu0
  %v3429 = vadd.f32 %v3401, %v3428
  %3430 = vmatmul.bf16.gmra.mxu0 %v3083
  %v3431 = vpop.f32.mrf.mxu0
  %v3432 = vadd.f32 %v3404, %v3431
  %v3433 = vpop.f32.mrf.mxu0
  %v3434 = vadd.f32 %v3406, %v3433
  %3435 = vmatmul.bf16.gmra.mxu0 %v3096
  %v3436 = vpop.f32.mrf.mxu0
  %v3437 = vadd.f32 %v3409, %v3436
  %v3438 = vpop.f32.mrf.mxu0
  %3439 = vdwg.mxu0
  %3440 = vmatpush.bf16.msra.mxu0 %v1004
  %3441 = vmatpush.bf16.msra.mxu0 %v1003
  %3442 = vmatpush.bf16.msra.mxu0 %v1002
  %3443 = vmatpush.bf16.msra.mxu0 %v1001
  %3444 = vmatpush.bf16.msra.mxu0 %v1000
  %3445 = vmatpush.bf16.msra.mxu0 %v999
  %3446 = vmatpush.bf16.msra.mxu0 %v998
  %3447 = vmatpush.bf16.msra.mxu0 %v997
  %3448 = vmatmul.bf16.gmra.mxu0 %v3058
  %v3449 = vpop.f32.mrf.mxu0
  %v3450 = vadd.f32 %v3422, %v3449
  %v3451 = vpop.f32.mrf.mxu0
  %v3452 = vadd.f32 %v3424, %v3451
  %3453 = vmatmul.bf16.gmra.mxu0 %v3071
  %v3454 = vpop.f32.mrf.mxu0
  %v3455 = vadd.f32 %v3427, %v3454
  %v3456 = vpop.f32.mrf.mxu0
  %v3457 = vadd.f32 %v3429, %v3456
  %3458 = vmatmul.bf16.gmra.mxu0 %v3084
  %v3459 = vpop.f32.mrf.mxu0
  %v3460 = vadd.f32 %v3432, %v3459
  %v3461 = vpop.f32.mrf.mxu0
  %v3462 = vadd.f32 %v3434, %v3461
  %3463 = vmatmul.bf16.gmra.mxu0 %v3097
  %v3464 = vpop.f32.mrf.mxu0
  %v3465 = vadd.f32 %v3437, %v3464
  %v3466 = vpop.f32.mrf.mxu0
  %3467 = vdwg.mxu0
  %3468 = vmatpush.bf16.msra.mxu0 %v1012
  %3469 = vmatpush.bf16.msra.mxu0 %v1011
  %3470 = vmatpush.bf16.msra.mxu0 %v1010
  %3471 = vmatpush.bf16.msra.mxu0 %v1009
  %3472 = vmatpush.bf16.msra.mxu0 %v1008
  %3473 = vmatpush.bf16.msra.mxu0 %v1007
  %3474 = vmatpush.bf16.msra.mxu0 %v1006
  %3475 = vmatpush.bf16.msra.mxu0 %v1005
  %3476 = vmatmul.bf16.gmra.mxu0 %v3059
  %v3477 = vpop.f32.mrf.mxu0
  %v3478 = vadd.f32 %v3450, %v3477
  %v3479 = vpop.f32.mrf.mxu0
  %v3480 = vadd.f32 %v3452, %v3479
  %3481 = vmatmul.bf16.gmra.mxu0 %v3072
  %v3482 = vpop.f32.mrf.mxu0
  %v3483 = vadd.f32 %v3455, %v3482
  %v3484 = vpop.f32.mrf.mxu0
  %v3485 = vadd.f32 %v3457, %v3484
  %3486 = vmatmul.bf16.gmra.mxu0 %v3085
  %v3487 = vpop.f32.mrf.mxu0
  %v3488 = vadd.f32 %v3460, %v3487
  %v3489 = vpop.f32.mrf.mxu0
  %v3490 = vadd.f32 %v3462, %v3489
  %3491 = vmatmul.bf16.gmra.mxu0 %v3098
  %v3492 = vpop.f32.mrf.mxu0
  %v3493 = vadd.f32 %v3465, %v3492
  %v3494 = vpop.f32.mrf.mxu0
  %3495 = vdwg.mxu0
  %3496 = vmatpush.bf16.msra.mxu0 0
  %3497 = vmatpush.bf16.msra.mxu0 0
  %3498 = vmatpush.bf16.msra.mxu0 0
  %3499 = vmatpush.bf16.msra.mxu0 0
  %3500 = vmatpush.bf16.msra.mxu0 %v1016
  %3501 = vmatpush.bf16.msra.mxu0 %v1015
  %3502 = vmatpush.bf16.msra.mxu0 %v1014
  %3503 = vmatpush.bf16.msra.mxu0 %v1013
  %3504 = vmatmul.bf16.gmra.mxu0 %v3149
  %v3505 = vpop.f32.mrf.mxu0
  %v3506 = vadd.f32 %v3478, %v3505
  %v3507 = vpop.f32.mrf.mxu0
  %v3508 = vadd.f32 %v3480, %v3507
  %3509 = vmatmul.bf16.gmra.mxu0 %v3152
  %v3510 = vpop.f32.mrf.mxu0
  %v3511 = vadd.f32 %v3483, %v3510
  %v3512 = vpop.f32.mrf.mxu0
  %v3513 = vadd.f32 %v3485, %v3512
  %3514 = vmatmul.bf16.gmra.mxu0 %v3155
  %v3515 = vpop.f32.mrf.mxu0
  %v3516 = vadd.f32 %v3488, %v3515
  %v3517 = vpop.f32.mrf.mxu0
  %v3518 = vadd.f32 %v3490, %v3517
  %3519 = vmatmul.bf16.gmra.mxu0 %v3158
  %v3520 = vpop.f32.mrf.mxu0
  %v3521 = vadd.f32 %v3493, %v3520
  %v3522 = vpop.f32.mrf.mxu0
  %3523 = vdwg.mxu0
  %v3524 = vmax.f32 %v3506, 0.0
  %v3525 = vmax.f32 %v3508, 0.0
  %v3526 = vmax.f32 %v3511, 0.0
  %v3527 = vmax.f32 %v3513, 0.0
  %v3528 = vmax.f32 %v3516, 0.0
  %v3529 = vmax.f32 %v3518, 0.0
  %v3530 = vmax.f32 %v3521, 0.0
  %v3531 = vmax.f32 %v2852, %v3524
  %v3532 = vmax.f32 %v2853, %v3525
  %v3533 = vmax.f32 %v2854, %v3526
  %v3534 = vmax.f32 %v2855, %v3527
  %v3535 = vmax.f32 %v2856, %v3528
  %v3536 = vmax.f32 %v2857, %v3529
  %v3537 = vmax.f32 %v2858, %v3530
  %v3538 = vpack.c.bf16 %v3531, %v3531
  %v3539 = vpack.c.bf16 %v3532, %v3532
  %v3540 = vpack.c.bf16 %v3533, %v3533
  %v3541 = vpack.c.bf16 %v3534, %v3534
  %v3542 = vpack.c.bf16 %v3535, %v3535
  %v3543 = vpack.c.bf16 %v3536, %v3536
  %v3544 = vpack.c.bf16 %v3537, %v3537
  %vm3545 = vcmask 240640
  %3546 = vst.msk [vmem:[%s6] sm:$0xf] %vm3545, %v3538
  %3547 = vst.msk [vmem:[%s6 + $0x4] sm:$0xf] %vm3545, %v3539
  %3548 = vst.msk [vmem:[%s6 + $0x8] sm:$0xf] %vm3545, %v3540
  %3549 = vst.msk [vmem:[%s6 + $0xc] sm:$0xf] %vm3545, %v3541
  %3550 = vst.msk [vmem:[%s6 + $0x10] sm:$0xf] %vm3545, %v3542
  %3551 = vst.msk [vmem:[%s6 + $0x14] sm:$0xf] %vm3545, %v3543
  %vm3552 = vcmask 237568
  %3553 = vst.msk [vmem:[%s6 + $0x18] sm:$0x1] %vm3552, %v3544
  // Predicated region
  $region26: #{forward.4} parent=0 // pred_check
    _
  $region27: #{forward.4} parent=0 // pred_check_branch
    %3555 = sbr.rel (0) target = $region29
  $region28: #{forward.4} parent=0 // pred_region
    _
  $region29: #{forward.4} parent=0 // pred_fallthru
    _
  // Predicated region
  $region30: #{forward.4} parent=0 // pred_check
    _
  $region31: #{forward.4} parent=0 // pred_check_branch
    %3557 = sbr.rel (0) target = $region33
  $region32: #{forward.4} parent=0 // pred_region
    _
  $region33: #{forward.4} parent=0 // pred_fallthru
    _

</llo_original>
